<compile_context>
chip_gen: v7x
topology: tpu7x:2x2x1
jax: 0.10.0
libtpu: 0.0.40
codegen_flags: <defaults>
</compile_context>

<pallas_src>
import math
import functools

import jax
import jax.numpy as jnp
from jax.experimental import pallas as pl
from jax.experimental.pallas import tpu as pltpu


# ----------------------------- kernel -----------------------------

def _layernorm(x, gamma, beta, eps=1e-5):
    mu = jnp.mean(x, axis=-1, keepdims=True)
    var = jnp.mean((x - mu) ** 2, axis=-1, keepdims=True)
    return (x - mu) * jax.lax.rsqrt(var + eps) * gamma + beta


def encoder_kernel(x_ref,
                   wqkv_ref, bqkv_ref, wo_ref, bo_ref,
                   w1_ref, b1_ref, w2_ref, b2_ref,
                   g1_ref, be1_ref, g2_ref, be2_ref,
                   gln_ref, bln_ref, wout_ref, bout_ref,
                   o_ref,
                   carry_ref, *, heads, batch_tile):
    """Grid = (batch_tiles, layer). One post-norm transformer block per step.

    The residual stream for the whole batch tile lives flattened as (Bt*S, D) in a
    VMEM scratch and is carried across the (inner, "arbitrary") layer axis.  The
    final LayerNorm + vocab projection is fused into the last layer step.
    """
    l = pl.program_id(1)
    n_layers = pl.num_programs(1)

    Bt, S, D = x_ref.shape
    M = Bt * S
    Dh = D // heads

    # Load the embedded input into the VMEM carry at the first layer of this tile.
    @pl.when(l == 0)
    def _():
        carry_ref[...] = x_ref[...].reshape(M, D)

    x = carry_ref[...]                      # (M, D) f32 residual stream

    # ---- multi-head self attention (nn.MultiheadAttention semantics) ----
    # One MXU-efficient QKV projection over all Bt*S rows.  The 1/sqrt(Dh) scale is
    # already folded into the Q columns of wqkv / bqkv (init-time transform).
    x_bf = x.astype(jnp.bfloat16)
    qkv = jnp.dot(x_bf, wqkv_ref[0],
                  preferred_element_type=jnp.float32) + bqkv_ref[0]       # (M, 3D) f32
    q_all = qkv[:, :D]
    k_all = qkv[:, D:2 * D]
    v_all = qkv[:, 2 * D:]

    # Attention is per-sequence: static unroll over the batch tile.  Head-batched
    # contractions use leading batch dims (proven Mosaic lowering); the (S,H,Dh) ->
    # (H,S,Dh) regroup is the unavoidable relayout for Dh = 32 < 128 lanes.
    # TODO(synk): KV-blocked online softmax (flash) for long sequences.
    attn_rows = []
    for b in range(batch_tile):
        rows = slice(b * S, (b + 1) * S)
        q = q_all[rows].reshape(S, heads, Dh).transpose(1, 0, 2)          # (H, S, Dh)
        k = k_all[rows].reshape(S, heads, Dh).transpose(1, 0, 2)
        v = v_all[rows].reshape(S, heads, Dh).transpose(1, 0, 2)

        s = jnp.einsum('hqd,hkd->hqk', q.astype(jnp.bfloat16), k.astype(jnp.bfloat16),
                       preferred_element_type=jnp.float32)                # (H, S, S)
        s = s - jnp.max(s, axis=-1, keepdims=True)
        p = jnp.exp(s)
        p = p * pl.reciprocal(jnp.sum(p, axis=-1, keepdims=True), approx=True)
        ctx = jnp.einsum('hqk,hkd->hqd', p.astype(jnp.bfloat16), v.astype(jnp.bfloat16),
                         preferred_element_type=jnp.float32)              # (H, S, Dh)
        attn_rows.append(ctx.transpose(1, 0, 2).reshape(S, D))

    attn = attn_rows[0] if batch_tile == 1 else jnp.concatenate(attn_rows, axis=0)
    attn = jnp.dot(attn.astype(jnp.bfloat16), wo_ref[0],
                   preferred_element_type=jnp.float32) + bo_ref[0]        # (M, D)

    # ---- residual + norm1 ----
    x1 = _layernorm(x + attn, g1_ref[0], be1_ref[0])

    # ---- feed forward (flattened rows -> full MXU row fill) ----
    h1 = jnp.maximum(
        jnp.dot(x1.astype(jnp.bfloat16), w1_ref[0],
                preferred_element_type=jnp.float32) + b1_ref[0], 0.0)
    ff = jnp.dot(h1.astype(jnp.bfloat16), w2_ref[0],
                 preferred_element_type=jnp.float32) + b2_ref[0]

    # ---- residual + norm2 ----
    x2 = _layernorm(x1 + ff, g2_ref[0], be2_ref[0])
    carry_ref[...] = x2

    # ---- fused final LayerNorm + vocab projection on the last layer step ----
    @pl.when(l == n_layers - 1)
    def _():
        y = _layernorm(x2, gln_ref[...], bln_ref[...])
        logits = jnp.dot(y.astype(jnp.bfloat16), wout_ref[...],
                         preferred_element_type=jnp.float32) + bout_ref[...]
        o_ref[...] = logits.reshape(o_ref.shape)


# ----------------------------- pallas_call wrapper -----------------------------

def _layer_spec(arr):
    """Per-layer stacked parameter: leading L axis, block = one layer slice."""
    zeros = (0,) * (arr.ndim - 1)
    return pl.BlockSpec((1,) + arr.shape[1:], lambda b, l, _z=zeros: (l,) + _z)


def _const_spec(arr):
    """Whole-array parameter mapped to every grid step (final LN / output head)."""
    zeros = (0,) * arr.ndim
    return pl.BlockSpec(arr.shape, lambda b, l, _z=zeros: _z)


def _choose_batch_tile(B, S, target_rows=256):
    """Largest power-of-two batch divisor tile such that halving it would drop the
    projection matmuls below `target_rows` rows.  Keeps >=2 parallel grid steps
    (v7x megacore) whenever the batch is big enough, and bounds the per-tile
    attention unroll."""
    bt = B
    while bt % 2 == 0 and (bt // 2) * S >= target_rows:
        bt //= 2
    return bt


def _vmem_limit_bytes():
    """Per-generation VMEM budget: v5e/v6e have 128 MiB physical; v7x only 64 MiB."""
    try:
        kind = jax.devices()[0].device_kind.lower()
    except Exception:
        kind = ""
    if "v5" in kind or "v6" in kind:
        return 100 * 1024 * 1024
    return 48 * 1024 * 1024


def transformer_encoder_forward(tokens, params, pe, heads, batch_tile=None):
    # Embedding gather + positional encoding (glue, plain JAX).
    x = params["embed"][tokens].astype(jnp.float32)            # (B, S, D)
    S = tokens.shape[1]
    x = x + pe[None, :S, :]

    B, _, D = x.shape
    L = params["wqkv"].shape[0]
    V = params["w_out"].shape[-1]

    Bt = batch_tile if batch_tile is not None else _choose_batch_tile(B, S)
    assert B % Bt == 0, "batch tile must divide batch"

    layer_args = [params[k] for k in
                  ("wqkv", "bqkv", "wo", "bo", "w1", "b1", "w2", "b2",
                   "g1", "be1", "g2", "be2")]
    head_args = [params[k] for k in ("gln", "bln", "w_out", "b_out")]

    act_spec = pl.BlockSpec((Bt, S, D), lambda b, l: (b, 0, 0))   # constant over layers
    out_spec = pl.BlockSpec((Bt, S, V), lambda b, l: (b, 0, 0))   # written at last layer
    in_specs = ([act_spec]
                + [_layer_spec(a) for a in layer_args]
                + [_const_spec(a) for a in head_args])

    kernel = functools.partial(encoder_kernel, heads=heads, batch_tile=Bt)
    return pl.pallas_call(
        kernel,
        out_shape=jax.ShapeDtypeStruct((B, S, V), jnp.float32),
        grid_spec=pltpu.PrefetchScalarGridSpec(
            num_scalar_prefetch=0,
            grid=(B // Bt, L),
            in_specs=in_specs,
            out_specs=out_spec,
            scratch_shapes=[pltpu.VMEM((Bt * S, D), jnp.float32)],  # residual carry
        ),
        compiler_params=pltpu.CompilerParams(
            dimension_semantics=("parallel", "arbitrary"),
            vmem_limit_bytes=_vmem_limit_bytes(),
        ),
    )(x, *layer_args, *head_args)


# ----------------------------- model setup (plain JAX glue) -----------------------------

def positional_encoding(max_len, d_model):
    pos = jnp.arange(max_len, dtype=jnp.float32)[:, None]
    div = jnp.exp(jnp.arange(0, d_model, 2, dtype=jnp.float32)
                  * (-math.log(10000.0) / d_model))
    pe = jnp.zeros((max_len, d_model), dtype=jnp.float32)
    pe = pe.at[:, 0::2].set(jnp.sin(pos * div))
    pe = pe.at[:, 1::2].set(jnp.cos(pos * div))
    return pe


def init_params(key, vocab_size, d_model, n_layers, heads, dim_ff):
    keys = jax.random.split(key, 2 + n_layers)
    dh = d_model // heads
    q_scale = 1.0 / math.sqrt(dh)

    def lin(k, in_f, out_f):
        # Stored pre-transposed (in_features, out_features) so kernels compute x @ W.
        kw, kb = jax.random.split(k)
        bound = 1.0 / math.sqrt(in_f)
        w = jax.random.uniform(kw, (in_f, out_f), jnp.float32, -bound, bound)
        b = jax.random.uniform(kb, (out_f,), jnp.float32, -bound, bound)
        return w, b

    embed = jax.random.normal(keys[0], (vocab_size, d_model), jnp.float32)

    wqkv, bqkv, wo, bo, w1, b1, w2, b2 = ([] for _ in range(8))
    for li in range(n_layers):
        lk = jax.random.split(keys[1 + li], 4)
        w, b = lin(lk[0], d_model, 3 * d_model)
        # Fold the 1/sqrt(Dh) attention scale into the Q projection (one-time transform).
        w = w.at[:, :d_model].multiply(q_scale)
        b = b.at[:d_model].multiply(q_scale)
        wqkv.append(w.astype(jnp.bfloat16)); bqkv.append(b[None])
        w, b = lin(lk[1], d_model, d_model); wo.append(w.astype(jnp.bfloat16)); bo.append(b[None])
        w, b = lin(lk[2], d_model, dim_ff);  w1.append(w.astype(jnp.bfloat16)); b1.append(b[None])
        w, b = lin(lk[3], dim_ff, d_model);  w2.append(w.astype(jnp.bfloat16)); b2.append(b[None])

    ones = jnp.ones((n_layers, 1, d_model), jnp.float32)
    zeros = jnp.zeros((n_layers, 1, d_model), jnp.float32)
    w_out, b_out = lin(keys[1 + n_layers], d_model, vocab_size)

    return dict(
        embed=embed,
        wqkv=jnp.stack(wqkv), bqkv=jnp.stack(bqkv),
        wo=jnp.stack(wo), bo=jnp.stack(bo),
        w1=jnp.stack(w1), b1=jnp.stack(b1),
        w2=jnp.stack(w2), b2=jnp.stack(b2),
        g1=ones, be1=zeros, g2=ones, be2=zeros,
        gln=jnp.ones((1, d_model), jnp.float32),
        bln=jnp.zeros((1, d_model), jnp.float32),
        w_out=w_out.astype(jnp.bfloat16), b_out=b_out[None],
    )


# ----------------------------- main -----------------------------

if __name__ == "__main__":
    # Lane-dense small config consistent with the module defaults
    # (d_model=128, heads=4, dim_ff=512, n_layers=4); vocab padded to 128.
    vocab_size = 128
    d_model = 128
    n_layers = 4
    heads = 4
    dim_ff = 512
    max_len = 64
    batch, seq = 2, 8

    key = jax.random.PRNGKey(0)
    k_params, k_tok = jax.random.split(key)

    params = init_params(k_params, vocab_size, d_model, n_layers, heads, dim_ff)
    pe = positional_encoding(max_len, d_model)
    tokens = jax.random.randint(k_tok, (batch, seq), 0, vocab_size, dtype=jnp.int32)

    logits = transformer_encoder_forward(tokens, params, pe, heads)
    jax.block_until_ready(logits)
    assert logits.shape == (batch, seq, vocab_size)
    assert bool(jnp.all(jnp.isfinite(logits)))
    print("KERNEL_OK")
</pallas_src>

<mosaic_0001>
module attributes {stable_mosaic.version = 11 : i64} {
  func.func @encoder_kernel(%arg0: i32, %arg1: i32, %arg2: memref<2x8x128xf32, #tpu.memory_space<vmem>>, %arg3: memref<1x128x384xbf16, #tpu.memory_space<vmem>>, %arg4: memref<1x1x384xf32, #tpu.memory_space<vmem>>, %arg5: memref<1x128x128xbf16, #tpu.memory_space<vmem>>, %arg6: memref<1x1x128xf32, #tpu.memory_space<vmem>>, %arg7: memref<1x128x512xbf16, #tpu.memory_space<vmem>>, %arg8: memref<1x1x512xf32, #tpu.memory_space<vmem>>, %arg9: memref<1x512x128xbf16, #tpu.memory_space<vmem>>, %arg10: memref<1x1x128xf32, #tpu.memory_space<vmem>>, %arg11: memref<1x1x128xf32, #tpu.memory_space<vmem>>, %arg12: memref<1x1x128xf32, #tpu.memory_space<vmem>>, %arg13: memref<1x1x128xf32, #tpu.memory_space<vmem>>, %arg14: memref<1x1x128xf32, #tpu.memory_space<vmem>>, %arg15: memref<1x128xf32, #tpu.memory_space<vmem>>, %arg16: memref<1x128xf32, #tpu.memory_space<vmem>>, %arg17: memref<128x128xbf16, #tpu.memory_space<vmem>>, %arg18: memref<1x128xf32, #tpu.memory_space<vmem>>, %arg19: memref<2x8x128xf32, #tpu.memory_space<vmem>>, %arg20: memref<16x128xf32, #tpu.memory_space<vmem>>) attributes {dimension_semantics = [#tpu.dimension_semantics<parallel>, #tpu.dimension_semantics<arbitrary>], iteration_bounds = array<i64: 1, 4>, scalar_prefetch = 0 : i64, scratch_operands = 1 : i64, tpu.core_type = #tpu.core_type<tc>, window_params = [{transform_indices = @transform_0, window_bounds = array<i64: 2, 8, 128>}, {transform_indices = @transform_1, window_bounds = array<i64: 1, 128, 384>}, {transform_indices = @transform_2, window_bounds = array<i64: 1, 1, 384>}, {transform_indices = @transform_3, window_bounds = array<i64: 1, 128, 128>}, {transform_indices = @transform_4, window_bounds = array<i64: 1, 1, 128>}, {transform_indices = @transform_5, window_bounds = array<i64: 1, 128, 512>}, {transform_indices = @transform_6, window_bounds = array<i64: 1, 1, 512>}, {transform_indices = @transform_7, window_bounds = array<i64: 1, 512, 128>}, {transform_indices = @transform_8, window_bounds = array<i64: 1, 1, 128>}, {transform_indices = @transform_9, window_bounds = array<i64: 1, 1, 128>}, {transform_indices = @transform_10, window_bounds = array<i64: 1, 1, 128>}, {transform_indices = @transform_11, window_bounds = array<i64: 1, 1, 128>}, {transform_indices = @transform_12, window_bounds = array<i64: 1, 1, 128>}, {pipeline_mode = #tpu.pipeline_mode<synchronous>, transform_indices = @transform_13, window_bounds = array<i64: 1, 128>}, {pipeline_mode = #tpu.pipeline_mode<synchronous>, transform_indices = @transform_14, window_bounds = array<i64: 1, 128>}, {pipeline_mode = #tpu.pipeline_mode<synchronous>, transform_indices = @transform_15, window_bounds = array<i64: 128, 128>}, {pipeline_mode = #tpu.pipeline_mode<synchronous>, transform_indices = @transform_16, window_bounds = array<i64: 1, 128>}, {transform_indices = @transform_17, window_bounds = array<i64: 2, 8, 128>}]} {
    %c0_i32 = arith.constant 0 : i32
    %0 = arith.cmpi eq, %arg1, %c0_i32 : i32
    %1 = arith.extui %0 : i1 to i32
    %c0_i32_0 = arith.constant 0 : i32
    %2 = arith.cmpi ne, %1, %c0_i32_0 : i32
    scf.if %2 {
      %c0_63 = arith.constant 0 : index
      %c0_64 = arith.constant 0 : index
      %c0_65 = arith.constant 0 : index
      %154 = vector.load %arg2[%c0_63, %c0_64, %c0_65] : memref<2x8x128xf32, #tpu.memory_space<vmem>>, vector<2x8x128xf32>
      %155 = vector.shape_cast %154 : vector<2x8x128xf32> to vector<16x128xf32>
      %c0_66 = arith.constant 0 : index
      %c0_67 = arith.constant 0 : index
      %156 = vector.load %arg20[%c0_66, %c0_67] : memref<16x128xf32, #tpu.memory_space<vmem>>, vector<16x128xf32>
      tpu.vector_store %arg20[%c0_66, %c0_67], %155 {strides = array<i32>} : memref<16x128xf32, #tpu.memory_space<vmem>>, vector<16x128xf32>,
    } else {
    }
    %c0 = arith.constant 0 : index
    %c0_1 = arith.constant 0 : index
    %3 = vector.load %arg20[%c0, %c0_1] : memref<16x128xf32, #tpu.memory_space<vmem>>, vector<16x128xf32>
    %4 = arith.truncf %3 : vector<16x128xf32> to vector<16x128xbf16>
    %c0_2 = arith.constant 0 : index
    %c0_3 = arith.constant 0 : index
    %c0_4 = arith.constant 0 : index
    %5 = vector.load %arg3[%c0_2, %c0_3, %c0_4] : memref<1x128x384xbf16, #tpu.memory_space<vmem>>, vector<1x128x384xbf16>
    %6 = vector.shape_cast %5 : vector<1x128x384xbf16> to vector<128x384xbf16>
    %cst = arith.constant dense<0.000000e+00> : vector<16x384xf32>
    %7 = tpu.matmul %4, %6, %cst {dimension_numbers = #tpu.dot_dimension_numbers<[1], [0], [0], [1], [0, 0, 1, 1], [], []>} : vector<16x128xbf16>, vector<128x384xbf16>, vector<16x384xf32> -> vector<16x384xf32>
    %c0_5 = arith.constant 0 : index
    %c0_6 = arith.constant 0 : index
    %c0_7 = arith.constant 0 : index
    %8 = vector.load %arg4[%c0_5, %c0_6, %c0_7] : memref<1x1x384xf32, #tpu.memory_space<vmem>>, vector<1x1x384xf32>
    %9 = vector.shape_cast %8 : vector<1x1x384xf32> to vector<1x384xf32>
    %10 = vector.broadcast %9 : vector<1x384xf32> to vector<16x384xf32>
    %11 = arith.addf %7, %10 : vector<16x384xf32>
    %12 = vector.extract_strided_slice %11 {offsets = [0, 0], sizes = [16, 128], strides = [1, 1]} : vector<16x384xf32> to vector<16x128xf32>
    %13 = vector.extract_strided_slice %11 {offsets = [0, 128], sizes = [16, 128], strides = [1, 1]} : vector<16x384xf32> to vector<16x128xf32>
    %14 = vector.extract_strided_slice %11 {offsets = [0, 256], sizes = [16, 128], strides = [1, 1]} : vector<16x384xf32> to vector<16x128xf32>
    %15 = vector.extract_strided_slice %12 {offsets = [0, 0], sizes = [8, 128], strides = [1, 1]} : vector<16x128xf32> to vector<8x128xf32>
    %16 = vector.shape_cast %15 : vector<8x128xf32> to vector<8x4x32xf32>
    %17 = tpu.transpose %16, [1, 0, 2] : vector<8x4x32xf32> -> vector<4x8x32xf32>
    %18 = vector.extract_strided_slice %13 {offsets = [0, 0], sizes = [8, 128], strides = [1, 1]} : vector<16x128xf32> to vector<8x128xf32>
    %19 = vector.shape_cast %18 : vector<8x128xf32> to vector<8x4x32xf32>
    %20 = tpu.transpose %19, [1, 0, 2] : vector<8x4x32xf32> -> vector<4x8x32xf32>
    %21 = vector.extract_strided_slice %14 {offsets = [0, 0], sizes = [8, 128], strides = [1, 1]} : vector<16x128xf32> to vector<8x128xf32>
    %22 = vector.shape_cast %21 : vector<8x128xf32> to vector<8x4x32xf32>
    %23 = tpu.transpose %22, [1, 0, 2] : vector<8x4x32xf32> -> vector<4x8x32xf32>
    %24 = arith.truncf %17 : vector<4x8x32xf32> to vector<4x8x32xbf16>
    %25 = arith.truncf %20 : vector<4x8x32xf32> to vector<4x8x32xbf16>
    "tpu.trace_start"() <{level = 10 : i32, message = "hqd,hkd->hqk"}> : () -> ()
    %cst_8 = arith.constant dense<0.000000e+00> : vector<4x8x8xf32>
    %26 = tpu.matmul %24, %25, %cst_8 {dimension_numbers = #tpu.dot_dimension_numbers<[2], [2], [1], [1], [0, 0, 0, 1, 1, 1], [0], [0]>} : vector<4x8x32xbf16>, vector<4x8x32xbf16>, vector<4x8x8xf32> -> vector<4x8x8xf32>
    "tpu.trace_stop"() : () -> ()
    %cst_9 = arith.constant dense<0xFF800000> : vector<4x8xf32>
    %27 = vector.multi_reduction <maximumf>, %26, %cst_9 [2] : vector<4x8x8xf32> to vector<4x8xf32>
    %28 = vector.shape_cast %27 : vector<4x8xf32> to vector<4x8x1xf32>
    %29 = vector.broadcast %28 : vector<4x8x1xf32> to vector<4x8x8xf32>
    %30 = arith.subf %26, %29 : vector<4x8x8xf32>
    %31 = math.exp %30 : vector<4x8x8xf32>
    %cst_10 = arith.constant dense<0.000000e+00> : vector<4x8xf32>
    %32 = vector.multi_reduction <add>, %31, %cst_10 [2] : vector<4x8x8xf32> to vector<4x8xf32>
    %33 = vector.shape_cast %32 : vector<4x8xf32> to vector<4x8x1xf32>
    %34 = tpu.reciprocal %33 {approx = true} : vector<4x8x1xf32> -> vector<4x8x1xf32>
    %35 = vector.broadcast %34 : vector<4x8x1xf32> to vector<4x8x8xf32>
    %36 = arith.mulf %31, %35 : vector<4x8x8xf32>
    %37 = arith.truncf %36 : vector<4x8x8xf32> to vector<4x8x8xbf16>
    %38 = arith.truncf %23 : vector<4x8x32xf32> to vector<4x8x32xbf16>
    "tpu.trace_start"() <{level = 10 : i32, message = "hqk,hkd->hqd"}> : () -> ()
    %cst_11 = arith.constant dense<0.000000e+00> : vector<4x8x32xf32>
    %39 = tpu.matmul %37, %38, %cst_11 {dimension_numbers = #tpu.dot_dimension_numbers<[2], [1], [1], [2], [0, 0, 0, 1, 1, 2], [0], [0]>} : vector<4x8x8xbf16>, vector<4x8x32xbf16>, vector<4x8x32xf32> -> vector<4x8x32xf32>
    "tpu.trace_stop"() : () -> ()
    %40 = tpu.transpose %39, [1, 0, 2] : vector<4x8x32xf32> -> vector<8x4x32xf32>
    %41 = vector.shape_cast %40 : vector<8x4x32xf32> to vector<8x128xf32>
    %42 = vector.extract_strided_slice %12 {offsets = [8, 0], sizes = [8, 128], strides = [1, 1]} : vector<16x128xf32> to vector<8x128xf32>
    %43 = vector.shape_cast %42 : vector<8x128xf32> to vector<8x4x32xf32>
    %44 = tpu.transpose %43, [1, 0, 2] : vector<8x4x32xf32> -> vector<4x8x32xf32>
    %45 = vector.extract_strided_slice %13 {offsets = [8, 0], sizes = [8, 128], strides = [1, 1]} : vector<16x128xf32> to vector<8x128xf32>
    %46 = vector.shape_cast %45 : vector<8x128xf32> to vector<8x4x32xf32>
    %47 = tpu.transpose %46, [1, 0, 2] : vector<8x4x32xf32> -> vector<4x8x32xf32>
    %48 = vector.extract_strided_slice %14 {offsets = [8, 0], sizes = [8, 128], strides = [1, 1]} : vector<16x128xf32> to vector<8x128xf32>
    %49 = vector.shape_cast %48 : vector<8x128xf32> to vector<8x4x32xf32>
    %50 = tpu.transpose %49, [1, 0, 2] : vector<8x4x32xf32> -> vector<4x8x32xf32>
    %51 = arith.truncf %44 : vector<4x8x32xf32> to vector<4x8x32xbf16>
    %52 = arith.truncf %47 : vector<4x8x32xf32> to vector<4x8x32xbf16>
    "tpu.trace_start"() <{level = 10 : i32, message = "hqd,hkd->hqk"}> : () -> ()
    %cst_12 = arith.constant dense<0.000000e+00> : vector<4x8x8xf32>
    %53 = tpu.matmul %51, %52, %cst_12 {dimension_numbers = #tpu.dot_dimension_numbers<[2], [2], [1], [1], [0, 0, 0, 1, 1, 1], [0], [0]>} : vector<4x8x32xbf16>, vector<4x8x32xbf16>, vector<4x8x8xf32> -> vector<4x8x8xf32>
    "tpu.trace_stop"() : () -> ()
    %cst_13 = arith.constant dense<0xFF800000> : vector<4x8xf32>
    %54 = vector.multi_reduction <maximumf>, %53, %cst_13 [2] : vector<4x8x8xf32> to vector<4x8xf32>
    %55 = vector.shape_cast %54 : vector<4x8xf32> to vector<4x8x1xf32>
    %56 = vector.broadcast %55 : vector<4x8x1xf32> to vector<4x8x8xf32>
    %57 = arith.subf %53, %56 : vector<4x8x8xf32>
    %58 = math.exp %57 : vector<4x8x8xf32>
    %cst_14 = arith.constant dense<0.000000e+00> : vector<4x8xf32>
    %59 = vector.multi_reduction <add>, %58, %cst_14 [2] : vector<4x8x8xf32> to vector<4x8xf32>
    %60 = vector.shape_cast %59 : vector<4x8xf32> to vector<4x8x1xf32>
    %61 = tpu.reciprocal %60 {approx = true} : vector<4x8x1xf32> -> vector<4x8x1xf32>
    %62 = vector.broadcast %61 : vector<4x8x1xf32> to vector<4x8x8xf32>
    %63 = arith.mulf %58, %62 : vector<4x8x8xf32>
    %64 = arith.truncf %63 : vector<4x8x8xf32> to vector<4x8x8xbf16>
    %65 = arith.truncf %50 : vector<4x8x32xf32> to vector<4x8x32xbf16>
    "tpu.trace_start"() <{level = 10 : i32, message = "hqk,hkd->hqd"}> : () -> ()
    %cst_15 = arith.constant dense<0.000000e+00> : vector<4x8x32xf32>
    %66 = tpu.matmul %64, %65, %cst_15 {dimension_numbers = #tpu.dot_dimension_numbers<[2], [1], [1], [2], [0, 0, 0, 1, 1, 2], [0], [0]>} : vector<4x8x8xbf16>, vector<4x8x32xbf16>, vector<4x8x32xf32> -> vector<4x8x32xf32>
    "tpu.trace_stop"() : () -> ()
    %67 = tpu.transpose %66, [1, 0, 2] : vector<4x8x32xf32> -> vector<8x4x32xf32>
    %68 = vector.shape_cast %67 : vector<8x4x32xf32> to vector<8x128xf32>
    %69 = tpu.concatenate %41, %68 in 0 : vector<8x128xf32>, vector<8x128xf32> -> vector<16x128xf32>
    %70 = arith.truncf %69 : vector<16x128xf32> to vector<16x128xbf16>
    %c0_16 = arith.constant 0 : index
    %c0_17 = arith.constant 0 : index
    %c0_18 = arith.constant 0 : index
    %71 = vector.load %arg5[%c0_16, %c0_17, %c0_18] : memref<1x128x128xbf16, #tpu.memory_space<vmem>>, vector<1x128x128xbf16>
    %72 = vector.shape_cast %71 : vector<1x128x128xbf16> to vector<128x128xbf16>
    %cst_19 = arith.constant dense<0.000000e+00> : vector<16x128xf32>
    %73 = tpu.matmul %70, %72, %cst_19 {dimension_numbers = #tpu.dot_dimension_numbers<[1], [0], [0], [1], [0, 0, 1, 1], [], []>} : vector<16x128xbf16>, vector<128x128xbf16>, vector<16x128xf32> -> vector<16x128xf32>
    %c0_20 = arith.constant 0 : index
    %c0_21 = arith.constant 0 : index
    %c0_22 = arith.constant 0 : index
    %74 = vector.load %arg6[%c0_20, %c0_21, %c0_22] : memref<1x1x128xf32, #tpu.memory_space<vmem>>, vector<1x1x128xf32>
    %75 = vector.shape_cast %74 : vector<1x1x128xf32> to vector<1x128xf32>
    %76 = vector.broadcast %75 : vector<1x128xf32> to vector<16x128xf32>
    %77 = arith.addf %73, %76 : vector<16x128xf32>
    %78 = arith.addf %3, %77 : vector<16x128xf32>
    %c0_23 = arith.constant 0 : index
    %c0_24 = arith.constant 0 : index
    %c0_25 = arith.constant 0 : index
    %79 = vector.load %arg11[%c0_23, %c0_24, %c0_25] : memref<1x1x128xf32, #tpu.memory_space<vmem>>, vector<1x1x128xf32>
    %80 = vector.shape_cast %79 : vector<1x1x128xf32> to vector<1x128xf32>
    %c0_26 = arith.constant 0 : index
    %c0_27 = arith.constant 0 : index
    %c0_28 = arith.constant 0 : index
    %81 = vector.load %arg12[%c0_26, %c0_27, %c0_28] : memref<1x1x128xf32, #tpu.memory_space<vmem>>, vector<1x1x128xf32>
    %82 = vector.shape_cast %81 : vector<1x1x128xf32> to vector<1x128xf32>
    %cst_29 = arith.constant dense<0.000000e+00> : vector<16xf32>
    %83 = vector.multi_reduction <add>, %78, %cst_29 [1] : vector<16x128xf32> to vector<16xf32>
    %84 = vector.shape_cast %83 : vector<16xf32> to vector<16x1xf32>
    %cst_30 = arith.constant 1.280000e+02 : f32
    %85 = vector.broadcast %cst_30 : f32 to vector<16x1xf32>
    %86 = arith.divf %84, %85 : vector<16x1xf32>
    %87 = vector.broadcast %86 : vector<16x1xf32> to vector<16x128xf32>
    %88 = arith.subf %78, %87 : vector<16x128xf32>
    %89 = arith.mulf %88, %88 : vector<16x128xf32>
    %cst_31 = arith.constant dense<0.000000e+00> : vector<16xf32>
    %90 = vector.multi_reduction <add>, %89, %cst_31 [1] : vector<16x128xf32> to vector<16xf32>
    %91 = vector.shape_cast %90 : vector<16xf32> to vector<16x1xf32>
    %cst_32 = arith.constant 1.280000e+02 : f32
    %92 = vector.broadcast %cst_32 : f32 to vector<16x1xf32>
    %93 = arith.divf %91, %92 : vector<16x1xf32>
    %94 = vector.broadcast %86 : vector<16x1xf32> to vector<16x128xf32>
    %95 = arith.subf %78, %94 : vector<16x128xf32>
    %cst_33 = arith.constant 9.99999974E-6 : f32
    %96 = vector.broadcast %cst_33 : f32 to vector<16x1xf32>
    %97 = arith.addf %93, %96 : vector<16x1xf32>
    %98 = math.rsqrt %97 : vector<16x1xf32>
    %99 = vector.broadcast %98 : vector<16x1xf32> to vector<16x128xf32>
    %100 = arith.mulf %95, %99 : vector<16x128xf32>
    %101 = vector.broadcast %80 : vector<1x128xf32> to vector<16x128xf32>
    %102 = arith.mulf %100, %101 : vector<16x128xf32>
    %103 = vector.broadcast %82 : vector<1x128xf32> to vector<16x128xf32>
    %104 = arith.addf %102, %103 : vector<16x128xf32>
    %105 = arith.truncf %104 : vector<16x128xf32> to vector<16x128xbf16>
    %c0_34 = arith.constant 0 : index
    %c0_35 = arith.constant 0 : index
    %c0_36 = arith.constant 0 : index
    %106 = vector.load %arg7[%c0_34, %c0_35, %c0_36] : memref<1x128x512xbf16, #tpu.memory_space<vmem>>, vector<1x128x512xbf16>
    %107 = vector.shape_cast %106 : vector<1x128x512xbf16> to vector<128x512xbf16>
    %cst_37 = arith.constant dense<0.000000e+00> : vector<16x512xf32>
    %108 = tpu.matmul %105, %107, %cst_37 {dimension_numbers = #tpu.dot_dimension_numbers<[1], [0], [0], [1], [0, 0, 1, 1], [], []>} : vector<16x128xbf16>, vector<128x512xbf16>, vector<16x512xf32> -> vector<16x512xf32>
    %c0_38 = arith.constant 0 : index
    %c0_39 = arith.constant 0 : index
    %c0_40 = arith.constant 0 : index
    %109 = vector.load %arg8[%c0_38, %c0_39, %c0_40] : memref<1x1x512xf32, #tpu.memory_space<vmem>>, vector<1x1x512xf32>
    %110 = vector.shape_cast %109 : vector<1x1x512xf32> to vector<1x512xf32>
    %111 = vector.broadcast %110 : vector<1x512xf32> to vector<16x512xf32>
    %112 = arith.addf %108, %111 : vector<16x512xf32>
    %cst_41 = arith.constant 0.000000e+00 : f32
    %113 = vector.broadcast %cst_41 : f32 to vector<16x512xf32>
    %114 = arith.maximumf %112, %113 : vector<16x512xf32>
    %115 = arith.truncf %114 : vector<16x512xf32> to vector<16x512xbf16>
    %c0_42 = arith.constant 0 : index
    %c0_43 = arith.constant 0 : index
    %c0_44 = arith.constant 0 : index
    %116 = vector.load %arg9[%c0_42, %c0_43, %c0_44] : memref<1x512x128xbf16, #tpu.memory_space<vmem>>, vector<1x512x128xbf16>
    %117 = vector.shape_cast %116 : vector<1x512x128xbf16> to vector<512x128xbf16>
    %cst_45 = arith.constant dense<0.000000e+00> : vector<16x128xf32>
    %118 = tpu.matmul %115, %117, %cst_45 {dimension_numbers = #tpu.dot_dimension_numbers<[1], [0], [0], [1], [0, 0, 1, 1], [], []>} : vector<16x512xbf16>, vector<512x128xbf16>, vector<16x128xf32> -> vector<16x128xf32>
    %c0_46 = arith.constant 0 : index
    %c0_47 = arith.constant 0 : index
    %c0_48 = arith.constant 0 : index
    %119 = vector.load %arg10[%c0_46, %c0_47, %c0_48] : memref<1x1x128xf32, #tpu.memory_space<vmem>>, vector<1x1x128xf32>
    %120 = vector.shape_cast %119 : vector<1x1x128xf32> to vector<1x128xf32>
    %121 = vector.broadcast %120 : vector<1x128xf32> to vector<16x128xf32>
    %122 = arith.addf %118, %121 : vector<16x128xf32>
    %123 = arith.addf %104, %122 : vector<16x128xf32>
    %c0_49 = arith.constant 0 : index
    %c0_50 = arith.constant 0 : index
    %c0_51 = arith.constant 0 : index
    %124 = vector.load %arg13[%c0_49, %c0_50, %c0_51] : memref<1x1x128xf32, #tpu.memory_space<vmem>>, vector<1x1x128xf32>
    %125 = vector.shape_cast %124 : vector<1x1x128xf32> to vector<1x128xf32>
    %c0_52 = arith.constant 0 : index
    %c0_53 = arith.constant 0 : index
    %c0_54 = arith.constant 0 : index
    %126 = vector.load %arg14[%c0_52, %c0_53, %c0_54] : memref<1x1x128xf32, #tpu.memory_space<vmem>>, vector<1x1x128xf32>
    %127 = vector.shape_cast %126 : vector<1x1x128xf32> to vector<1x128xf32>
    %cst_55 = arith.constant dense<0.000000e+00> : vector<16xf32>
    %128 = vector.multi_reduction <add>, %123, %cst_55 [1] : vector<16x128xf32> to vector<16xf32>
    %129 = vector.shape_cast %128 : vector<16xf32> to vector<16x1xf32>
    %cst_56 = arith.constant 1.280000e+02 : f32
    %130 = vector.broadcast %cst_56 : f32 to vector<16x1xf32>
    %131 = arith.divf %129, %130 : vector<16x1xf32>
    %132 = vector.broadcast %131 : vector<16x1xf32> to vector<16x128xf32>
    %133 = arith.subf %123, %132 : vector<16x128xf32>
    %134 = arith.mulf %133, %133 : vector<16x128xf32>
    %cst_57 = arith.constant dense<0.000000e+00> : vector<16xf32>
    %135 = vector.multi_reduction <add>, %134, %cst_57 [1] : vector<16x128xf32> to vector<16xf32>
    %136 = vector.shape_cast %135 : vector<16xf32> to vector<16x1xf32>
    %cst_58 = arith.constant 1.280000e+02 : f32
    %137 = vector.broadcast %cst_58 : f32 to vector<16x1xf32>
    %138 = arith.divf %136, %137 : vector<16x1xf32>
    %139 = vector.broadcast %131 : vector<16x1xf32> to vector<16x128xf32>
    %140 = arith.subf %123, %139 : vector<16x128xf32>
    %cst_59 = arith.constant 9.99999974E-6 : f32
    %141 = vector.broadcast %cst_59 : f32 to vector<16x1xf32>
    %142 = arith.addf %138, %141 : vector<16x1xf32>
    %143 = math.rsqrt %142 : vector<16x1xf32>
    %144 = vector.broadcast %143 : vector<16x1xf32> to vector<16x128xf32>
    %145 = arith.mulf %140, %144 : vector<16x128xf32>
    %146 = vector.broadcast %125 : vector<1x128xf32> to vector<16x128xf32>
    %147 = arith.mulf %145, %146 : vector<16x128xf32>
    %148 = vector.broadcast %127 : vector<1x128xf32> to vector<16x128xf32>
    %149 = arith.addf %147, %148 : vector<16x128xf32>
    %c0_60 = arith.constant 0 : index
    %c0_61 = arith.constant 0 : index
    %150 = vector.load %arg20[%c0_60, %c0_61] : memref<16x128xf32, #tpu.memory_space<vmem>>, vector<16x128xf32>
    tpu.vector_store %arg20[%c0_60, %c0_61], %149 {strides = array<i32>} : memref<16x128xf32, #tpu.memory_space<vmem>>, vector<16x128xf32>,
    %c3_i32 = arith.constant 3 : i32
    %151 = arith.cmpi eq, %arg1, %c3_i32 : i32
    %152 = arith.extui %151 : i1 to i32
    %c0_i32_62 = arith.constant 0 : i32
    %153 = arith.cmpi ne, %152, %c0_i32_62 : i32
    scf.if %153 {
      %c0_63 = arith.constant 0 : index
      %c0_64 = arith.constant 0 : index
      %154 = vector.load %arg15[%c0_63, %c0_64] : memref<1x128xf32, #tpu.memory_space<vmem>>, vector<1x128xf32>
      %c0_65 = arith.constant 0 : index
      %c0_66 = arith.constant 0 : index
      %155 = vector.load %arg16[%c0_65, %c0_66] : memref<1x128xf32, #tpu.memory_space<vmem>>, vector<1x128xf32>
      %cst_67 = arith.constant dense<0.000000e+00> : vector<16xf32>
      %156 = vector.multi_reduction <add>, %149, %cst_67 [1] : vector<16x128xf32> to vector<16xf32>
      %157 = vector.shape_cast %156 : vector<16xf32> to vector<16x1xf32>
      %cst_68 = arith.constant 1.280000e+02 : f32
      %158 = vector.broadcast %cst_68 : f32 to vector<16x1xf32>
      %159 = arith.divf %157, %158 : vector<16x1xf32>
      %160 = vector.broadcast %159 : vector<16x1xf32> to vector<16x128xf32>
      %161 = arith.subf %149, %160 : vector<16x128xf32>
      %162 = arith.mulf %161, %161 : vector<16x128xf32>
      %cst_69 = arith.constant dense<0.000000e+00> : vector<16xf32>
      %163 = vector.multi_reduction <add>, %162, %cst_69 [1] : vector<16x128xf32> to vector<16xf32>
      %164 = vector.shape_cast %163 : vector<16xf32> to vector<16x1xf32>
      %cst_70 = arith.constant 1.280000e+02 : f32
      %165 = vector.broadcast %cst_70 : f32 to vector<16x1xf32>
      %166 = arith.divf %164, %165 : vector<16x1xf32>
      %167 = vector.broadcast %159 : vector<16x1xf32> to vector<16x128xf32>
      %168 = arith.subf %149, %167 : vector<16x128xf32>
      %cst_71 = arith.constant 9.99999974E-6 : f32
      %169 = vector.broadcast %cst_71 : f32 to vector<16x1xf32>
      %170 = arith.addf %166, %169 : vector<16x1xf32>
      %171 = math.rsqrt %170 : vector<16x1xf32>
      %172 = vector.broadcast %171 : vector<16x1xf32> to vector<16x128xf32>
      %173 = arith.mulf %168, %172 : vector<16x128xf32>
      %174 = vector.broadcast %154 : vector<1x128xf32> to vector<16x128xf32>
      %175 = arith.mulf %173, %174 : vector<16x128xf32>
      %176 = vector.broadcast %155 : vector<1x128xf32> to vector<16x128xf32>
      %177 = arith.addf %175, %176 : vector<16x128xf32>
      %178 = arith.truncf %177 : vector<16x128xf32> to vector<16x128xbf16>
      %c0_72 = arith.constant 0 : index
      %c0_73 = arith.constant 0 : index
      %179 = vector.load %arg17[%c0_72, %c0_73] : memref<128x128xbf16, #tpu.memory_space<vmem>>, vector<128x128xbf16>
      %cst_74 = arith.constant dense<0.000000e+00> : vector<16x128xf32>
      %180 = tpu.matmul %178, %179, %cst_74 {dimension_numbers = #tpu.dot_dimension_numbers<[1], [0], [0], [1], [0, 0, 1, 1], [], []>} : vector<16x128xbf16>, vector<128x128xbf16>, vector<16x128xf32> -> vector<16x128xf32>
      %c0_75 = arith.constant 0 : index
      %c0_76 = arith.constant 0 : index
      %181 = vector.load %arg18[%c0_75, %c0_76] : memref<1x128xf32, #tpu.memory_space<vmem>>, vector<1x128xf32>
      %182 = vector.broadcast %181 : vector<1x128xf32> to vector<16x128xf32>
      %183 = arith.addf %180, %182 : vector<16x128xf32>
      %184 = vector.shape_cast %183 : vector<16x128xf32> to vector<2x8x128xf32>
      %c0_77 = arith.constant 0 : index
      %c0_78 = arith.constant 0 : index
      %c0_79 = arith.constant 0 : index
      %185 = vector.load %arg19[%c0_77, %c0_78, %c0_79] : memref<2x8x128xf32, #tpu.memory_space<vmem>>, vector<2x8x128xf32>
      tpu.vector_store %arg19[%c0_77, %c0_78, %c0_79], %184 {strides = array<i32>} : memref<2x8x128xf32, #tpu.memory_space<vmem>>, vector<2x8x128xf32>,
    } else {
    }
    return
  }
  func.func @transform_0(%arg0: i32, %arg1: i32) -> (i32, i32, i32) {
    %c0_i32 = arith.constant 0 : i32
    %c0_i32_0 = arith.constant 0 : i32
    %c0_i32_1 = arith.constant 0 : i32
    return %arg0, %c0_i32, %c0_i32_0 : i32, i32, i32
  }
  func.func @transform_1(%arg0: i32, %arg1: i32) -> (i32, i32, i32) {
    %c0_i32 = arith.constant 0 : i32
    %c0_i32_0 = arith.constant 0 : i32
    %c0_i32_1 = arith.constant 0 : i32
    return %arg1, %c0_i32, %c0_i32_0 : i32, i32, i32
  }
  func.func @transform_2(%arg0: i32, %arg1: i32) -> (i32, i32, i32) {
    %c0_i32 = arith.constant 0 : i32
    %c0_i32_0 = arith.constant 0 : i32
    %c0_i32_1 = arith.constant 0 : i32
    return %arg1, %c0_i32, %c0_i32_0 : i32, i32, i32
  }
  func.func @transform_3(%arg0: i32, %arg1: i32) -> (i32, i32, i32) {
    %c0_i32 = arith.constant 0 : i32
    %c0_i32_0 = arith.constant 0 : i32
    %c0_i32_1 = arith.constant 0 : i32
    return %arg1, %c0_i32, %c0_i32_0 : i32, i32, i32
  }
  func.func @transform_4(%arg0: i32, %arg1: i32) -> (i32, i32, i32) {
    %c0_i32 = arith.constant 0 : i32
    %c0_i32_0 = arith.constant 0 : i32
    %c0_i32_1 = arith.constant 0 : i32
    return %arg1, %c0_i32, %c0_i32_0 : i32, i32, i32
  }
  func.func @transform_5(%arg0: i32, %arg1: i32) -> (i32, i32, i32) {
    %c0_i32 = arith.constant 0 : i32
    %c0_i32_0 = arith.constant 0 : i32
    %c0_i32_1 = arith.constant 0 : i32
    return %arg1, %c0_i32, %c0_i32_0 : i32, i32, i32
  }
  func.func @transform_6(%arg0: i32, %arg1: i32) -> (i32, i32, i32) {
    %c0_i32 = arith.constant 0 : i32
    %c0_i32_0 = arith.constant 0 : i32
    %c0_i32_1 = arith.constant 0 : i32
    return %arg1, %c0_i32, %c0_i32_0 : i32, i32, i32
  }
  func.func @transform_7(%arg0: i32, %arg1: i32) -> (i32, i32, i32) {
    %c0_i32 = arith.constant 0 : i32
    %c0_i32_0 = arith.constant 0 : i32
    %c0_i32_1 = arith.constant 0 : i32
    return %arg1, %c0_i32, %c0_i32_0 : i32, i32, i32
  }
  func.func @transform_8(%arg0: i32, %arg1: i32) -> (i32, i32, i32) {
    %c0_i32 = arith.constant 0 : i32
    %c0_i32_0 = arith.constant 0 : i32
    %c0_i32_1 = arith.constant 0 : i32
    return %arg1, %c0_i32, %c0_i32_0 : i32, i32, i32
  }
  func.func @transform_9(%arg0: i32, %arg1: i32) -> (i32, i32, i32) {
    %c0_i32 = arith.constant 0 : i32
    %c0_i32_0 = arith.constant 0 : i32
    %c0_i32_1 = arith.constant 0 : i32
    return %arg1, %c0_i32, %c0_i32_0 : i32, i32, i32
  }
  func.func @transform_10(%arg0: i32, %arg1: i32) -> (i32, i32, i32) {
    %c0_i32 = arith.constant 0 : i32
    %c0_i32_0 = arith.constant 0 : i32
    %c0_i32_1 = arith.constant 0 : i32
    return %arg1, %c0_i32, %c0_i32_0 : i32, i32, i32
  }
  func.func @transform_11(%arg0: i32, %arg1: i32) -> (i32, i32, i32) {
    %c0_i32 = arith.constant 0 : i32
    %c0_i32_0 = arith.constant 0 : i32
    %c0_i32_1 = arith.constant 0 : i32
    return %arg1, %c0_i32, %c0_i32_0 : i32, i32, i32
  }
  func.func @transform_12(%arg0: i32, %arg1: i32) -> (i32, i32, i32) {
    %c0_i32 = arith.constant 0 : i32
    %c0_i32_0 = arith.constant 0 : i32
    %c0_i32_1 = arith.constant 0 : i32
    return %arg1, %c0_i32, %c0_i32_0 : i32, i32, i32
  }
  func.func @transform_13(%arg0: i32, %arg1: i32) -> (i32, i32) {
    %c0_i32 = arith.constant 0 : i32
    %c0_i32_0 = arith.constant 0 : i32
    %c0_i32_1 = arith.constant 0 : i32
    return %c0_i32, %c0_i32_0 : i32, i32
  }
  func.func @transform_14(%arg0: i32, %arg1: i32) -> (i32, i32) {
    %c0_i32 = arith.constant 0 : i32
    %c0_i32_0 = arith.constant 0 : i32
    %c0_i32_1 = arith.constant 0 : i32
    return %c0_i32, %c0_i32_0 : i32, i32
  }
  func.func @transform_15(%arg0: i32, %arg1: i32) -> (i32, i32) {
    %c0_i32 = arith.constant 0 : i32
    %c0_i32_0 = arith.constant 0 : i32
    %c0_i32_1 = arith.constant 0 : i32
    return %c0_i32, %c0_i32_0 : i32, i32
  }
  func.func @transform_16(%arg0: i32, %arg1: i32) -> (i32, i32) {
    %c0_i32 = arith.constant 0 : i32
    %c0_i32_0 = arith.constant 0 : i32
    %c0_i32_1 = arith.constant 0 : i32
    return %c0_i32, %c0_i32_0 : i32, i32
  }
  func.func @transform_17(%arg0: i32, %arg1: i32) -> (i32, i32, i32) {
    %c0_i32 = arith.constant 0 : i32
    %c0_i32_0 = arith.constant 0 : i32
    %c0_i32_1 = arith.constant 0 : i32
    return %arg0, %c0_i32, %c0_i32_0 : i32, i32, i32
  }
}

</mosaic_0001>

<llo_original>
// kernel: tpu_custom_call.1
$region0: #{tpu_custom_call.1}
  #allocation0 [shape = 'u32[]', space=smem, size = 0x4, offset = 0x4, fixed_abs, tag = 'smem constant byte address 0x4 - core index']
  #allocation1 [shape = 'u32[144,128]{1,0:T(1,128)}', space=vmem, size = 0x12000, scoped, tag = 'internal scratch']
  #allocation2 [shape = 'f32[16,128]{1,0:T(8,128)}', space=vmem, size = 0x2000, scoped, tag = 'scratch operand']
  %s0 = inlined_call_operand.hbm [shape: f32[2,8,128], index: 0, kind: input, shape index: {}]
  %s1 = inlined_call_operand.hbm [shape: bf16[4,128,384], index: 1, kind: input, shape index: {}]
  %s2 = inlined_call_operand.hbm [shape: f32[4,1,384], index: 2, kind: input, shape index: {}]
  %s3 = inlined_call_operand.hbm [shape: bf16[4,128,128], index: 3, kind: input, shape index: {}]
  %s4 = inlined_call_operand.vmem [shape: f32[4,1,128], index: 4, kind: input, shape index: {}]
  %s5 = inlined_call_operand.hbm [shape: bf16[4,128,512], index: 5, kind: input, shape index: {}]
  %s6 = inlined_call_operand.vmem [shape: f32[4,1,512], index: 6, kind: input, shape index: {}]
  %s7 = inlined_call_operand.hbm [shape: bf16[4,512,128], index: 7, kind: input, shape index: {}]
  %s8 = inlined_call_operand.vmem [shape: f32[4,1,128], index: 8, kind: input, shape index: {}]
  %s9 = inlined_call_operand.vmem [shape: f32[4,1,128], index: 9, kind: input, shape index: {}]
  %s10 = inlined_call_operand.vmem [shape: f32[4,1,128], index: 10, kind: input, shape index: {}]
  %s11 = inlined_call_operand.vmem [shape: f32[4,1,128], index: 11, kind: input, shape index: {}]
  %s12 = inlined_call_operand.vmem [shape: f32[4,1,128], index: 12, kind: input, shape index: {}]
  %s13 = inlined_call_operand.vmem [shape: f32[1,128], index: 13, kind: input, shape index: {}]
  %s14 = inlined_call_operand.vmem [shape: f32[1,128], index: 14, kind: input, shape index: {}]
  %s15 = inlined_call_operand.hbm [shape: bf16[128,128], index: 15, kind: input, shape index: {}]
  %s16 = inlined_call_operand.vmem [shape: f32[1,128], index: 16, kind: input, shape index: {}]
  %s17 = inlined_call_operand.hbm [shape: f32[2,8,128], index: 17, kind: output, shape index: {}]
  %s18 = sld [smem:[#allocation0]]
  $region137: #{tpu_custom_call.1} parent=0
    _
  %s20 = ssub.s32 1, %s18
  %s21 = scalar_select 0, %s20, %s18
  $region1: #{tpu_custom_call.1} parent=0
    #allocation3 [shape = 'u8[8192]{0}', space=vmem, size = 0x2000, scoped, tag = 'input window, operand 0, single buffered']
    #allocation4 [shape = 's32[2]{0}', space=sflag, size = 0x8, scoped, tag = 'scoped memory for tpu_custom_call.1']
    #allocation5 [shape = 's32[2]{0}', space=sflag, size = 0x8, scoped, tag = 'scoped memory for tpu_custom_call.1']
    #allocation6 [shape = 'u8[196608]{0}', space=vmem, size = 0x30000, scoped, tag = 'input window, operand 1']
    #allocation7 [shape = 's32[2]{0}', space=sflag, size = 0x8, scoped, tag = 'scoped memory for tpu_custom_call.1']
    #allocation8 [shape = 'u8[3072]{0}', space=vmem, size = 0xc00, scoped, tag = 'input window, operand 2']
    #allocation9 [shape = 'u8[65536]{0}', space=vmem, size = 0x10000, scoped, tag = 'input window, operand 3']
    #allocation10 [shape = 's32[2]{0}', space=sflag, size = 0x8, scoped, tag = 'scoped memory for tpu_custom_call.1']
    #allocation11 [shape = 'u8[262144]{0}', space=vmem, size = 0x40000, scoped, tag = 'input window, operand 5']
    #allocation12 [shape = 'u8[262144]{0}', space=vmem, size = 0x40000, scoped, tag = 'input window, operand 7']
    #allocation13 [shape = 's32[2]{0}', space=sflag, size = 0x8, scoped, tag = 'scoped memory for tpu_custom_call.1']
    #allocation14 [shape = 'u8[32768]{0}', space=vmem, size = 0x8000, scoped, tag = 'input window, operand 15, single buffered']
    #allocation15 [shape = 'u8[8192]{0}', space=vmem, size = 0x2000, scoped, tag = 'output window, operand 0, single buffered']
    %22 = vsyncpa [#allocation4], 0
    %23 = vsyncpa [#allocation7], 0
    %s24 = scalar_lea.sflag [#allocation7], 1
    %25 = vsyncpa %s24, 0
    %26 = vsyncpa [#allocation10], 0
    %s27 = scalar_lea.sflag [#allocation10], 1
    %28 = vsyncpa %s27, 0
    %29 = vsyncpa [#allocation13], 0
    %s30 = scalar_lea.sflag [#allocation13], 1
    %31 = vsyncpa %s30, 0
    %32 = vsyncpa [#allocation5], 0
    loop: start=0, step=1, limit=6
    $region2: #{tpu_custom_call.1} parent=1 // loop_pre_header
      _
    $region3: #{tpu_custom_call.1} parent=1 // loop_header
      %s34 = sphi 0, %s38
      %p35 = scmp.ge.s32.totalorder %s34, 6
      %s41 = sphi 0, %s53
      %s42 = sphi 0, %s49
      %s43 = sphi 0, %s41
      %s44 = sphi 0, %s42
      %s45 = sphi 0, %s43
      %s46 = sphi 0, %s44
      %s56 = sphi 0, %s58
      %s59 = sphi 0, %s56
      %s60 = sphi 0, %s59
      %s76 = sphi 0, %s60
      %s82 = sphi 0, %s84
      %s85 = sphi 0, %s82
      %s86 = sphi 0, %s85
      %s102 = sphi 0, %s86
      %s108 = sphi 0, %s110
      %s111 = sphi 0, %s108
      %s112 = sphi 0, %s111
      %s128 = sphi 0, %s112
      %s134 = sphi 0, %s136
      %s137 = sphi 0, %s134
      %s138 = sphi 0, %s137
      %s154 = sphi 0, %s138
      %s160 = sphi 0, %s162
      %s163 = sphi 0, %s160
      %s164 = sphi 0, %s163
      %s180 = sphi 0, %s164
      %s186 = sphi 0, %s188
      %s189 = sphi 0, %s186
      %s190 = sphi 0, %s189
      %s206 = sphi 0, %s190
      %s212 = sphi 0, %s214
      %s215 = sphi 0, %s212
      %s216 = sphi 0, %s215
      %s232 = sphi 0, %s216
      %s238 = sphi 0, %s240
      %s241 = sphi 0, %s238
      %s242 = sphi 0, %s241
      %s258 = sphi 0, %s242
      %s264 = sphi 0, %s266
      %s267 = sphi 0, %s264
      %s268 = sphi 0, %s267
      %s284 = sphi 0, %s268
      %s290 = sphi 0, %s292
      %s293 = sphi 0, %s290
      %s294 = sphi 0, %s293
      %s310 = sphi 0, %s294
      %s316 = sphi 0, %s318
      %s319 = sphi 0, %s316
      %s320 = sphi 0, %s319
      %s336 = sphi 0, %s320
      %s342 = sphi 0, %s344
      %s345 = sphi 0, %s342
      %s346 = sphi 0, %s345
      %s362 = sphi 0, %s346
      %s368 = sphi 0, %s370
      %s371 = sphi 0, %s368
      %s372 = sphi 0, %s371
      %s388 = sphi 0, %s372
      %s392 = sphi 0, %s392
      %s394 = sphi 0, %s392
      %s395 = sphi 0, %s394
      %s409 = sphi 0, %s395
      %s413 = sphi 0, %s413
      %s415 = sphi 0, %s413
      %s416 = sphi 0, %s415
      %s430 = sphi 0, %s416
      %s434 = sphi 0, %s434
      %s436 = sphi 0, %s434
      %s437 = sphi 0, %s436
      %s451 = sphi 0, %s437
      %s455 = sphi 0, %s455
      %s457 = sphi 0, %s455
      %s458 = sphi 0, %s457
      %s472 = sphi 0, %s458
      %s478 = sphi 0, %s480
      %s481 = sphi 0, %s478
      %s482 = sphi 0, %s481
      %s498 = sphi 0, %s482
    $region4: #{tpu_custom_call.1} parent=1 // loop_header_branch
      %37 = sbr.rel (%p35) target = $region8
    $region5: #{tpu_custom_call.1} parent=1 // loop_body
      %s39 = ssub.s32 %s34, 1
      %s40 = ssub.s32 %s34, 2
      %s47 = sadd.s32 1, %s42
      %p48 = scmp.ge.s32.totalorder %s47, 4
      %s49 = scalar_select %p48, 0, %s47
      %s50 = sadd.s32 1, %s41
      %s51 = scalar_select %p48, %s50, %s41
      %p52 = scmp.ge.s32.totalorder %s51, 1
      %s53 = scalar_select %p52, 0, %s51
      %s54 = ssub.s32 %s41, %s53
      %p55 = scmp.eq.s32.totalorder %s54, 0
      %s57 = sadd.s32 %s56, 1
      %s58 = scalar_select %p55, %s56, %s57
      %p61 = pneg %p55
      %p62 = scmp.eq.s32.totalorder %s34, 3
      %p63 = por %p61, %p62
      %p64 = scmp.ne.s32.totalorder %s56, %s59
      %p65 = scmp.eq.s32.totalorder %s34, 0
      %p66 = por %p64, %p65
      %p67 = scmp.ne.s32.totalorder %s56, %s59
      %p68 = scmp.eq.s32.totalorder %s39, 3
      %p69 = por %p67, %p68
      %p70 = scmp.ne.s32.totalorder %s59, %s60
      %p71 = scmp.eq.s32.totalorder %s39, 0
      %p72 = por %p70, %p71
      %p73 = scmp.ne.s32.totalorder %s59, %s60
      %p74 = scmp.eq.s32.totalorder %s40, 3
      %p75 = por %p73, %p74
      %p77 = scmp.ne.s32.totalorder %s60, %s76
      %p78 = scmp.eq.s32.totalorder %s40, 0
      %p79 = por %p77, %p78
      %s80 = ssub.s32 %s42, %s49
      %p81 = scmp.eq.s32.totalorder %s80, 0
      %s83 = sadd.s32 %s82, 1
      %s84 = scalar_select %p81, %s82, %s83
      %p87 = pneg %p81
      %p88 = scmp.eq.s32.totalorder %s34, 3
      %p89 = por %p87, %p88
      %p90 = scmp.ne.s32.totalorder %s82, %s85
      %p91 = scmp.eq.s32.totalorder %s34, 0
      %p92 = por %p90, %p91
      %p93 = scmp.ne.s32.totalorder %s82, %s85
      %p94 = scmp.eq.s32.totalorder %s39, 3
      %p95 = por %p93, %p94
      %p96 = scmp.ne.s32.totalorder %s85, %s86
      %p97 = scmp.eq.s32.totalorder %s39, 0
      %p98 = por %p96, %p97
      %p99 = scmp.ne.s32.totalorder %s85, %s86
      %p100 = scmp.eq.s32.totalorder %s40, 3
      %p101 = por %p99, %p100
      %p103 = scmp.ne.s32.totalorder %s86, %s102
      %p104 = scmp.eq.s32.totalorder %s40, 0
      %p105 = por %p103, %p104
      %s106 = ssub.s32 %s42, %s49
      %p107 = scmp.eq.s32.totalorder %s106, 0
      %s109 = sadd.s32 %s108, 1
      %s110 = scalar_select %p107, %s108, %s109
      %p113 = pneg %p107
      %p114 = scmp.eq.s32.totalorder %s34, 3
      %p115 = por %p113, %p114
      %p116 = scmp.ne.s32.totalorder %s108, %s111
      %p117 = scmp.eq.s32.totalorder %s34, 0
      %p118 = por %p116, %p117
      %p119 = scmp.ne.s32.totalorder %s108, %s111
      %p120 = scmp.eq.s32.totalorder %s39, 3
      %p121 = por %p119, %p120
      %p122 = scmp.ne.s32.totalorder %s111, %s112
      %p123 = scmp.eq.s32.totalorder %s39, 0
      %p124 = por %p122, %p123
      %p125 = scmp.ne.s32.totalorder %s111, %s112
      %p126 = scmp.eq.s32.totalorder %s40, 3
      %p127 = por %p125, %p126
      %p129 = scmp.ne.s32.totalorder %s112, %s128
      %p130 = scmp.eq.s32.totalorder %s40, 0
      %p131 = por %p129, %p130
      %s132 = ssub.s32 %s42, %s49
      %p133 = scmp.eq.s32.totalorder %s132, 0
      %s135 = sadd.s32 %s134, 1
      %s136 = scalar_select %p133, %s134, %s135
      %p139 = pneg %p133
      %p140 = scmp.eq.s32.totalorder %s34, 3
      %p141 = por %p139, %p140
      %p142 = scmp.ne.s32.totalorder %s134, %s137
      %p143 = scmp.eq.s32.totalorder %s34, 0
      %p144 = por %p142, %p143
      %p145 = scmp.ne.s32.totalorder %s134, %s137
      %p146 = scmp.eq.s32.totalorder %s39, 3
      %p147 = por %p145, %p146
      %p148 = scmp.ne.s32.totalorder %s137, %s138
      %p149 = scmp.eq.s32.totalorder %s39, 0
      %p150 = por %p148, %p149
      %p151 = scmp.ne.s32.totalorder %s137, %s138
      %p152 = scmp.eq.s32.totalorder %s40, 3
      %p153 = por %p151, %p152
      %p155 = scmp.ne.s32.totalorder %s138, %s154
      %p156 = scmp.eq.s32.totalorder %s40, 0
      %p157 = por %p155, %p156
      %s158 = ssub.s32 %s42, %s49
      %p159 = scmp.eq.s32.totalorder %s158, 0
      %s161 = sadd.s32 %s160, 1
      %s162 = scalar_select %p159, %s160, %s161
      %p165 = pneg %p159
      %p166 = scmp.eq.s32.totalorder %s34, 3
      %p167 = por %p165, %p166
      %p168 = scmp.ne.s32.totalorder %s160, %s163
      %p169 = scmp.eq.s32.totalorder %s34, 0
      %p170 = por %p168, %p169
      %p171 = scmp.ne.s32.totalorder %s160, %s163
      %p172 = scmp.eq.s32.totalorder %s39, 3
      %p173 = por %p171, %p172
      %p174 = scmp.ne.s32.totalorder %s163, %s164
      %p175 = scmp.eq.s32.totalorder %s39, 0
      %p176 = por %p174, %p175
      %p177 = scmp.ne.s32.totalorder %s163, %s164
      %p178 = scmp.eq.s32.totalorder %s40, 3
      %p179 = por %p177, %p178
      %p181 = scmp.ne.s32.totalorder %s164, %s180
      %p182 = scmp.eq.s32.totalorder %s40, 0
      %p183 = por %p181, %p182
      %s184 = ssub.s32 %s42, %s49
      %p185 = scmp.eq.s32.totalorder %s184, 0
      %s187 = sadd.s32 %s186, 1
      %s188 = scalar_select %p185, %s186, %s187
      %p191 = pneg %p185
      %p192 = scmp.eq.s32.totalorder %s34, 3
      %p193 = por %p191, %p192
      %p194 = scmp.ne.s32.totalorder %s186, %s189
      %p195 = scmp.eq.s32.totalorder %s34, 0
      %p196 = por %p194, %p195
      %p197 = scmp.ne.s32.totalorder %s186, %s189
      %p198 = scmp.eq.s32.totalorder %s39, 3
      %p199 = por %p197, %p198
      %p200 = scmp.ne.s32.totalorder %s189, %s190
      %p201 = scmp.eq.s32.totalorder %s39, 0
      %p202 = por %p200, %p201
      %p203 = scmp.ne.s32.totalorder %s189, %s190
      %p204 = scmp.eq.s32.totalorder %s40, 3
      %p205 = por %p203, %p204
      %p207 = scmp.ne.s32.totalorder %s190, %s206
      %p208 = scmp.eq.s32.totalorder %s40, 0
      %p209 = por %p207, %p208
      %s210 = ssub.s32 %s42, %s49
      %p211 = scmp.eq.s32.totalorder %s210, 0
      %s213 = sadd.s32 %s212, 1
      %s214 = scalar_select %p211, %s212, %s213
      %p217 = pneg %p211
      %p218 = scmp.eq.s32.totalorder %s34, 3
      %p219 = por %p217, %p218
      %p220 = scmp.ne.s32.totalorder %s212, %s215
      %p221 = scmp.eq.s32.totalorder %s34, 0
      %p222 = por %p220, %p221
      %p223 = scmp.ne.s32.totalorder %s212, %s215
      %p224 = scmp.eq.s32.totalorder %s39, 3
      %p225 = por %p223, %p224
      %p226 = scmp.ne.s32.totalorder %s215, %s216
      %p227 = scmp.eq.s32.totalorder %s39, 0
      %p228 = por %p226, %p227
      %p229 = scmp.ne.s32.totalorder %s215, %s216
      %p230 = scmp.eq.s32.totalorder %s40, 3
      %p231 = por %p229, %p230
      %p233 = scmp.ne.s32.totalorder %s216, %s232
      %p234 = scmp.eq.s32.totalorder %s40, 0
      %p235 = por %p233, %p234
      %s236 = ssub.s32 %s42, %s49
      %p237 = scmp.eq.s32.totalorder %s236, 0
      %s239 = sadd.s32 %s238, 1
      %s240 = scalar_select %p237, %s238, %s239
      %p243 = pneg %p237
      %p244 = scmp.eq.s32.totalorder %s34, 3
      %p245 = por %p243, %p244
      %p246 = scmp.ne.s32.totalorder %s238, %s241
      %p247 = scmp.eq.s32.totalorder %s34, 0
      %p248 = por %p246, %p247
      %p249 = scmp.ne.s32.totalorder %s238, %s241
      %p250 = scmp.eq.s32.totalorder %s39, 3
      %p251 = por %p249, %p250
      %p252 = scmp.ne.s32.totalorder %s241, %s242
      %p253 = scmp.eq.s32.totalorder %s39, 0
      %p254 = por %p252, %p253
      %p255 = scmp.ne.s32.totalorder %s241, %s242
      %p256 = scmp.eq.s32.totalorder %s40, 3
      %p257 = por %p255, %p256
      %p259 = scmp.ne.s32.totalorder %s242, %s258
      %p260 = scmp.eq.s32.totalorder %s40, 0
      %p261 = por %p259, %p260
      %s262 = ssub.s32 %s42, %s49
      %p263 = scmp.eq.s32.totalorder %s262, 0
      %s265 = sadd.s32 %s264, 1
      %s266 = scalar_select %p263, %s264, %s265
      %p269 = pneg %p263
      %p270 = scmp.eq.s32.totalorder %s34, 3
      %p271 = por %p269, %p270
      %p272 = scmp.ne.s32.totalorder %s264, %s267
      %p273 = scmp.eq.s32.totalorder %s34, 0
      %p274 = por %p272, %p273
      %p275 = scmp.ne.s32.totalorder %s264, %s267
      %p276 = scmp.eq.s32.totalorder %s39, 3
      %p277 = por %p275, %p276
      %p278 = scmp.ne.s32.totalorder %s267, %s268
      %p279 = scmp.eq.s32.totalorder %s39, 0
      %p280 = por %p278, %p279
      %p281 = scmp.ne.s32.totalorder %s267, %s268
      %p282 = scmp.eq.s32.totalorder %s40, 3
      %p283 = por %p281, %p282
      %p285 = scmp.ne.s32.totalorder %s268, %s284
      %p286 = scmp.eq.s32.totalorder %s40, 0
      %p287 = por %p285, %p286
      %s288 = ssub.s32 %s42, %s49
      %p289 = scmp.eq.s32.totalorder %s288, 0
      %s291 = sadd.s32 %s290, 1
      %s292 = scalar_select %p289, %s290, %s291
      %p295 = pneg %p289
      %p296 = scmp.eq.s32.totalorder %s34, 3
      %p297 = por %p295, %p296
      %p298 = scmp.ne.s32.totalorder %s290, %s293
      %p299 = scmp.eq.s32.totalorder %s34, 0
      %p300 = por %p298, %p299
      %p301 = scmp.ne.s32.totalorder %s290, %s293
      %p302 = scmp.eq.s32.totalorder %s39, 3
      %p303 = por %p301, %p302
      %p304 = scmp.ne.s32.totalorder %s293, %s294
      %p305 = scmp.eq.s32.totalorder %s39, 0
      %p306 = por %p304, %p305
      %p307 = scmp.ne.s32.totalorder %s293, %s294
      %p308 = scmp.eq.s32.totalorder %s40, 3
      %p309 = por %p307, %p308
      %p311 = scmp.ne.s32.totalorder %s294, %s310
      %p312 = scmp.eq.s32.totalorder %s40, 0
      %p313 = por %p311, %p312
      %s314 = ssub.s32 %s42, %s49
      %p315 = scmp.eq.s32.totalorder %s314, 0
      %s317 = sadd.s32 %s316, 1
      %s318 = scalar_select %p315, %s316, %s317
      %p321 = pneg %p315
      %p322 = scmp.eq.s32.totalorder %s34, 3
      %p323 = por %p321, %p322
      %p324 = scmp.ne.s32.totalorder %s316, %s319
      %p325 = scmp.eq.s32.totalorder %s34, 0
      %p326 = por %p324, %p325
      %p327 = scmp.ne.s32.totalorder %s316, %s319
      %p328 = scmp.eq.s32.totalorder %s39, 3
      %p329 = por %p327, %p328
      %p330 = scmp.ne.s32.totalorder %s319, %s320
      %p331 = scmp.eq.s32.totalorder %s39, 0
      %p332 = por %p330, %p331
      %p333 = scmp.ne.s32.totalorder %s319, %s320
      %p334 = scmp.eq.s32.totalorder %s40, 3
      %p335 = por %p333, %p334
      %p337 = scmp.ne.s32.totalorder %s320, %s336
      %p338 = scmp.eq.s32.totalorder %s40, 0
      %p339 = por %p337, %p338
      %s340 = ssub.s32 %s42, %s49
      %p341 = scmp.eq.s32.totalorder %s340, 0
      %s343 = sadd.s32 %s342, 1
      %s344 = scalar_select %p341, %s342, %s343
      %p347 = pneg %p341
      %p348 = scmp.eq.s32.totalorder %s34, 3
      %p349 = por %p347, %p348
      %p350 = scmp.ne.s32.totalorder %s342, %s345
      %p351 = scmp.eq.s32.totalorder %s34, 0
      %p352 = por %p350, %p351
      %p353 = scmp.ne.s32.totalorder %s342, %s345
      %p354 = scmp.eq.s32.totalorder %s39, 3
      %p355 = por %p353, %p354
      %p356 = scmp.ne.s32.totalorder %s345, %s346
      %p357 = scmp.eq.s32.totalorder %s39, 0
      %p358 = por %p356, %p357
      %p359 = scmp.ne.s32.totalorder %s345, %s346
      %p360 = scmp.eq.s32.totalorder %s40, 3
      %p361 = por %p359, %p360
      %p363 = scmp.ne.s32.totalorder %s346, %s362
      %p364 = scmp.eq.s32.totalorder %s40, 0
      %p365 = por %p363, %p364
      %s366 = ssub.s32 %s42, %s49
      %p367 = scmp.eq.s32.totalorder %s366, 0
      %s369 = sadd.s32 %s368, 1
      %s370 = scalar_select %p367, %s368, %s369
      %p373 = pneg %p367
      %p374 = scmp.eq.s32.totalorder %s34, 3
      %p375 = por %p373, %p374
      %p376 = scmp.ne.s32.totalorder %s368, %s371
      %p377 = scmp.eq.s32.totalorder %s34, 0
      %p378 = por %p376, %p377
      %p379 = scmp.ne.s32.totalorder %s368, %s371
      %p380 = scmp.eq.s32.totalorder %s39, 3
      %p381 = por %p379, %p380
      %p382 = scmp.ne.s32.totalorder %s371, %s372
      %p383 = scmp.eq.s32.totalorder %s39, 0
      %p384 = por %p382, %p383
      %p385 = scmp.ne.s32.totalorder %s371, %s372
      %p386 = scmp.eq.s32.totalorder %s40, 3
      %p387 = por %p385, %p386
      %p389 = scmp.ne.s32.totalorder %s372, %s388
      %p390 = scmp.eq.s32.totalorder %s40, 0
      %p391 = por %p389, %p390
      %s393 = sadd.s32 %s392, 1
      %p396 = scmp.eq.s32.totalorder %s34, 3
      %p397 = scmp.ne.s32.totalorder %s392, %s394
      %p398 = scmp.eq.s32.totalorder %s34, 0
      %p399 = por %p397, %p398
      %p400 = scmp.ne.s32.totalorder %s392, %s394
      %p401 = scmp.eq.s32.totalorder %s39, 3
      %p402 = por %p400, %p401
      %p403 = scmp.ne.s32.totalorder %s394, %s395
      %p404 = scmp.eq.s32.totalorder %s39, 0
      %p405 = por %p403, %p404
      %p406 = scmp.ne.s32.totalorder %s394, %s395
      %p407 = scmp.eq.s32.totalorder %s40, 3
      %p408 = por %p406, %p407
      %p410 = scmp.ne.s32.totalorder %s395, %s409
      %p411 = scmp.eq.s32.totalorder %s40, 0
      %p412 = por %p410, %p411
      %s414 = sadd.s32 %s413, 1
      %p417 = scmp.eq.s32.totalorder %s34, 3
      %p418 = scmp.ne.s32.totalorder %s413, %s415
      %p419 = scmp.eq.s32.totalorder %s34, 0
      %p420 = por %p418, %p419
      %p421 = scmp.ne.s32.totalorder %s413, %s415
      %p422 = scmp.eq.s32.totalorder %s39, 3
      %p423 = por %p421, %p422
      %p424 = scmp.ne.s32.totalorder %s415, %s416
      %p425 = scmp.eq.s32.totalorder %s39, 0
      %p426 = por %p424, %p425
      %p427 = scmp.ne.s32.totalorder %s415, %s416
      %p428 = scmp.eq.s32.totalorder %s40, 3
      %p429 = por %p427, %p428
      %p431 = scmp.ne.s32.totalorder %s416, %s430
      %p432 = scmp.eq.s32.totalorder %s40, 0
      %p433 = por %p431, %p432
      %s435 = sadd.s32 %s434, 1
      %p438 = scmp.eq.s32.totalorder %s34, 3
      %p439 = scmp.ne.s32.totalorder %s434, %s436
      %p440 = scmp.eq.s32.totalorder %s34, 0
      %p441 = por %p439, %p440
      %p442 = scmp.ne.s32.totalorder %s434, %s436
      %p443 = scmp.eq.s32.totalorder %s39, 3
      %p444 = por %p442, %p443
      %p445 = scmp.ne.s32.totalorder %s436, %s437
      %p446 = scmp.eq.s32.totalorder %s39, 0
      %p447 = por %p445, %p446
      %p448 = scmp.ne.s32.totalorder %s436, %s437
      %p449 = scmp.eq.s32.totalorder %s40, 3
      %p450 = por %p448, %p449
      %p452 = scmp.ne.s32.totalorder %s437, %s451
      %p453 = scmp.eq.s32.totalorder %s40, 0
      %p454 = por %p452, %p453
      %s456 = sadd.s32 %s455, 1
      %p459 = scmp.eq.s32.totalorder %s34, 3
      %p460 = scmp.ne.s32.totalorder %s455, %s457
      %p461 = scmp.eq.s32.totalorder %s34, 0
      %p462 = por %p460, %p461
      %p463 = scmp.ne.s32.totalorder %s455, %s457
      %p464 = scmp.eq.s32.totalorder %s39, 3
      %p465 = por %p463, %p464
      %p466 = scmp.ne.s32.totalorder %s457, %s458
      %p467 = scmp.eq.s32.totalorder %s39, 0
      %p468 = por %p466, %p467
      %p469 = scmp.ne.s32.totalorder %s457, %s458
      %p470 = scmp.eq.s32.totalorder %s40, 3
      %p471 = por %p469, %p470
      %p473 = scmp.ne.s32.totalorder %s458, %s472
      %p474 = scmp.eq.s32.totalorder %s40, 0
      %p475 = por %p473, %p474
      %s476 = ssub.s32 %s41, %s53
      %p477 = scmp.eq.s32.totalorder %s476, 0
      %s479 = sadd.s32 %s478, 1
      %s480 = scalar_select %p477, %s478, %s479
      %p483 = pneg %p477
      %p484 = scmp.eq.s32.totalorder %s34, 3
      %p485 = por %p483, %p484
      %p486 = scmp.ne.s32.totalorder %s478, %s481
      %p487 = scmp.eq.s32.totalorder %s34, 0
      %p488 = por %p486, %p487
      %p489 = scmp.ne.s32.totalorder %s478, %s481
      %p490 = scmp.eq.s32.totalorder %s39, 3
      %p491 = por %p489, %p490
      %p492 = scmp.ne.s32.totalorder %s481, %s482
      %p493 = scmp.eq.s32.totalorder %s39, 0
      %p494 = por %p492, %p493
      %p495 = scmp.ne.s32.totalorder %s481, %s482
      %p496 = scmp.eq.s32.totalorder %s40, 3
      %p497 = por %p495, %p496
      %p499 = scmp.ne.s32.totalorder %s482, %s498
      %p500 = scmp.eq.s32.totalorder %s40, 0
      %p501 = por %p499, %p500
      %p502 = scmp.le.s32.totalorder 1, %s34
      %p503 = scmp.lt.s32.totalorder %s34, 5
      %p504 = pnand %p502, %p503
      %p505 = pneg %p504
      // Predicated region
      $region9: #{tpu_custom_call.1} parent=5 // pred_check
        _
      $region10: #{tpu_custom_call.1} parent=5 // pred_check_branch
        %507 = sbr.rel (%p504) target = $region12
      $region11: #{tpu_custom_call.1} parent=5 // pred_region
        %s508 = ssub.s32 %s34, 1
        // Predicated region
        $region13: #{tpu_custom_call.1} parent=11 // pred_check
          %p509 = pneg %p72
        $region14: #{tpu_custom_call.1} parent=11 // pred_check_branch
          %511 = sbr.rel (%p509) target = $region16
        $region15: #{tpu_custom_call.1} parent=11 // pred_region
          %s512 = smul.u32 2, %s43
          %s514 = ssub.s32 256, 256
          %515 = vsyncadd [#allocation4], %s514
          %s516 = smul.addr %s512, 128
          %s517 = scalar_lea.hbm %s0, %s516
          %s518 = sshll.u32 [#allocation3], 4
          %s519 = int_to_ptr.vmem [resolvable:$true] %s518
          %524 = dma.hbm_to_vmem [thread:$0]  %s517, 256, %s519, [#allocation4], 128, 128, 8
        $region16: #{tpu_custom_call.1} parent=11 // pred_fallthru
          _
        // Predicated region
        $region17: #{tpu_custom_call.1} parent=11 // pred_check
          %p525 = pneg %p405
        $region18: #{tpu_custom_call.1} parent=11 // pred_check_branch
          %527 = sbr.rel (%p525) target = $region20
        $region19: #{tpu_custom_call.1} parent=11 // pred_region
          _
        $region20: #{tpu_custom_call.1} parent=11 // pred_fallthru
          _
        // Predicated region
        $region21: #{tpu_custom_call.1} parent=11 // pred_check
          %p528 = pneg %p426
        $region22: #{tpu_custom_call.1} parent=11 // pred_check_branch
          %530 = sbr.rel (%p528) target = $region24
        $region23: #{tpu_custom_call.1} parent=11 // pred_region
          _
        $region24: #{tpu_custom_call.1} parent=11 // pred_fallthru
          _
        // Predicated region
        $region25: #{tpu_custom_call.1} parent=11 // pred_check
          %p531 = pneg %p447
        $region26: #{tpu_custom_call.1} parent=11 // pred_check_branch
          %533 = sbr.rel (%p531) target = $region28
        $region27: #{tpu_custom_call.1} parent=11 // pred_region
          %s535 = ssub.s32 1024, 1024
          %536 = vsyncadd [#allocation13], %s535
          %s537 = sshll.u32 [#allocation14], 4
          %s538 = int_to_ptr.vmem [resolvable:$true] %s537
          %543 = dma.hbm_to_vmem [thread:$0]  %s15, 1024, %s538, [#allocation13], 64, 64, 4
        $region28: #{tpu_custom_call.1} parent=11 // pred_fallthru
          _
        // Predicated region
        $region29: #{tpu_custom_call.1} parent=11 // pred_check
          %p544 = pneg %p468
        $region30: #{tpu_custom_call.1} parent=11 // pred_check_branch
          %546 = sbr.rel (%p544) target = $region32
        $region31: #{tpu_custom_call.1} parent=11 // pred_region
          _
        $region32: #{tpu_custom_call.1} parent=11 // pred_fallthru
          _
      $region12: #{tpu_custom_call.1} parent=5 // pred_fallthru
        _
      %p547 = scmp.lt.s32.totalorder %s34, 4
      // Predicated region
      $region33: #{tpu_custom_call.1} parent=5 // pred_check
        %p548 = pneg %p547
      $region34: #{tpu_custom_call.1} parent=5 // pred_check_branch
        %550 = sbr.rel (%p548) target = $region36
      $region35: #{tpu_custom_call.1} parent=5 // pred_region
        // Predicated region
        $region37: #{tpu_custom_call.1} parent=35 // pred_check
          %p551 = pneg %p92
        $region38: #{tpu_custom_call.1} parent=35 // pred_check_branch
          %553 = sbr.rel (%p551) target = $region40
        $region39: #{tpu_custom_call.1} parent=35 // pred_region
          %s554 = sand.u32 %s34, 1
          %s555 = scalar_lea.sflag [#allocation7], %s554
          %s556 = sand.u32 %s82, 1
          %s557 = smul.addr %s556, 192
          %s558 = scalar_lea.vmem [#allocation6], %s557
          %s560 = ssub.s32 3072, 3072
          %561 = vsyncadd %s555, %s560
          %s562 = smul.addr %s42, 48
          %s563 = smul.addr %s562, 64
          %s564 = scalar_lea.hbm %s1, %s563
          %s565 = sshll.u32 %s558, 4
          %s566 = int_to_ptr.vmem [resolvable:$true] %s565
          %571 = dma.hbm_to_vmem [thread:$0]  %s564, 3072, %s566, %s555, 192, 192, 12
        $region40: #{tpu_custom_call.1} parent=35 // pred_fallthru
          _
        // Predicated region
        $region41: #{tpu_custom_call.1} parent=35 // pred_check
          %p572 = pneg %p118
        $region42: #{tpu_custom_call.1} parent=35 // pred_check_branch
          %574 = sbr.rel (%p572) target = $region44
        $region43: #{tpu_custom_call.1} parent=35 // pred_region
          %s575 = sand.u32 %s34, 1
          %s576 = scalar_lea.sflag [#allocation7], %s575
          %s577 = sand.u32 %s108, 1
          %s578 = smul.addr %s577, 3
          %s579 = scalar_lea.vmem [#allocation8], %s578
          %s581 = ssub.s32 48, 48
          %582 = vsyncadd %s576, %s581
          %s583 = smul.addr %s42, 3
          %s584 = smul.addr %s583, 16
          %s585 = scalar_lea.hbm %s2, %s584
          %s587 = sshll.u32 %s579, 4
          %s588 = int_to_ptr.vmem [resolvable:$true] %s587
          %590 = dma.hbm_to_vmem [thread:$0]  %s585, 48, %s588, %s576
        $region44: #{tpu_custom_call.1} parent=35 // pred_fallthru
          _
        // Predicated region
        $region45: #{tpu_custom_call.1} parent=35 // pred_check
          %p591 = pneg %p144
        $region46: #{tpu_custom_call.1} parent=35 // pred_check_branch
          %593 = sbr.rel (%p591) target = $region48
        $region47: #{tpu_custom_call.1} parent=35 // pred_region
          %s594 = sand.u32 %s34, 1
          %s595 = scalar_lea.sflag [#allocation10], %s594
          %s596 = sand.u32 %s134, 1
          %s597 = smul.addr %s596, 64
          %s598 = scalar_lea.vmem [#allocation9], %s597
          %s600 = ssub.s32 1024, 1024
          %601 = vsyncadd %s595, %s600
          %s602 = smul.addr %s42, 16
          %s603 = smul.addr %s602, 64
          %s604 = scalar_lea.hbm %s3, %s603
          %s605 = sshll.u32 %s598, 4
          %s606 = int_to_ptr.vmem [resolvable:$true] %s605
          %611 = dma.hbm_to_vmem [thread:$0]  %s604, 1024, %s606, %s595, 64, 64, 4
        $region48: #{tpu_custom_call.1} parent=35 // pred_fallthru
          _
        // Predicated region
        $region49: #{tpu_custom_call.1} parent=35 // pred_check
          %p612 = pneg %p170
        $region50: #{tpu_custom_call.1} parent=35 // pred_check_branch
          %614 = sbr.rel (%p612) target = $region52
        $region51: #{tpu_custom_call.1} parent=35 // pred_region
          %p615 = scmp.lt.s32.totalorder %s42, 3
          %s616 = scalar_select %p615, %s42, 3
          %s617 = scalar_lea.vmem %s4, %s616
        $region52: #{tpu_custom_call.1} parent=35 // pred_fallthru
          _
        // Predicated region
        $region53: #{tpu_custom_call.1} parent=35 // pred_check
          %p618 = pneg %p196
        $region54: #{tpu_custom_call.1} parent=35 // pred_check_branch
          %620 = sbr.rel (%p618) target = $region56
        $region55: #{tpu_custom_call.1} parent=35 // pred_region
          %s621 = sand.u32 %s34, 1
          %s622 = scalar_lea.sflag [#allocation10], %s621
          %s623 = sand.u32 %s186, 1
          %s624 = smul.addr %s623, 256
          %s625 = scalar_lea.vmem [#allocation11], %s624
          %s627 = ssub.s32 4096, 4096
          %628 = vsyncadd %s622, %s627
          %s629 = smul.addr %s42, 64
          %s630 = smul.addr %s629, 64
          %s631 = scalar_lea.hbm %s5, %s630
          %s632 = sshll.u32 %s625, 4
          %s633 = int_to_ptr.vmem [resolvable:$true] %s632
          %638 = dma.hbm_to_vmem [thread:$0]  %s631, 4096, %s633, %s622, 256, 256, 16
        $region56: #{tpu_custom_call.1} parent=35 // pred_fallthru
          _
        // Predicated region
        $region57: #{tpu_custom_call.1} parent=35 // pred_check
          %p639 = pneg %p222
        $region58: #{tpu_custom_call.1} parent=35 // pred_check_branch
          %641 = sbr.rel (%p639) target = $region60
        $region59: #{tpu_custom_call.1} parent=35 // pred_region
          %p642 = scmp.lt.s32.totalorder %s42, 3
          %s643 = scalar_select %p642, %s42, 3
          %s644 = smul.addr %s643, 4
          %s645 = scalar_lea.vmem %s6, %s644
        $region60: #{tpu_custom_call.1} parent=35 // pred_fallthru
          _
        // Predicated region
        $region61: #{tpu_custom_call.1} parent=35 // pred_check
          %p646 = pneg %p248
        $region62: #{tpu_custom_call.1} parent=35 // pred_check_branch
          %648 = sbr.rel (%p646) target = $region64
        $region63: #{tpu_custom_call.1} parent=35 // pred_region
          %s649 = sand.u32 %s34, 1
          %s650 = scalar_lea.sflag [#allocation13], %s649
          %s651 = sand.u32 %s238, 1
          %s652 = smul.addr %s651, 256
          %s653 = scalar_lea.vmem [#allocation12], %s652
          %s655 = ssub.s32 4096, 4096
          %656 = vsyncadd %s650, %s655
          %s657 = smul.addr %s42, 64
          %s658 = smul.addr %s657, 64
          %s659 = scalar_lea.hbm %s7, %s658
          %s660 = sshll.u32 %s653, 4
          %s661 = int_to_ptr.vmem [resolvable:$true] %s660
          %666 = dma.hbm_to_vmem [thread:$0]  %s659, 4096, %s661, %s650, 64, 64, 4
        $region64: #{tpu_custom_call.1} parent=35 // pred_fallthru
          _
        // Predicated region
        $region65: #{tpu_custom_call.1} parent=35 // pred_check
          %p667 = pneg %p274
        $region66: #{tpu_custom_call.1} parent=35 // pred_check_branch
          %669 = sbr.rel (%p667) target = $region68
        $region67: #{tpu_custom_call.1} parent=35 // pred_region
          %p670 = scmp.lt.s32.totalorder %s42, 3
          %s671 = scalar_select %p670, %s42, 3
          %s672 = scalar_lea.vmem %s8, %s671
        $region68: #{tpu_custom_call.1} parent=35 // pred_fallthru
          _
        // Predicated region
        $region69: #{tpu_custom_call.1} parent=35 // pred_check
          %p673 = pneg %p300
        $region70: #{tpu_custom_call.1} parent=35 // pred_check_branch
          %675 = sbr.rel (%p673) target = $region72
        $region71: #{tpu_custom_call.1} parent=35 // pred_region
          %p676 = scmp.lt.s32.totalorder %s42, 3
          %s677 = scalar_select %p676, %s42, 3
          %s678 = scalar_lea.vmem %s9, %s677
        $region72: #{tpu_custom_call.1} parent=35 // pred_fallthru
          _
        // Predicated region
        $region73: #{tpu_custom_call.1} parent=35 // pred_check
          %p679 = pneg %p326
        $region74: #{tpu_custom_call.1} parent=35 // pred_check_branch
          %681 = sbr.rel (%p679) target = $region76
        $region75: #{tpu_custom_call.1} parent=35 // pred_region
          %p682 = scmp.lt.s32.totalorder %s42, 3
          %s683 = scalar_select %p682, %s42, 3
          %s684 = scalar_lea.vmem %s10, %s683
        $region76: #{tpu_custom_call.1} parent=35 // pred_fallthru
          _
        // Predicated region
        $region77: #{tpu_custom_call.1} parent=35 // pred_check
          %p685 = pneg %p352
        $region78: #{tpu_custom_call.1} parent=35 // pred_check_branch
          %687 = sbr.rel (%p685) target = $region80
        $region79: #{tpu_custom_call.1} parent=35 // pred_region
          %p688 = scmp.lt.s32.totalorder %s42, 3
          %s689 = scalar_select %p688, %s42, 3
          %s690 = scalar_lea.vmem %s11, %s689
        $region80: #{tpu_custom_call.1} parent=35 // pred_fallthru
          _
        // Predicated region
        $region81: #{tpu_custom_call.1} parent=35 // pred_check
          %p691 = pneg %p378
        $region82: #{tpu_custom_call.1} parent=35 // pred_check_branch
          %693 = sbr.rel (%p691) target = $region84
        $region83: #{tpu_custom_call.1} parent=35 // pred_region
          %p694 = scmp.lt.s32.totalorder %s42, 3
          %s695 = scalar_select %p694, %s42, 3
          %s696 = scalar_lea.vmem %s12, %s695
        $region84: #{tpu_custom_call.1} parent=35 // pred_fallthru
          _
      $region36: #{tpu_custom_call.1} parent=5 // pred_fallthru
        _
      %p697 = scmp.le.s32.totalorder 1, %s34
      %p698 = scmp.lt.s32.totalorder %s34, 5
      %p699 = pnand %p697, %p698
      %p700 = pneg %p699
      // Predicated region
      $region85: #{tpu_custom_call.1} parent=5 // pred_check
        _
      $region86: #{tpu_custom_call.1} parent=5 // pred_check_branch
        %702 = sbr.rel (%p699) target = $region88
      $region87: #{tpu_custom_call.1} parent=5 // pred_region
        %s703 = ssub.s32 %s34, 1
        // Predicated region
        $region89: #{tpu_custom_call.1} parent=87 // pred_check
          %p704 = pneg %p72
        $region90: #{tpu_custom_call.1} parent=87 // pred_check_branch
          %706 = sbr.rel (%p704) target = $region92
        $region91: #{tpu_custom_call.1} parent=87 // pred_region
          %707 = dma.done [#allocation4], 256
        $region92: #{tpu_custom_call.1} parent=87 // pred_fallthru
          _
        %s708 = sand.u32 %s39, 1
        %s709 = scalar_lea.sflag [#allocation7], %s708
        %s710 = sand.u32 %s85, 1
        %s711 = smul.addr %s710, 192
        %s712 = scalar_lea.vmem [#allocation6], %s711
        // Predicated region
        $region93: #{tpu_custom_call.1} parent=87 // pred_check
          %p713 = pneg %p98
        $region94: #{tpu_custom_call.1} parent=87 // pred_check_branch
          %715 = sbr.rel (%p713) target = $region96
        $region95: #{tpu_custom_call.1} parent=87 // pred_region
          %716 = dma.done %s709, 3072
        $region96: #{tpu_custom_call.1} parent=87 // pred_fallthru
          _
        %s717 = sand.u32 %s39, 1
        %s718 = scalar_lea.sflag [#allocation7], %s717
        %s719 = sand.u32 %s111, 1
        %s720 = smul.addr %s719, 3
        %s721 = scalar_lea.vmem [#allocation8], %s720
        // Predicated region
        $region97: #{tpu_custom_call.1} parent=87 // pred_check
          %p722 = pneg %p124
        $region98: #{tpu_custom_call.1} parent=87 // pred_check_branch
          %724 = sbr.rel (%p722) target = $region100
        $region99: #{tpu_custom_call.1} parent=87 // pred_region
          %725 = dma.done %s718, 48
        $region100: #{tpu_custom_call.1} parent=87 // pred_fallthru
          _
        %s726 = sand.u32 %s39, 1
        %s727 = scalar_lea.sflag [#allocation10], %s726
        %s728 = sand.u32 %s137, 1
        %s729 = smul.addr %s728, 64
        %s730 = scalar_lea.vmem [#allocation9], %s729
        // Predicated region
        $region101: #{tpu_custom_call.1} parent=87 // pred_check
          %p731 = pneg %p150
        $region102: #{tpu_custom_call.1} parent=87 // pred_check_branch
          %733 = sbr.rel (%p731) target = $region104
        $region103: #{tpu_custom_call.1} parent=87 // pred_region
          %734 = dma.done %s727, 1024
        $region104: #{tpu_custom_call.1} parent=87 // pred_fallthru
          _
        %s735 = sand.u32 %s39, 1
        %s736 = scalar_lea.sflag [#allocation10], %s735
        %s737 = sand.u32 %s189, 1
        %s738 = smul.addr %s737, 256
        %s739 = scalar_lea.vmem [#allocation11], %s738
        // Predicated region
        $region105: #{tpu_custom_call.1} parent=87 // pred_check
          %p740 = pneg %p202
        $region106: #{tpu_custom_call.1} parent=87 // pred_check_branch
          %742 = sbr.rel (%p740) target = $region108
        $region107: #{tpu_custom_call.1} parent=87 // pred_region
          %743 = dma.done %s736, 4096
        $region108: #{tpu_custom_call.1} parent=87 // pred_fallthru
          _
        %s744 = sand.u32 %s39, 1
        %s745 = scalar_lea.sflag [#allocation13], %s744
        %s746 = sand.u32 %s241, 1
        %s747 = smul.addr %s746, 256
        %s748 = scalar_lea.vmem [#allocation12], %s747
        // Predicated region
        $region109: #{tpu_custom_call.1} parent=87 // pred_check
          %p749 = pneg %p254
        $region110: #{tpu_custom_call.1} parent=87 // pred_check_branch
          %751 = sbr.rel (%p749) target = $region112
        $region111: #{tpu_custom_call.1} parent=87 // pred_region
          %752 = dma.done %s745, 4096
        $region112: #{tpu_custom_call.1} parent=87 // pred_fallthru
          _
        // Predicated region
        $region113: #{tpu_custom_call.1} parent=87 // pred_check
          %p753 = pneg %p447
        $region114: #{tpu_custom_call.1} parent=87 // pred_check_branch
          %755 = sbr.rel (%p753) target = $region116
        $region115: #{tpu_custom_call.1} parent=87 // pred_region
          %756 = dma.done [#allocation13], 1024
        $region116: #{tpu_custom_call.1} parent=87 // pred_fallthru
          _
        %p757 = pneg %p72
        %p758 = pneg %p69
        %s759 = sand.u32 %s39, 1
        %s760 = scalar_lea.sflag [#allocation7], %s759
        %s761 = sand.u32 %s85, 1
        %s762 = smul.addr %s761, 192
        %s763 = scalar_lea.vmem [#allocation6], %s762
        %p764 = pneg %p98
        %p765 = pneg %p95
        %s766 = sand.u32 %s39, 1
        %s767 = scalar_lea.sflag [#allocation7], %s766
        %s768 = sand.u32 %s111, 1
        %s769 = smul.addr %s768, 3
        %s770 = scalar_lea.vmem [#allocation8], %s769
        %p771 = pneg %p124
        %p772 = pneg %p121
        %s773 = sand.u32 %s39, 1
        %s774 = scalar_lea.sflag [#allocation10], %s773
        %s775 = sand.u32 %s137, 1
        %s776 = smul.addr %s775, 64
        %s777 = scalar_lea.vmem [#allocation9], %s776
        %p778 = pneg %p150
        %p779 = pneg %p147
        %p780 = scmp.lt.s32.totalorder %s44, 3
        %s781 = scalar_select %p780, %s44, 3
        %s782 = scalar_lea.vmem %s4, %s781
        %p783 = pneg %p176
        %p784 = pneg %p173
        %s785 = sand.u32 %s39, 1
        %s786 = scalar_lea.sflag [#allocation10], %s785
        %s787 = sand.u32 %s189, 1
        %s788 = smul.addr %s787, 256
        %s789 = scalar_lea.vmem [#allocation11], %s788
        %p790 = pneg %p202
        %p791 = pneg %p199
        %p792 = scmp.lt.s32.totalorder %s44, 3
        %s793 = scalar_select %p792, %s44, 3
        %s794 = smul.addr %s793, 4
        %s795 = scalar_lea.vmem %s6, %s794
        %p796 = pneg %p228
        %p797 = pneg %p225
        %s798 = sand.u32 %s39, 1
        %s799 = scalar_lea.sflag [#allocation13], %s798
        %s800 = sand.u32 %s241, 1
        %s801 = smul.addr %s800, 256
        %s802 = scalar_lea.vmem [#allocation12], %s801
        %p803 = pneg %p254
        %p804 = pneg %p251
        %p805 = scmp.lt.s32.totalorder %s44, 3
        %s806 = scalar_select %p805, %s44, 3
        %s807 = scalar_lea.vmem %s8, %s806
        %p808 = pneg %p280
        %p809 = pneg %p277
        %p810 = scmp.lt.s32.totalorder %s44, 3
        %s811 = scalar_select %p810, %s44, 3
        %s812 = scalar_lea.vmem %s9, %s811
        %p813 = pneg %p306
        %p814 = pneg %p303
        %p815 = scmp.lt.s32.totalorder %s44, 3
        %s816 = scalar_select %p815, %s44, 3
        %s817 = scalar_lea.vmem %s10, %s816
        %p818 = pneg %p332
        %p819 = pneg %p329
        %p820 = scmp.lt.s32.totalorder %s44, 3
        %s821 = scalar_select %p820, %s44, 3
        %s822 = scalar_lea.vmem %s11, %s821
        %p823 = pneg %p358
        %p824 = pneg %p355
        %p825 = scmp.lt.s32.totalorder %s44, 3
        %s826 = scalar_select %p825, %s44, 3
        %s827 = scalar_lea.vmem %s12, %s826
        %p828 = pneg %p384
        %p829 = pneg %p381
        %p830 = pneg %p405
        %p831 = pneg %p402
        %p832 = pneg %p426
        %p833 = pneg %p423
        %p834 = pneg %p447
        %p835 = pneg %p444
        %p836 = pneg %p468
        %p837 = pneg %p465
        %p838 = pneg %p494
        %p839 = pneg %p491
        %s840 = smul.u32 2, %s43
        %p841 = scmp.lt.s32.totalorder %s44, 3
        %s842 = scalar_select %p841, %s44, 3
        %s843 = scalar_lea.vmem %s4, %s842
        %p844 = scmp.lt.s32.totalorder %s44, 3
        %s845 = scalar_select %p844, %s44, 3
        %s846 = smul.addr %s845, 4
        %s847 = scalar_lea.vmem %s6, %s846
        %p848 = scmp.lt.s32.totalorder %s44, 3
        %s849 = scalar_select %p848, %s44, 3
        %s850 = scalar_lea.vmem %s8, %s849
        %p851 = scmp.lt.s32.totalorder %s44, 3
        %s852 = scalar_select %p851, %s44, 3
        %s853 = scalar_lea.vmem %s9, %s852
        %p854 = scmp.lt.s32.totalorder %s44, 3
        %s855 = scalar_select %p854, %s44, 3
        %s856 = scalar_lea.vmem %s10, %s855
        %p857 = scmp.lt.s32.totalorder %s44, 3
        %s858 = scalar_select %p857, %s44, 3
        %s859 = scalar_lea.vmem %s11, %s858
        %p860 = scmp.lt.s32.totalorder %s44, 3
        %s861 = scalar_select %p860, %s44, 3
        %s862 = scalar_lea.vmem %s12, %s861
        %s863 = smul.u32 2, %s43
        %p865 = scmp.eq.s32.totalorder %s44, 0
        // Predicated region
        $region117: #{tpu_custom_call.1} parent=87 // pred_check
          %p866 = pneg %p865
        $region118: #{tpu_custom_call.1} parent=87 // pred_check_branch
          %868 = sbr.rel (%p866) target = $region120
        $region119: #{tpu_custom_call.1} parent=87 // pred_region
          %v869 = vld [vmem:[#allocation3] sm:$0xff]
          %v870 = vld [vmem:[#allocation3 + $0x8] sm:$0xff]
          %871 = vst [vmem:[#allocation2] sm:$0xff] %v869
          %872 = vst [vmem:[#allocation2 + $0x8] sm:$0xff] %v870
        $region120: #{tpu_custom_call.1} parent=87 // pred_fallthru
          _
        %v873 = vld [vmem:[#allocation2] sm:$0xff]
        %v874 = vld [vmem:[#allocation2 + $0x8] sm:$0xff]
        %v875 = vpack.c.bf16 %v874, %v873
        %v876 = vld [vmem:[%s712] sm:$0xff]
        %v877 = vld [vmem:[%s712 + $0x8] sm:$0xf]
        %v878 = vld [vmem:[%s712 + $0xc] sm:$0xff]
        %v879 = vld [vmem:[%s712 + $0x14] sm:$0xf]
        %v880 = vld [vmem:[%s712 + $0x18] sm:$0xff]
        %v881 = vld [vmem:[%s712 + $0x20] sm:$0xf]
        %v882 = vld [vmem:[%s712 + $0x24] sm:$0xff]
        %v883 = vld [vmem:[%s712 + $0x2c] sm:$0xf]
        %v884 = vld [vmem:[%s712 + $0x30] sm:$0xff]
        %v885 = vld [vmem:[%s712 + $0x38] sm:$0xf]
        %v886 = vld [vmem:[%s712 + $0x3c] sm:$0xff]
        %v887 = vld [vmem:[%s712 + $0x44] sm:$0xf]
        %v888 = vld [vmem:[%s712 + $0x48] sm:$0xff]
        %v889 = vld [vmem:[%s712 + $0x50] sm:$0xf]
        %v890 = vld [vmem:[%s712 + $0x54] sm:$0xff]
        %v891 = vld [vmem:[%s712 + $0x5c] sm:$0xf]
        %v892 = vld [vmem:[%s712 + $0x60] sm:$0xff]
        %v893 = vld [vmem:[%s712 + $0x68] sm:$0xf]
        %v894 = vld [vmem:[%s712 + $0x6c] sm:$0xff]
        %v895 = vld [vmem:[%s712 + $0x74] sm:$0xf]
        %v896 = vld [vmem:[%s712 + $0x78] sm:$0xff]
        %v897 = vld [vmem:[%s712 + $0x80] sm:$0xf]
        %v898 = vld [vmem:[%s712 + $0x84] sm:$0xff]
        %v899 = vld [vmem:[%s712 + $0x8c] sm:$0xf]
        %v900 = vld [vmem:[%s712 + $0x90] sm:$0xff]
        %v901 = vld [vmem:[%s712 + $0x98] sm:$0xf]
        %v902 = vld [vmem:[%s712 + $0x9c] sm:$0xff]
        %v903 = vld [vmem:[%s712 + $0xa4] sm:$0xf]
        %v904 = vld [vmem:[%s712 + $0xa8] sm:$0xff]
        %v905 = vld [vmem:[%s712 + $0xb0] sm:$0xf]
        %v906 = vld [vmem:[%s712 + $0xb4] sm:$0xff]
        %v907 = vld [vmem:[%s712 + $0xbc] sm:$0xf]
        %v908 = vld [vmem:[%s721] sm:$0x7]
        %v910 = vlaneseq
        %v911 = vshrl.u32 %v910, 7
        %v912 = vsub.s32 0, %v911
        %v913 = vrot.slane %v908, %v912
        %v914 = vlaneseq
        %v915 = vshrl.u32 %v914, 7
        %v916 = vsub.s32 1, %v915
        %v917 = vrot.slane %v908, %v916
        %v918 = vlaneseq
        %v919 = vshrl.u32 %v918, 7
        %v920 = vsub.s32 2, %v919
        %v921 = vrot.slane %v908, %v920
        %v957 = vunpack.c.l.b16 %v876
        %v958 = vunpack.c.h.b16 %v876
        %v959 = vunpack.c.l.b16 %v877
        %v960 = vunpack.c.l.b16 %v878
        %v961 = vunpack.c.h.b16 %v878
        %v962 = vunpack.c.l.b16 %v879
        %v963 = vunpack.c.l.b16 %v880
        %v964 = vunpack.c.h.b16 %v880
        %v965 = vunpack.c.l.b16 %v881
        %v966 = vunpack.c.l.b16 %v882
        %v967 = vunpack.c.h.b16 %v882
        %v968 = vunpack.c.l.b16 %v883
        %v969 = vunpack.c.l.b16 %v884
        %v970 = vunpack.c.h.b16 %v884
        %v971 = vunpack.c.l.b16 %v885
        %v972 = vunpack.c.l.b16 %v886
        %v973 = vunpack.c.h.b16 %v886
        %v974 = vunpack.c.l.b16 %v887
        %v975 = vunpack.c.l.b16 %v888
        %v976 = vunpack.c.h.b16 %v888
        %v977 = vunpack.c.l.b16 %v889
        %v978 = vunpack.c.l.b16 %v890
        %v979 = vunpack.c.h.b16 %v890
        %v980 = vunpack.c.l.b16 %v891
        %v981 = vunpack.c.l.b16 %v892
        %v982 = vunpack.c.h.b16 %v892
        %v983 = vunpack.c.l.b16 %v893
        %v984 = vunpack.c.l.b16 %v894
        %v985 = vunpack.c.h.b16 %v894
        %v986 = vunpack.c.l.b16 %v895
        %v987 = vunpack.c.l.b16 %v896
        %v988 = vunpack.c.h.b16 %v896
        %v989 = vunpack.c.l.b16 %v897
        %v990 = vunpack.c.l.b16 %v898
        %v991 = vunpack.c.h.b16 %v898
        %v992 = vunpack.c.l.b16 %v899
        %v993 = vunpack.c.l.b16 %v900
        %v994 = vunpack.c.h.b16 %v900
        %v995 = vunpack.c.l.b16 %v901
        %v996 = vunpack.c.l.b16 %v902
        %v997 = vunpack.c.h.b16 %v902
        %v998 = vunpack.c.l.b16 %v903
        %v999 = vunpack.c.l.b16 %v904
        %v1000 = vunpack.c.h.b16 %v904
        %v1001 = vunpack.c.l.b16 %v905
        %v1002 = vunpack.c.l.b16 %v906
        %v1003 = vunpack.c.h.b16 %v906
        %v1004 = vunpack.c.l.b16 %v907
        %v1005 = vpack.c.b16 %v960, %v957
        %v1006 = vpack.c.b16 %v961, %v958
        %v1007 = vpack.c.b16 %v962, %v959
        %v1008 = vpack.c.b16 %v966, %v963
        %v1009 = vpack.c.b16 %v967, %v964
        %v1010 = vpack.c.b16 %v968, %v965
        %v1011 = vpack.c.b16 %v972, %v969
        %v1012 = vpack.c.b16 %v973, %v970
        %v1013 = vpack.c.b16 %v974, %v971
        %v1014 = vpack.c.b16 %v978, %v975
        %v1015 = vpack.c.b16 %v979, %v976
        %v1016 = vpack.c.b16 %v980, %v977
        %v1017 = vpack.c.b16 %v984, %v981
        %v1018 = vpack.c.b16 %v985, %v982
        %v1019 = vpack.c.b16 %v986, %v983
        %v1020 = vpack.c.b16 %v990, %v987
        %v1021 = vpack.c.b16 %v991, %v988
        %v1022 = vpack.c.b16 %v992, %v989
        %v1023 = vpack.c.b16 %v996, %v993
        %v1024 = vpack.c.b16 %v997, %v994
        %v1025 = vpack.c.b16 %v998, %v995
        %v1026 = vpack.c.b16 %v1002, %v999
        %v1027 = vpack.c.b16 %v1003, %v1000
        %v1028 = vpack.c.b16 %v1004, %v1001
        %1053 = vmatprep.subr.bf16.mxu0 %v1006
        %1054 = vmatpush1.bf16.msra.mxu0 %v1005
        %1055 = vmatprep.subr.bf16.mxu0 %v1009
        %1056 = vmatpush1.bf16.msra.mxu0 %v1008
        %1057 = vmatprep.subr.bf16.mxu0 %v1012
        %1058 = vmatpush1.bf16.msra.mxu0 %v1011
        %1059 = vmatprep.subr.bf16.mxu0 %v1015
        %1060 = vmatpush1.bf16.msra.mxu0 %v1014
        %1061 = vmatprep.subr.bf16.mxu0 %v1018
        %1062 = vmatpush1.bf16.msra.mxu0 %v1017
        %1063 = vmatprep.subr.bf16.mxu0 %v1021
        %1064 = vmatpush1.bf16.msra.mxu0 %v1020
        %1065 = vmatprep.subr.bf16.mxu0 %v1024
        %1066 = vmatpush1.bf16.msra.mxu0 %v1023
        %1067 = vmatprep.subr.bf16.mxu0 %v1027
        %1068 = vmatpush1.bf16.msra.mxu0 %v1026
        %1069 = vmatprep.subr.bf16.mxu0 0
        %1070 = vmatpush1.bf16.msra.mxu0 0
        %1071 = vmatprep.subr.bf16.mxu0 0
        %1072 = vmatpush1.bf16.msra.mxu0 0
        %1073 = vmatprep.subr.bf16.mxu0 0
        %1074 = vmatpush1.bf16.msra.mxu0 0
        %1075 = vmatprep.subr.bf16.mxu0 0
        %1076 = vmatpush1.bf16.msra.mxu0 0
        %1077 = vmatprep.subr.bf16.mxu0 0
        %1078 = vmatpush1.bf16.msra.mxu0 0
        %1079 = vmatprep.subr.bf16.mxu0 0
        %1080 = vmatpush1.bf16.msra.mxu0 0
        %1081 = vmatprep.subr.bf16.mxu0 0
        %1082 = vmatpush1.bf16.msra.mxu0 0
        %1083 = vmatprep.subr.bf16.mxu0 0
        %1084 = vmatpush1.bf16.msra.mxu0 0
        %1085 = vmatprep.mubr.bf16.mxu0 0
        %1086 = vmatmul.mubr.bf16.gmra.mrb[0].mxu0 %v875
        %v1087 = vpop.f32.mrb[0].mxu0
        %v1088 = vadd.f32 %v913, %v1087
        %v1089 = vpop.f32.mrb[0].mxu0
        %v1090 = vadd.f32 %v917, %v1089
        %v1091 = vpop.f32.mrb[0].mxu0
        %v1092 = vadd.f32 %v913, %v1091
        %v1093 = vpop.f32.mrb[0].mxu0
        %v1094 = vadd.f32 %v917, %v1093
        %1095 = vdwg.mxu0
        %1096 = vmatprep.subr.bf16.mxu0 0
        %1097 = vmatpush1.bf16.msra.mxu0 %v1007
        %1098 = vmatprep.subr.bf16.mxu0 0
        %1099 = vmatpush1.bf16.msra.mxu0 %v1010
        %1100 = vmatprep.subr.bf16.mxu0 0
        %1101 = vmatpush1.bf16.msra.mxu0 %v1013
        %1102 = vmatprep.subr.bf16.mxu0 0
        %1103 = vmatpush1.bf16.msra.mxu0 %v1016
        %1104 = vmatprep.subr.bf16.mxu0 0
        %1105 = vmatpush1.bf16.msra.mxu0 %v1019
        %1106 = vmatprep.subr.bf16.mxu0 0
        %1107 = vmatpush1.bf16.msra.mxu0 %v1022
        %1108 = vmatprep.subr.bf16.mxu0 0
        %1109 = vmatpush1.bf16.msra.mxu0 %v1025
        %1110 = vmatprep.subr.bf16.mxu0 0
        %1111 = vmatpush1.bf16.msra.mxu0 %v1028
        %1112 = vmatprep.subr.bf16.mxu0 0
        %1113 = vmatpush1.bf16.msra.mxu0 0
        %1114 = vmatprep.subr.bf16.mxu0 0
        %1115 = vmatpush1.bf16.msra.mxu0 0
        %1116 = vmatprep.subr.bf16.mxu0 0
        %1117 = vmatpush1.bf16.msra.mxu0 0
        %1118 = vmatprep.subr.bf16.mxu0 0
        %1119 = vmatpush1.bf16.msra.mxu0 0
        %1120 = vmatprep.subr.bf16.mxu0 0
        %1121 = vmatpush1.bf16.msra.mxu0 0
        %1122 = vmatprep.subr.bf16.mxu0 0
        %1123 = vmatpush1.bf16.msra.mxu0 0
        %1124 = vmatprep.subr.bf16.mxu0 0
        %1125 = vmatpush1.bf16.msra.mxu0 0
        %1126 = vmatprep.subr.bf16.mxu0 0
        %1127 = vmatpush1.bf16.msra.mxu0 0
        %1128 = vmatprep.mubr.bf16.mxu0 0
        %1129 = vmatmul.mubr.bf16.gmra.mrb[0].mxu0 %v875
        %v1130 = vpop.f32.mrb[0].mxu0
        %v1131 = vadd.f32 %v921, %v1130
        %v1132 = vpop.f32.mrb[0].mxu0
        %v1133 = vpop.f32.mrb[0].mxu0
        %v1134 = vadd.f32 %v921, %v1133
        %v1135 = vpop.f32.mrb[0].mxu0
        %1136 = vdwg.mxu0
        %1138 = vrot.lane.b32.xlu0 %v1088, 96
        %v1139 = vpop.permute.xlu0 %1138
        %1141 = vrot.lane.b32.xlu0 %v1088, 64
        %v1142 = vpop.permute.xlu0 %1141
        %1144 = vrot.lane.b32.xlu0 %v1088, 32
        %v1145 = vpop.permute.xlu0 %1144
        %v1147 = vcombine.low %v1088, %v1142
        %v1148 = vcombine.high %v1088, %v1142
        %v1150 = vunpack.c.l.s4 1983009808
        %v1151 = vunpack.c.0.s8 %v1150
        %v1152 = vlaneseq
        %v1153 = vshrl.u32 %v1152, 7
        %v1154 = vsub.s32 %v1151, %v1153
        %v1155 = vrot.slane %v1147, %v1154
        %v1157 = vunpack.c.l.s4 1983009808
        %v1158 = vunpack.c.0.s8 %v1157
        %v1159 = vlaneseq
        %v1160 = vshrl.u32 %v1159, 7
        %v1161 = vsub.s32 %v1158, %v1160
        %v1162 = vrot.slane %v1148, %v1161
        %v1163 = vcombine.low %v1139, %v1145
        %v1164 = vcombine.high %v1139, %v1145
        %v1166 = vunpack.c.l.s4 1983009808
        %v1167 = vunpack.c.0.s8 %v1166
        %v1168 = vlaneseq
        %v1169 = vshrl.u32 %v1168, 7
        %v1170 = vsub.s32 %v1167, %v1169
        %v1171 = vrot.slane %v1163, %v1170
        %v1173 = vunpack.c.l.s4 1983009808
        %v1174 = vunpack.c.0.s8 %v1173
        %v1175 = vlaneseq
        %v1176 = vshrl.u32 %v1175, 7
        %v1177 = vsub.s32 %v1174, %v1176
        %v1178 = vrot.slane %v1164, %v1177
        %v1179 = vcombine.low %v1155, %v1171
        %v1180 = vcombine.high %v1155, %v1171
        %v1182 = vunpack.c.l.s4 1934713408
        %v1183 = vunpack.c.0.s8 %v1182
        %v1184 = vlaneseq
        %v1185 = vshrl.u32 %v1184, 7
        %v1186 = vsub.s32 %v1183, %v1185
        %v1187 = vrot.slane %v1179, %v1186
        %v1189 = vunpack.c.l.s4 1934713408
        %v1190 = vunpack.c.0.s8 %v1189
        %v1191 = vlaneseq
        %v1192 = vshrl.u32 %v1191, 7
        %v1193 = vsub.s32 %v1190, %v1192
        %v1194 = vrot.slane %v1180, %v1193
        %v1195 = vcombine.low %v1162, %v1178
        %v1196 = vcombine.high %v1162, %v1178
        %v1198 = vunpack.c.l.s4 1934713408
        %v1199 = vunpack.c.0.s8 %v1198
        %v1200 = vlaneseq
        %v1201 = vshrl.u32 %v1200, 7
        %v1202 = vsub.s32 %v1199, %v1201
        %v1203 = vrot.slane %v1195, %v1202
        %v1205 = vunpack.c.l.s4 1934713408
        %v1206 = vunpack.c.0.s8 %v1205
        %v1207 = vlaneseq
        %v1208 = vshrl.u32 %v1207, 7
        %v1209 = vsub.s32 %v1206, %v1208
        %v1210 = vrot.slane %v1196, %v1209
        %v1211 = vcombine.high %v1187, 0.0
        %v1212 = vcombine.high %v1194, 0.0
        %v1213 = vcombine.high %v1203, 0.0
        %v1214 = vcombine.high %v1210, 0.0
        %v1215 = vcombine.low %v1187, %v1194
        %v1217 = vunpack.c.l.s4 1983009808
        %v1218 = vunpack.c.0.s8 %v1217
        %v1219 = vlaneseq
        %v1220 = vshrl.u32 %v1219, 7
        %v1221 = vsub.s32 %v1218, %v1220
        %v1222 = vrot.slane %v1215, %v1221
        %v1223 = vcombine.low %v1211, %v1212
        %v1225 = vunpack.c.l.s4 1983009808
        %v1226 = vunpack.c.0.s8 %v1225
        %v1227 = vlaneseq
        %v1228 = vshrl.u32 %v1227, 7
        %v1229 = vsub.s32 %v1226, %v1228
        %v1230 = vrot.slane %v1223, %v1229
        %v1231 = vcombine.low %v1203, %v1210
        %v1233 = vunpack.c.l.s4 1983009808
        %v1234 = vunpack.c.0.s8 %v1233
        %v1235 = vlaneseq
        %v1236 = vshrl.u32 %v1235, 7
        %v1237 = vsub.s32 %v1234, %v1236
        %v1238 = vrot.slane %v1231, %v1237
        %v1239 = vcombine.low %v1213, %v1214
        %v1241 = vunpack.c.l.s4 1983009808
        %v1242 = vunpack.c.0.s8 %v1241
        %v1243 = vlaneseq
        %v1244 = vshrl.u32 %v1243, 7
        %v1245 = vsub.s32 %v1242, %v1244
        %v1246 = vrot.slane %v1239, %v1245
        %v1247 = vcombine.low %v1222, %v1230
        %v1248 = vcombine.high %v1222, %v1230
        %v1250 = vunpack.c.l.s4 1934713408
        %v1251 = vunpack.c.0.s8 %v1250
        %v1252 = vlaneseq
        %v1253 = vshrl.u32 %v1252, 7
        %v1254 = vsub.s32 %v1251, %v1253
        %v1255 = vrot.slane %v1247, %v1254
        %v1257 = vunpack.c.l.s4 1934713408
        %v1258 = vunpack.c.0.s8 %v1257
        %v1259 = vlaneseq
        %v1260 = vshrl.u32 %v1259, 7
        %v1261 = vsub.s32 %v1258, %v1260
        %v1262 = vrot.slane %v1248, %v1261
        %v1263 = vcombine.low %v1238, %v1246
        %v1264 = vcombine.high %v1238, %v1246
        %v1266 = vunpack.c.l.s4 1934713408
        %v1267 = vunpack.c.0.s8 %v1266
        %v1268 = vlaneseq
        %v1269 = vshrl.u32 %v1268, 7
        %v1270 = vsub.s32 %v1267, %v1269
        %v1271 = vrot.slane %v1263, %v1270
        %v1273 = vunpack.c.l.s4 1934713408
        %v1274 = vunpack.c.0.s8 %v1273
        %v1275 = vlaneseq
        %v1276 = vshrl.u32 %v1275, 7
        %v1277 = vsub.s32 %v1274, %v1276
        %v1278 = vrot.slane %v1264, %v1277
        %v1279 = vcombine.low %v1255, %v1271
        %v1280 = vcombine.high %v1255, %v1271
        %v1281 = vcombine.low %v1262, %v1278
        %v1282 = vcombine.high %v1262, %v1278
        %1284 = vrot.lane.b32.xlu0 %v1090, 96
        %v1285 = vpop.permute.xlu0 %1284
        %1287 = vrot.lane.b32.xlu0 %v1090, 64
        %v1288 = vpop.permute.xlu0 %1287
        %1290 = vrot.lane.b32.xlu0 %v1090, 32
        %v1291 = vpop.permute.xlu0 %1290
        %v1293 = vcombine.low %v1090, %v1288
        %v1294 = vcombine.high %v1090, %v1288
        %v1296 = vunpack.c.l.s4 1983009808
        %v1297 = vunpack.c.0.s8 %v1296
        %v1298 = vlaneseq
        %v1299 = vshrl.u32 %v1298, 7
        %v1300 = vsub.s32 %v1297, %v1299
        %v1301 = vrot.slane %v1293, %v1300
        %v1303 = vunpack.c.l.s4 1983009808
        %v1304 = vunpack.c.0.s8 %v1303
        %v1305 = vlaneseq
        %v1306 = vshrl.u32 %v1305, 7
        %v1307 = vsub.s32 %v1304, %v1306
        %v1308 = vrot.slane %v1294, %v1307
        %v1309 = vcombine.low %v1285, %v1291
        %v1310 = vcombine.high %v1285, %v1291
        %v1312 = vunpack.c.l.s4 1983009808
        %v1313 = vunpack.c.0.s8 %v1312
        %v1314 = vlaneseq
        %v1315 = vshrl.u32 %v1314, 7
        %v1316 = vsub.s32 %v1313, %v1315
        %v1317 = vrot.slane %v1309, %v1316
        %v1319 = vunpack.c.l.s4 1983009808
        %v1320 = vunpack.c.0.s8 %v1319
        %v1321 = vlaneseq
        %v1322 = vshrl.u32 %v1321, 7
        %v1323 = vsub.s32 %v1320, %v1322
        %v1324 = vrot.slane %v1310, %v1323
        %v1325 = vcombine.low %v1301, %v1317
        %v1326 = vcombine.high %v1301, %v1317
        %v1328 = vunpack.c.l.s4 1934713408
        %v1329 = vunpack.c.0.s8 %v1328
        %v1330 = vlaneseq
        %v1331 = vshrl.u32 %v1330, 7
        %v1332 = vsub.s32 %v1329, %v1331
        %v1333 = vrot.slane %v1325, %v1332
        %v1335 = vunpack.c.l.s4 1934713408
        %v1336 = vunpack.c.0.s8 %v1335
        %v1337 = vlaneseq
        %v1338 = vshrl.u32 %v1337, 7
        %v1339 = vsub.s32 %v1336, %v1338
        %v1340 = vrot.slane %v1326, %v1339
        %v1341 = vcombine.low %v1308, %v1324
        %v1342 = vcombine.high %v1308, %v1324
        %v1344 = vunpack.c.l.s4 1934713408
        %v1345 = vunpack.c.0.s8 %v1344
        %v1346 = vlaneseq
        %v1347 = vshrl.u32 %v1346, 7
        %v1348 = vsub.s32 %v1345, %v1347
        %v1349 = vrot.slane %v1341, %v1348
        %v1351 = vunpack.c.l.s4 1934713408
        %v1352 = vunpack.c.0.s8 %v1351
        %v1353 = vlaneseq
        %v1354 = vshrl.u32 %v1353, 7
        %v1355 = vsub.s32 %v1352, %v1354
        %v1356 = vrot.slane %v1342, %v1355
        %v1357 = vcombine.high %v1333, 0.0
        %v1358 = vcombine.high %v1340, 0.0
        %v1359 = vcombine.high %v1349, 0.0
        %v1360 = vcombine.high %v1356, 0.0
        %v1361 = vcombine.low %v1333, %v1340
        %v1363 = vunpack.c.l.s4 1983009808
        %v1364 = vunpack.c.0.s8 %v1363
        %v1365 = vlaneseq
        %v1366 = vshrl.u32 %v1365, 7
        %v1367 = vsub.s32 %v1364, %v1366
        %v1368 = vrot.slane %v1361, %v1367
        %v1369 = vcombine.low %v1357, %v1358
        %v1371 = vunpack.c.l.s4 1983009808
        %v1372 = vunpack.c.0.s8 %v1371
        %v1373 = vlaneseq
        %v1374 = vshrl.u32 %v1373, 7
        %v1375 = vsub.s32 %v1372, %v1374
        %v1376 = vrot.slane %v1369, %v1375
        %v1377 = vcombine.low %v1349, %v1356
        %v1379 = vunpack.c.l.s4 1983009808
        %v1380 = vunpack.c.0.s8 %v1379
        %v1381 = vlaneseq
        %v1382 = vshrl.u32 %v1381, 7
        %v1383 = vsub.s32 %v1380, %v1382
        %v1384 = vrot.slane %v1377, %v1383
        %v1385 = vcombine.low %v1359, %v1360
        %v1387 = vunpack.c.l.s4 1983009808
        %v1388 = vunpack.c.0.s8 %v1387
        %v1389 = vlaneseq
        %v1390 = vshrl.u32 %v1389, 7
        %v1391 = vsub.s32 %v1388, %v1390
        %v1392 = vrot.slane %v1385, %v1391
        %v1393 = vcombine.low %v1368, %v1376
        %v1394 = vcombine.high %v1368, %v1376
        %v1396 = vunpack.c.l.s4 1934713408
        %v1397 = vunpack.c.0.s8 %v1396
        %v1398 = vlaneseq
        %v1399 = vshrl.u32 %v1398, 7
        %v1400 = vsub.s32 %v1397, %v1399
        %v1401 = vrot.slane %v1393, %v1400
        %v1403 = vunpack.c.l.s4 1934713408
        %v1404 = vunpack.c.0.s8 %v1403
        %v1405 = vlaneseq
        %v1406 = vshrl.u32 %v1405, 7
        %v1407 = vsub.s32 %v1404, %v1406
        %v1408 = vrot.slane %v1394, %v1407
        %v1409 = vcombine.low %v1384, %v1392
        %v1410 = vcombine.high %v1384, %v1392
        %v1412 = vunpack.c.l.s4 1934713408
        %v1413 = vunpack.c.0.s8 %v1412
        %v1414 = vlaneseq
        %v1415 = vshrl.u32 %v1414, 7
        %v1416 = vsub.s32 %v1413, %v1415
        %v1417 = vrot.slane %v1409, %v1416
        %v1419 = vunpack.c.l.s4 1934713408
        %v1420 = vunpack.c.0.s8 %v1419
        %v1421 = vlaneseq
        %v1422 = vshrl.u32 %v1421, 7
        %v1423 = vsub.s32 %v1420, %v1422
        %v1424 = vrot.slane %v1410, %v1423
        %v1425 = vcombine.low %v1401, %v1417
        %v1426 = vcombine.high %v1401, %v1417
        %v1427 = vcombine.low %v1408, %v1424
        %v1428 = vcombine.high %v1408, %v1424
        %1430 = vrot.lane.b32.xlu0 %v1131, 96
        %v1431 = vpop.permute.xlu0 %1430
        %1433 = vrot.lane.b32.xlu0 %v1131, 64
        %v1434 = vpop.permute.xlu0 %1433
        %1436 = vrot.lane.b32.xlu0 %v1131, 32
        %v1437 = vpop.permute.xlu0 %1436
        %v1439 = vcombine.low %v1131, %v1434
        %v1440 = vcombine.high %v1131, %v1434
        %v1442 = vunpack.c.l.s4 1983009808
        %v1443 = vunpack.c.0.s8 %v1442
        %v1444 = vlaneseq
        %v1445 = vshrl.u32 %v1444, 7
        %v1446 = vsub.s32 %v1443, %v1445
        %v1447 = vrot.slane %v1439, %v1446
        %v1449 = vunpack.c.l.s4 1983009808
        %v1450 = vunpack.c.0.s8 %v1449
        %v1451 = vlaneseq
        %v1452 = vshrl.u32 %v1451, 7
        %v1453 = vsub.s32 %v1450, %v1452
        %v1454 = vrot.slane %v1440, %v1453
        %v1455 = vcombine.low %v1431, %v1437
        %v1456 = vcombine.high %v1431, %v1437
        %v1458 = vunpack.c.l.s4 1983009808
        %v1459 = vunpack.c.0.s8 %v1458
        %v1460 = vlaneseq
        %v1461 = vshrl.u32 %v1460, 7
        %v1462 = vsub.s32 %v1459, %v1461
        %v1463 = vrot.slane %v1455, %v1462
        %v1465 = vunpack.c.l.s4 1983009808
        %v1466 = vunpack.c.0.s8 %v1465
        %v1467 = vlaneseq
        %v1468 = vshrl.u32 %v1467, 7
        %v1469 = vsub.s32 %v1466, %v1468
        %v1470 = vrot.slane %v1456, %v1469
        %v1471 = vcombine.low %v1447, %v1463
        %v1472 = vcombine.high %v1447, %v1463
        %v1474 = vunpack.c.l.s4 1934713408
        %v1475 = vunpack.c.0.s8 %v1474
        %v1476 = vlaneseq
        %v1477 = vshrl.u32 %v1476, 7
        %v1478 = vsub.s32 %v1475, %v1477
        %v1479 = vrot.slane %v1471, %v1478
        %v1481 = vunpack.c.l.s4 1934713408
        %v1482 = vunpack.c.0.s8 %v1481
        %v1483 = vlaneseq
        %v1484 = vshrl.u32 %v1483, 7
        %v1485 = vsub.s32 %v1482, %v1484
        %v1486 = vrot.slane %v1472, %v1485
        %v1487 = vcombine.low %v1454, %v1470
        %v1488 = vcombine.high %v1454, %v1470
        %v1490 = vunpack.c.l.s4 1934713408
        %v1491 = vunpack.c.0.s8 %v1490
        %v1492 = vlaneseq
        %v1493 = vshrl.u32 %v1492, 7
        %v1494 = vsub.s32 %v1491, %v1493
        %v1495 = vrot.slane %v1487, %v1494
        %v1497 = vunpack.c.l.s4 1934713408
        %v1498 = vunpack.c.0.s8 %v1497
        %v1499 = vlaneseq
        %v1500 = vshrl.u32 %v1499, 7
        %v1501 = vsub.s32 %v1498, %v1500
        %v1502 = vrot.slane %v1488, %v1501
        %v1503 = vcombine.high %v1479, 0.0
        %v1504 = vcombine.high %v1486, 0.0
        %v1505 = vcombine.high %v1495, 0.0
        %v1506 = vcombine.high %v1502, 0.0
        %v1507 = vcombine.low %v1479, %v1486
        %v1509 = vunpack.c.l.s4 1983009808
        %v1510 = vunpack.c.0.s8 %v1509
        %v1511 = vlaneseq
        %v1512 = vshrl.u32 %v1511, 7
        %v1513 = vsub.s32 %v1510, %v1512
        %v1514 = vrot.slane %v1507, %v1513
        %v1515 = vcombine.low %v1503, %v1504
        %v1517 = vunpack.c.l.s4 1983009808
        %v1518 = vunpack.c.0.s8 %v1517
        %v1519 = vlaneseq
        %v1520 = vshrl.u32 %v1519, 7
        %v1521 = vsub.s32 %v1518, %v1520
        %v1522 = vrot.slane %v1515, %v1521
        %v1523 = vcombine.low %v1495, %v1502
        %v1525 = vunpack.c.l.s4 1983009808
        %v1526 = vunpack.c.0.s8 %v1525
        %v1527 = vlaneseq
        %v1528 = vshrl.u32 %v1527, 7
        %v1529 = vsub.s32 %v1526, %v1528
        %v1530 = vrot.slane %v1523, %v1529
        %v1531 = vcombine.low %v1505, %v1506
        %v1533 = vunpack.c.l.s4 1983009808
        %v1534 = vunpack.c.0.s8 %v1533
        %v1535 = vlaneseq
        %v1536 = vshrl.u32 %v1535, 7
        %v1537 = vsub.s32 %v1534, %v1536
        %v1538 = vrot.slane %v1531, %v1537
        %v1539 = vcombine.low %v1514, %v1522
        %v1540 = vcombine.high %v1514, %v1522
        %v1542 = vunpack.c.l.s4 1934713408
        %v1543 = vunpack.c.0.s8 %v1542
        %v1544 = vlaneseq
        %v1545 = vshrl.u32 %v1544, 7
        %v1546 = vsub.s32 %v1543, %v1545
        %v1547 = vrot.slane %v1539, %v1546
        %v1549 = vunpack.c.l.s4 1934713408
        %v1550 = vunpack.c.0.s8 %v1549
        %v1551 = vlaneseq
        %v1552 = vshrl.u32 %v1551, 7
        %v1553 = vsub.s32 %v1550, %v1552
        %v1554 = vrot.slane %v1540, %v1553
        %v1555 = vcombine.low %v1530, %v1538
        %v1556 = vcombine.high %v1530, %v1538
        %v1558 = vunpack.c.l.s4 1934713408
        %v1559 = vunpack.c.0.s8 %v1558
        %v1560 = vlaneseq
        %v1561 = vshrl.u32 %v1560, 7
        %v1562 = vsub.s32 %v1559, %v1561
        %v1563 = vrot.slane %v1555, %v1562
        %v1565 = vunpack.c.l.s4 1934713408
        %v1566 = vunpack.c.0.s8 %v1565
        %v1567 = vlaneseq
        %v1568 = vshrl.u32 %v1567, 7
        %v1569 = vsub.s32 %v1566, %v1568
        %v1570 = vrot.slane %v1556, %v1569
        %v1571 = vcombine.low %v1547, %v1563
        %v1572 = vcombine.high %v1547, %v1563
        %v1573 = vcombine.low %v1554, %v1570
        %v1574 = vcombine.high %v1554, %v1570
        %v1575 = vpack.c.bf16 %v1279, %v1279
        %v1576 = vpack.c.bf16 %v1280, %v1280
        %v1577 = vpack.c.bf16 %v1281, %v1281
        %v1578 = vpack.c.bf16 %v1282, %v1282
        %v1579 = vpack.c.bf16 %v1425, %v1425
        %v1580 = vpack.c.bf16 %v1426, %v1426
        %v1581 = vpack.c.bf16 %v1427, %v1427
        %v1582 = vpack.c.bf16 %v1428, %v1428
        %vm1583 = vcmask 261120
        %v1585 = vsel %vm1583, %v1575, 0
        %v1588 = vsel %vm1583, %v1579, 0
        %1590 = vmatprep.subr.bf16.mxu0 0
        %1591 = vmatpush1.bf16.xpose.msra.mxu0 %v1588
        %1592 = vmatprep.subr.bf16.mxu0 0
        %1593 = vmatpush1.bf16.xpose.msra.mxu0 0
        %1594 = vmatprep.subr.bf16.mxu0 0
        %1595 = vmatpush1.bf16.xpose.msra.mxu0 0
        %1596 = vmatprep.subr.bf16.mxu0 0
        %1597 = vmatpush1.bf16.xpose.msra.mxu0 0
        %1598 = vmatprep.subr.bf16.mxu0 0
        %1599 = vmatpush1.bf16.xpose.msra.mxu0 0
        %1600 = vmatprep.subr.bf16.mxu0 0
        %1601 = vmatpush1.bf16.xpose.msra.mxu0 0
        %1602 = vmatprep.subr.bf16.mxu0 0
        %1603 = vmatpush1.bf16.xpose.msra.mxu0 0
        %1604 = vmatprep.subr.bf16.mxu0 0
        %1605 = vmatpush1.bf16.xpose.msra.mxu0 0
        %1606 = vmatprep.subr.bf16.mxu0 0
        %1607 = vmatpush1.bf16.xpose.msra.mxu0 0
        %1608 = vmatprep.subr.bf16.mxu0 0
        %1609 = vmatpush1.bf16.xpose.msra.mxu0 0
        %1610 = vmatprep.subr.bf16.mxu0 0
        %1611 = vmatpush1.bf16.xpose.msra.mxu0 0
        %1612 = vmatprep.subr.bf16.mxu0 0
        %1613 = vmatpush1.bf16.xpose.msra.mxu0 0
        %1614 = vmatprep.subr.bf16.mxu0 0
        %1615 = vmatpush1.bf16.xpose.msra.mxu0 0
        %1616 = vmatprep.subr.bf16.mxu0 0
        %1617 = vmatpush1.bf16.xpose.msra.mxu0 0
        %1618 = vmatprep.subr.bf16.mxu0 0
        %1619 = vmatpush1.bf16.xpose.msra.mxu0 0
        %1620 = vmatprep.subr.bf16.mxu0 0
        %1621 = vmatpush1.bf16.xpose.msra.mxu0 0
        %1622 = vmatprep.mubr.bf16.mxu0 0
        %1623 = vmatmul.mubr.bf16.gmra.mrb[0].mxu0 %v1585
        %v1624 = vpop.f32.mrb[0].mxu0
        %v1625 = vadd.f32 0.0, %v1624
        %v1626 = vpop.f32.mrb[0].mxu0
        %v1627 = vpop.f32.mrb[0].mxu0
        %v1628 = vpop.f32.mrb[0].mxu0
        %1629 = vdwg.mxu0
        %v1631 = vsel %vm1583, %v1576, 0
        %v1634 = vsel %vm1583, %v1580, 0
        %1636 = vmatprep.subr.bf16.mxu0 0
        %1637 = vmatpush1.bf16.xpose.msra.mxu0 %v1634
        %1638 = vmatprep.subr.bf16.mxu0 0
        %1639 = vmatpush1.bf16.xpose.msra.mxu0 0
        %1640 = vmatprep.subr.bf16.mxu0 0
        %1641 = vmatpush1.bf16.xpose.msra.mxu0 0
        %1642 = vmatprep.subr.bf16.mxu0 0
        %1643 = vmatpush1.bf16.xpose.msra.mxu0 0
        %1644 = vmatprep.subr.bf16.mxu0 0
        %1645 = vmatpush1.bf16.xpose.msra.mxu0 0
        %1646 = vmatprep.subr.bf16.mxu0 0
        %1647 = vmatpush1.bf16.xpose.msra.mxu0 0
        %1648 = vmatprep.subr.bf16.mxu0 0
        %1649 = vmatpush1.bf16.xpose.msra.mxu0 0
        %1650 = vmatprep.subr.bf16.mxu0 0
        %1651 = vmatpush1.bf16.xpose.msra.mxu0 0
        %1652 = vmatprep.subr.bf16.mxu0 0
        %1653 = vmatpush1.bf16.xpose.msra.mxu0 0
        %1654 = vmatprep.subr.bf16.mxu0 0
        %1655 = vmatpush1.bf16.xpose.msra.mxu0 0
        %1656 = vmatprep.subr.bf16.mxu0 0
        %1657 = vmatpush1.bf16.xpose.msra.mxu0 0
        %1658 = vmatprep.subr.bf16.mxu0 0
        %1659 = vmatpush1.bf16.xpose.msra.mxu0 0
        %1660 = vmatprep.subr.bf16.mxu0 0
        %1661 = vmatpush1.bf16.xpose.msra.mxu0 0
        %1662 = vmatprep.subr.bf16.mxu0 0
        %1663 = vmatpush1.bf16.xpose.msra.mxu0 0
        %1664 = vmatprep.subr.bf16.mxu0 0
        %1665 = vmatpush1.bf16.xpose.msra.mxu0 0
        %1666 = vmatprep.subr.bf16.mxu0 0
        %1667 = vmatpush1.bf16.xpose.msra.mxu0 0
        %1668 = vmatprep.mubr.bf16.mxu0 0
        %1669 = vmatmul.mubr.bf16.gmra.mrb[0].mxu0 %v1631
        %v1670 = vpop.f32.mrb[0].mxu0
        %v1671 = vadd.f32 0.0, %v1670
        %v1672 = vpop.f32.mrb[0].mxu0
        %v1673 = vpop.f32.mrb[0].mxu0
        %v1674 = vpop.f32.mrb[0].mxu0
        %1675 = vdwg.mxu0
        %v1677 = vsel %vm1583, %v1577, 0
        %v1680 = vsel %vm1583, %v1581, 0
        %1682 = vmatprep.subr.bf16.mxu0 0
        %1683 = vmatpush1.bf16.xpose.msra.mxu0 %v1680
        %1684 = vmatprep.subr.bf16.mxu0 0
        %1685 = vmatpush1.bf16.xpose.msra.mxu0 0
        %1686 = vmatprep.subr.bf16.mxu0 0
        %1687 = vmatpush1.bf16.xpose.msra.mxu0 0
        %1688 = vmatprep.subr.bf16.mxu0 0
        %1689 = vmatpush1.bf16.xpose.msra.mxu0 0
        %1690 = vmatprep.subr.bf16.mxu0 0
        %1691 = vmatpush1.bf16.xpose.msra.mxu0 0
        %1692 = vmatprep.subr.bf16.mxu0 0
        %1693 = vmatpush1.bf16.xpose.msra.mxu0 0
        %1694 = vmatprep.subr.bf16.mxu0 0
        %1695 = vmatpush1.bf16.xpose.msra.mxu0 0
        %1696 = vmatprep.subr.bf16.mxu0 0
        %1697 = vmatpush1.bf16.xpose.msra.mxu0 0
        %1698 = vmatprep.subr.bf16.mxu0 0
        %1699 = vmatpush1.bf16.xpose.msra.mxu0 0
        %1700 = vmatprep.subr.bf16.mxu0 0
        %1701 = vmatpush1.bf16.xpose.msra.mxu0 0
        %1702 = vmatprep.subr.bf16.mxu0 0
        %1703 = vmatpush1.bf16.xpose.msra.mxu0 0
        %1704 = vmatprep.subr.bf16.mxu0 0
        %1705 = vmatpush1.bf16.xpose.msra.mxu0 0
        %1706 = vmatprep.subr.bf16.mxu0 0
        %1707 = vmatpush1.bf16.xpose.msra.mxu0 0
        %1708 = vmatprep.subr.bf16.mxu0 0
        %1709 = vmatpush1.bf16.xpose.msra.mxu0 0
        %1710 = vmatprep.subr.bf16.mxu0 0
        %1711 = vmatpush1.bf16.xpose.msra.mxu0 0
        %1712 = vmatprep.subr.bf16.mxu0 0
        %1713 = vmatpush1.bf16.xpose.msra.mxu0 0
        %1714 = vmatprep.mubr.bf16.mxu0 0
        %1715 = vmatmul.mubr.bf16.gmra.mrb[0].mxu0 %v1677
        %v1716 = vpop.f32.mrb[0].mxu0
        %v1717 = vadd.f32 0.0, %v1716
        %v1718 = vpop.f32.mrb[0].mxu0
        %v1719 = vpop.f32.mrb[0].mxu0
        %v1720 = vpop.f32.mrb[0].mxu0
        %1721 = vdwg.mxu0
        %v1723 = vsel %vm1583, %v1578, 0
        %v1726 = vsel %vm1583, %v1582, 0
        %1728 = vmatprep.subr.bf16.mxu0 0
        %1729 = vmatpush1.bf16.xpose.msra.mxu0 %v1726
        %1730 = vmatprep.subr.bf16.mxu0 0
        %1731 = vmatpush1.bf16.xpose.msra.mxu0 0
        %1732 = vmatprep.subr.bf16.mxu0 0
        %1733 = vmatpush1.bf16.xpose.msra.mxu0 0
        %1734 = vmatprep.subr.bf16.mxu0 0
        %1735 = vmatpush1.bf16.xpose.msra.mxu0 0
        %1736 = vmatprep.subr.bf16.mxu0 0
        %1737 = vmatpush1.bf16.xpose.msra.mxu0 0
        %1738 = vmatprep.subr.bf16.mxu0 0
        %1739 = vmatpush1.bf16.xpose.msra.mxu0 0
        %1740 = vmatprep.subr.bf16.mxu0 0
        %1741 = vmatpush1.bf16.xpose.msra.mxu0 0
        %1742 = vmatprep.subr.bf16.mxu0 0
        %1743 = vmatpush1.bf16.xpose.msra.mxu0 0
        %1744 = vmatprep.subr.bf16.mxu0 0
        %1745 = vmatpush1.bf16.xpose.msra.mxu0 0
        %1746 = vmatprep.subr.bf16.mxu0 0
        %1747 = vmatpush1.bf16.xpose.msra.mxu0 0
        %1748 = vmatprep.subr.bf16.mxu0 0
        %1749 = vmatpush1.bf16.xpose.msra.mxu0 0
        %1750 = vmatprep.subr.bf16.mxu0 0
        %1751 = vmatpush1.bf16.xpose.msra.mxu0 0
        %1752 = vmatprep.subr.bf16.mxu0 0
        %1753 = vmatpush1.bf16.xpose.msra.mxu0 0
        %1754 = vmatprep.subr.bf16.mxu0 0
        %1755 = vmatpush1.bf16.xpose.msra.mxu0 0
        %1756 = vmatprep.subr.bf16.mxu0 0
        %1757 = vmatpush1.bf16.xpose.msra.mxu0 0
        %1758 = vmatprep.subr.bf16.mxu0 0
        %1759 = vmatpush1.bf16.xpose.msra.mxu0 0
        %1760 = vmatprep.mubr.bf16.mxu0 0
        %1761 = vmatmul.mubr.bf16.gmra.mrb[0].mxu0 %v1723
        %v1762 = vpop.f32.mrb[0].mxu0
        %v1763 = vadd.f32 0.0, %v1762
        %v1764 = vpop.f32.mrb[0].mxu0
        %v1765 = vpop.f32.mrb[0].mxu0
        %v1766 = vpop.f32.mrb[0].mxu0
        %1767 = vdwg.mxu0
        %vm1768 = vcmask 64512
        %v1769 = vsel %vm1768, %v1625, -inf
        %1770 = vmax.xlane.f32.xlu0 %v1769
        %v1771 = vpop.xlane.xlu0 %1770
        %v1772 = vsel %vm1768, %v1671, -inf
        %1773 = vmax.xlane.f32.xlu0 %v1772
        %v1774 = vpop.xlane.xlu0 %1773
        %v1775 = vsel %vm1768, %v1717, -inf
        %1776 = vmax.xlane.f32.xlu0 %v1775
        %v1777 = vpop.xlane.xlu0 %1776
        %v1778 = vsel %vm1768, %v1763, -inf
        %1779 = vmax.xlane.f32.xlu0 %v1778
        %v1780 = vpop.xlane.xlu0 %1779
        %v1781 = vsub.f32 %v1625, %v1771
        %v1782 = vsub.f32 %v1671, %v1774
        %v1783 = vsub.f32 %v1717, %v1777
        %v1784 = vsub.f32 %v1763, %v1780
        %v1785 = vmul.f32 %v1781, 1.442695
        %v1786 = vpow.pop %v1785
        %v1787 = vmul.f32 %v1782, 1.442695
        %v1788 = vpow.pop %v1787
        %v1789 = vmul.f32 %v1783, 1.442695
        %v1790 = vpow.pop %v1789
        %v1791 = vmul.f32 %v1784, 1.442695
        %v1792 = vpow.pop %v1791
        %v1793 = vsel %vm1768, %v1786, 0.0
        %1794 = vadd.xlane.f32.xlu0 %v1793
        %v1795 = vpop.xlane.xlu0 %1794
        %v1796 = vsel %vm1768, %v1788, 0.0
        %1797 = vadd.xlane.f32.xlu0 %v1796
        %v1798 = vpop.xlane.xlu0 %1797
        %v1799 = vsel %vm1768, %v1790, 0.0
        %1800 = vadd.xlane.f32.xlu0 %v1799
        %v1801 = vpop.xlane.xlu0 %1800
        %v1802 = vsel %vm1768, %v1792, 0.0
        %1803 = vadd.xlane.f32.xlu0 %v1802
        %v1804 = vpop.xlane.xlu0 %1803
        %v1805 = vrcp.pop %v1795
        %v1806 = vrcp.pop %v1798
        %v1807 = vrcp.pop %v1801
        %v1808 = vrcp.pop %v1804
        %v1809 = vmul.f32 %v1786, %v1805
        %v1810 = vmul.f32 %v1788, %v1806
        %v1811 = vmul.f32 %v1790, %v1807
        %v1812 = vmul.f32 %v1792, %v1808
        %v1813 = vpack.c.bf16 %v1809, %v1809
        %v1814 = vpack.c.bf16 %v1810, %v1810
        %v1815 = vpack.c.bf16 %v1811, %v1811
        %v1816 = vpack.c.bf16 %v1812, %v1812
        %v1817 = vpack.c.bf16 %v1571, %v1571
        %v1818 = vpack.c.bf16 %v1572, %v1572
        %v1819 = vpack.c.bf16 %v1573, %v1573
        %v1820 = vpack.c.bf16 %v1574, %v1574
        %v1822 = vsel %vm1768, %v1813, 0
        %vm1824 = vcmask 1043456
        %v1826 = vsel %vm1824, %v1817, 0
        %1828 = vmatprep.subr.bf16.mxu0 0
        %1829 = vmatpush1.bf16.msra.mxu0 %v1826
        %1830 = vmatprep.subr.bf16.mxu0 0
        %1831 = vmatpush1.bf16.msra.mxu0 0
        %1832 = vmatprep.subr.bf16.mxu0 0
        %1833 = vmatpush1.bf16.msra.mxu0 0
        %1834 = vmatprep.subr.bf16.mxu0 0
        %1835 = vmatpush1.bf16.msra.mxu0 0
        %1836 = vmatprep.subr.bf16.mxu0 0
        %1837 = vmatpush1.bf16.msra.mxu0 0
        %1838 = vmatprep.subr.bf16.mxu0 0
        %1839 = vmatpush1.bf16.msra.mxu0 0
        %1840 = vmatprep.subr.bf16.mxu0 0
        %1841 = vmatpush1.bf16.msra.mxu0 0
        %1842 = vmatprep.subr.bf16.mxu0 0
        %1843 = vmatpush1.bf16.msra.mxu0 0
        %1844 = vmatprep.subr.bf16.mxu0 0
        %1845 = vmatpush1.bf16.msra.mxu0 0
        %1846 = vmatprep.subr.bf16.mxu0 0
        %1847 = vmatpush1.bf16.msra.mxu0 0
        %1848 = vmatprep.subr.bf16.mxu0 0
        %1849 = vmatpush1.bf16.msra.mxu0 0
        %1850 = vmatprep.subr.bf16.mxu0 0
        %1851 = vmatpush1.bf16.msra.mxu0 0
        %1852 = vmatprep.subr.bf16.mxu0 0
        %1853 = vmatpush1.bf16.msra.mxu0 0
        %1854 = vmatprep.subr.bf16.mxu0 0
        %1855 = vmatpush1.bf16.msra.mxu0 0
        %1856 = vmatprep.subr.bf16.mxu0 0
        %1857 = vmatpush1.bf16.msra.mxu0 0
        %1858 = vmatprep.subr.bf16.mxu0 0
        %1859 = vmatpush1.bf16.msra.mxu0 0
        %1860 = vmatprep.mubr.bf16.mxu0 0
        %1861 = vmatmul.mubr.bf16.gmra.mrb[0].mxu0 %v1822
        %v1862 = vpop.f32.mrb[0].mxu0
        %v1863 = vadd.f32 0.0, %v1862
        %v1864 = vpop.f32.mrb[0].mxu0
        %v1865 = vpop.f32.mrb[0].mxu0
        %v1866 = vpop.f32.mrb[0].mxu0
        %1867 = vdwg.mxu0
        %v1869 = vsel %vm1768, %v1814, 0
        %v1872 = vsel %vm1824, %v1818, 0
        %1874 = vmatprep.subr.bf16.mxu0 0
        %1875 = vmatpush1.bf16.msra.mxu0 %v1872
        %1876 = vmatprep.subr.bf16.mxu0 0
        %1877 = vmatpush1.bf16.msra.mxu0 0
        %1878 = vmatprep.subr.bf16.mxu0 0
        %1879 = vmatpush1.bf16.msra.mxu0 0
        %1880 = vmatprep.subr.bf16.mxu0 0
        %1881 = vmatpush1.bf16.msra.mxu0 0
        %1882 = vmatprep.subr.bf16.mxu0 0
        %1883 = vmatpush1.bf16.msra.mxu0 0
        %1884 = vmatprep.subr.bf16.mxu0 0
        %1885 = vmatpush1.bf16.msra.mxu0 0
        %1886 = vmatprep.subr.bf16.mxu0 0
        %1887 = vmatpush1.bf16.msra.mxu0 0
        %1888 = vmatprep.subr.bf16.mxu0 0
        %1889 = vmatpush1.bf16.msra.mxu0 0
        %1890 = vmatprep.subr.bf16.mxu0 0
        %1891 = vmatpush1.bf16.msra.mxu0 0
        %1892 = vmatprep.subr.bf16.mxu0 0
        %1893 = vmatpush1.bf16.msra.mxu0 0
        %1894 = vmatprep.subr.bf16.mxu0 0
        %1895 = vmatpush1.bf16.msra.mxu0 0
        %1896 = vmatprep.subr.bf16.mxu0 0
        %1897 = vmatpush1.bf16.msra.mxu0 0
        %1898 = vmatprep.subr.bf16.mxu0 0
        %1899 = vmatpush1.bf16.msra.mxu0 0
        %1900 = vmatprep.subr.bf16.mxu0 0
        %1901 = vmatpush1.bf16.msra.mxu0 0
        %1902 = vmatprep.subr.bf16.mxu0 0
        %1903 = vmatpush1.bf16.msra.mxu0 0
        %1904 = vmatprep.subr.bf16.mxu0 0
        %1905 = vmatpush1.bf16.msra.mxu0 0
        %1906 = vmatprep.mubr.bf16.mxu0 0
        %1907 = vmatmul.mubr.bf16.gmra.mrb[0].mxu0 %v1869
        %v1908 = vpop.f32.mrb[0].mxu0
        %v1909 = vadd.f32 0.0, %v1908
        %v1910 = vpop.f32.mrb[0].mxu0
        %v1911 = vpop.f32.mrb[0].mxu0
        %v1912 = vpop.f32.mrb[0].mxu0
        %1913 = vdwg.mxu0
        %v1915 = vsel %vm1768, %v1815, 0
        %v1918 = vsel %vm1824, %v1819, 0
        %1920 = vmatprep.subr.bf16.mxu0 0
        %1921 = vmatpush1.bf16.msra.mxu0 %v1918
        %1922 = vmatprep.subr.bf16.mxu0 0
        %1923 = vmatpush1.bf16.msra.mxu0 0
        %1924 = vmatprep.subr.bf16.mxu0 0
        %1925 = vmatpush1.bf16.msra.mxu0 0
        %1926 = vmatprep.subr.bf16.mxu0 0
        %1927 = vmatpush1.bf16.msra.mxu0 0
        %1928 = vmatprep.subr.bf16.mxu0 0
        %1929 = vmatpush1.bf16.msra.mxu0 0
        %1930 = vmatprep.subr.bf16.mxu0 0
        %1931 = vmatpush1.bf16.msra.mxu0 0
        %1932 = vmatprep.subr.bf16.mxu0 0
        %1933 = vmatpush1.bf16.msra.mxu0 0
        %1934 = vmatprep.subr.bf16.mxu0 0
        %1935 = vmatpush1.bf16.msra.mxu0 0
        %1936 = vmatprep.subr.bf16.mxu0 0
        %1937 = vmatpush1.bf16.msra.mxu0 0
        %1938 = vmatprep.subr.bf16.mxu0 0
        %1939 = vmatpush1.bf16.msra.mxu0 0
        %1940 = vmatprep.subr.bf16.mxu0 0
        %1941 = vmatpush1.bf16.msra.mxu0 0
        %1942 = vmatprep.subr.bf16.mxu0 0
        %1943 = vmatpush1.bf16.msra.mxu0 0
        %1944 = vmatprep.subr.bf16.mxu0 0
        %1945 = vmatpush1.bf16.msra.mxu0 0
        %1946 = vmatprep.subr.bf16.mxu0 0
        %1947 = vmatpush1.bf16.msra.mxu0 0
        %1948 = vmatprep.subr.bf16.mxu0 0
        %1949 = vmatpush1.bf16.msra.mxu0 0
        %1950 = vmatprep.subr.bf16.mxu0 0
        %1951 = vmatpush1.bf16.msra.mxu0 0
        %1952 = vmatprep.mubr.bf16.mxu0 0
        %1953 = vmatmul.mubr.bf16.gmra.mrb[0].mxu0 %v1915
        %v1954 = vpop.f32.mrb[0].mxu0
        %v1955 = vadd.f32 0.0, %v1954
        %v1956 = vpop.f32.mrb[0].mxu0
        %v1957 = vpop.f32.mrb[0].mxu0
        %v1958 = vpop.f32.mrb[0].mxu0
        %1959 = vdwg.mxu0
        %v1961 = vsel %vm1768, %v1816, 0
        %v1964 = vsel %vm1824, %v1820, 0
        %1966 = vmatprep.subr.bf16.mxu0 0
        %1967 = vmatpush1.bf16.msra.mxu0 %v1964
        %1968 = vmatprep.subr.bf16.mxu0 0
        %1969 = vmatpush1.bf16.msra.mxu0 0
        %1970 = vmatprep.subr.bf16.mxu0 0
        %1971 = vmatpush1.bf16.msra.mxu0 0
        %1972 = vmatprep.subr.bf16.mxu0 0
        %1973 = vmatpush1.bf16.msra.mxu0 0
        %1974 = vmatprep.subr.bf16.mxu0 0
        %1975 = vmatpush1.bf16.msra.mxu0 0
        %1976 = vmatprep.subr.bf16.mxu0 0
        %1977 = vmatpush1.bf16.msra.mxu0 0
        %1978 = vmatprep.subr.bf16.mxu0 0
        %1979 = vmatpush1.bf16.msra.mxu0 0
        %1980 = vmatprep.subr.bf16.mxu0 0
        %1981 = vmatpush1.bf16.msra.mxu0 0
        %1982 = vmatprep.subr.bf16.mxu0 0
        %1983 = vmatpush1.bf16.msra.mxu0 0
        %1984 = vmatprep.subr.bf16.mxu0 0
        %1985 = vmatpush1.bf16.msra.mxu0 0
        %1986 = vmatprep.subr.bf16.mxu0 0
        %1987 = vmatpush1.bf16.msra.mxu0 0
        %1988 = vmatprep.subr.bf16.mxu0 0
        %1989 = vmatpush1.bf16.msra.mxu0 0
        %1990 = vmatprep.subr.bf16.mxu0 0
        %1991 = vmatpush1.bf16.msra.mxu0 0
        %1992 = vmatprep.subr.bf16.mxu0 0
        %1993 = vmatpush1.bf16.msra.mxu0 0
        %1994 = vmatprep.subr.bf16.mxu0 0
        %1995 = vmatpush1.bf16.msra.mxu0 0
        %1996 = vmatprep.subr.bf16.mxu0 0
        %1997 = vmatpush1.bf16.msra.mxu0 0
        %1998 = vmatprep.mubr.bf16.mxu0 0
        %1999 = vmatmul.mubr.bf16.gmra.mrb[0].mxu0 %v1961
        %v2000 = vpop.f32.mrb[0].mxu0
        %v2001 = vadd.f32 0.0, %v2000
        %v2002 = vpop.f32.mrb[0].mxu0
        %v2003 = vpop.f32.mrb[0].mxu0
        %v2004 = vpop.f32.mrb[0].mxu0
        %2005 = vdwg.mxu0
        %v2006 = vcombine.low %v1863, %v1955
        %v2007 = vcombine.high %v1863, %v1955
        %v2009 = vunpack.c.l.s4 1983009808
        %v2010 = vunpack.c.0.s8 %v2009
        %v2011 = vlaneseq
        %v2012 = vshrl.u32 %v2011, 7
        %v2013 = vsub.s32 %v2010, %v2012
        %v2014 = vrot.slane %v2006, %v2013
        %v2016 = vunpack.c.l.s4 1983009808
        %v2017 = vunpack.c.0.s8 %v2016
        %v2018 = vlaneseq
        %v2019 = vshrl.u32 %v2018, 7
        %v2020 = vsub.s32 %v2017, %v2019
        %v2021 = vrot.slane %v2007, %v2020
        %v2022 = vcombine.low %v1909, %v2001
        %v2023 = vcombine.high %v1909, %v2001
        %v2025 = vunpack.c.l.s4 1983009808
        %v2026 = vunpack.c.0.s8 %v2025
        %v2027 = vlaneseq
        %v2028 = vshrl.u32 %v2027, 7
        %v2029 = vsub.s32 %v2026, %v2028
        %v2030 = vrot.slane %v2022, %v2029
        %v2032 = vunpack.c.l.s4 1983009808
        %v2033 = vunpack.c.0.s8 %v2032
        %v2034 = vlaneseq
        %v2035 = vshrl.u32 %v2034, 7
        %v2036 = vsub.s32 %v2033, %v2035
        %v2037 = vrot.slane %v2023, %v2036
        %v2038 = vcombine.low %v2014, %v2030
        %v2039 = vcombine.high %v2014, %v2030
        %v2041 = vunpack.c.l.s4 1934713408
        %v2042 = vunpack.c.0.s8 %v2041
        %v2043 = vlaneseq
        %v2044 = vshrl.u32 %v2043, 7
        %v2045 = vsub.s32 %v2042, %v2044
        %v2046 = vrot.slane %v2038, %v2045
        %v2048 = vunpack.c.l.s4 1934713408
        %v2049 = vunpack.c.0.s8 %v2048
        %v2050 = vlaneseq
        %v2051 = vshrl.u32 %v2050, 7
        %v2052 = vsub.s32 %v2049, %v2051
        %v2053 = vrot.slane %v2039, %v2052
        %v2054 = vcombine.low %v2021, %v2037
        %v2055 = vcombine.high %v2021, %v2037
        %v2057 = vunpack.c.l.s4 1934713408
        %v2058 = vunpack.c.0.s8 %v2057
        %v2059 = vlaneseq
        %v2060 = vshrl.u32 %v2059, 7
        %v2061 = vsub.s32 %v2058, %v2060
        %v2062 = vrot.slane %v2054, %v2061
        %v2064 = vunpack.c.l.s4 1934713408
        %v2065 = vunpack.c.0.s8 %v2064
        %v2066 = vlaneseq
        %v2067 = vshrl.u32 %v2066, 7
        %v2068 = vsub.s32 %v2065, %v2067
        %v2069 = vrot.slane %v2055, %v2068
        %v2070 = vcombine.high %v2046, 0.0
        %v2071 = vcombine.high %v2053, 0.0
        %v2072 = vcombine.high %v2062, 0.0
        %v2073 = vcombine.high %v2069, 0.0
        %v2074 = vcombine.low %v2046, %v2053
        %v2076 = vunpack.c.l.s4 1983009808
        %v2077 = vunpack.c.0.s8 %v2076
        %v2078 = vlaneseq
        %v2079 = vshrl.u32 %v2078, 7
        %v2080 = vsub.s32 %v2077, %v2079
        %v2081 = vrot.slane %v2074, %v2080
        %v2082 = vcombine.low %v2070, %v2071
        %v2084 = vunpack.c.l.s4 1983009808
        %v2085 = vunpack.c.0.s8 %v2084
        %v2086 = vlaneseq
        %v2087 = vshrl.u32 %v2086, 7
        %v2088 = vsub.s32 %v2085, %v2087
        %v2089 = vrot.slane %v2082, %v2088
        %v2090 = vcombine.low %v2062, %v2069
        %v2092 = vunpack.c.l.s4 1983009808
        %v2093 = vunpack.c.0.s8 %v2092
        %v2094 = vlaneseq
        %v2095 = vshrl.u32 %v2094, 7
        %v2096 = vsub.s32 %v2093, %v2095
        %v2097 = vrot.slane %v2090, %v2096
        %v2098 = vcombine.low %v2072, %v2073
        %v2100 = vunpack.c.l.s4 1983009808
        %v2101 = vunpack.c.0.s8 %v2100
        %v2102 = vlaneseq
        %v2103 = vshrl.u32 %v2102, 7
        %v2104 = vsub.s32 %v2101, %v2103
        %v2105 = vrot.slane %v2098, %v2104
        %v2106 = vcombine.low %v2081, %v2089
        %v2107 = vcombine.high %v2081, %v2089
        %v2109 = vunpack.c.l.s4 1934713408
        %v2110 = vunpack.c.0.s8 %v2109
        %v2111 = vlaneseq
        %v2112 = vshrl.u32 %v2111, 7
        %v2113 = vsub.s32 %v2110, %v2112
        %v2114 = vrot.slane %v2106, %v2113
        %v2116 = vunpack.c.l.s4 1934713408
        %v2117 = vunpack.c.0.s8 %v2116
        %v2118 = vlaneseq
        %v2119 = vshrl.u32 %v2118, 7
        %v2120 = vsub.s32 %v2117, %v2119
        %v2121 = vrot.slane %v2107, %v2120
        %v2122 = vcombine.low %v2097, %v2105
        %v2123 = vcombine.high %v2097, %v2105
        %v2125 = vunpack.c.l.s4 1934713408
        %v2126 = vunpack.c.0.s8 %v2125
        %v2127 = vlaneseq
        %v2128 = vshrl.u32 %v2127, 7
        %v2129 = vsub.s32 %v2126, %v2128
        %v2130 = vrot.slane %v2122, %v2129
        %v2132 = vunpack.c.l.s4 1934713408
        %v2133 = vunpack.c.0.s8 %v2132
        %v2134 = vlaneseq
        %v2135 = vshrl.u32 %v2134, 7
        %v2136 = vsub.s32 %v2133, %v2135
        %v2137 = vrot.slane %v2123, %v2136
        %v2138 = vcombine.low %v2114, %v2130
        %v2139 = vcombine.high %v2114, %v2130
        %v2140 = vcombine.low %v2121, %v2137
        %v2141 = vcombine.high %v2121, %v2137
        %2143 = vrot.lane.b32.xlu0 %v2139, 32
        %v2144 = vpop.permute.xlu0 %2143
        %2147 = vrot.lane.b32.xlu0 %v2140, 64
        %v2148 = vpop.permute.xlu0 %2147
        %2151 = vrot.lane.b32.xlu0 %v2141, 96
        %v2152 = vpop.permute.xlu0 %2151
        %v2154 = vsel %vm1583, %v2138, %v2144
        %vm2155 = vcmask 523264
        %v2156 = vsel %vm2155, %v2154, %v2148
        %vm2157 = vcmask 785408
        %v2158 = vsel %vm2157, %v2156, %v2152
        %2160 = vrot.lane.b32.xlu0 %v1092, 96
        %v2161 = vpop.permute.xlu0 %2160
        %2163 = vrot.lane.b32.xlu0 %v1092, 64
        %v2164 = vpop.permute.xlu0 %2163
        %2166 = vrot.lane.b32.xlu0 %v1092, 32
        %v2167 = vpop.permute.xlu0 %2166
        %v2169 = vcombine.low %v1092, %v2164
        %v2170 = vcombine.high %v1092, %v2164
        %v2172 = vunpack.c.l.s4 1983009808
        %v2173 = vunpack.c.0.s8 %v2172
        %v2174 = vlaneseq
        %v2175 = vshrl.u32 %v2174, 7
        %v2176 = vsub.s32 %v2173, %v2175
        %v2177 = vrot.slane %v2169, %v2176
        %v2179 = vunpack.c.l.s4 1983009808
        %v2180 = vunpack.c.0.s8 %v2179
        %v2181 = vlaneseq
        %v2182 = vshrl.u32 %v2181, 7
        %v2183 = vsub.s32 %v2180, %v2182
        %v2184 = vrot.slane %v2170, %v2183
        %v2185 = vcombine.low %v2161, %v2167
        %v2186 = vcombine.high %v2161, %v2167
        %v2188 = vunpack.c.l.s4 1983009808
        %v2189 = vunpack.c.0.s8 %v2188
        %v2190 = vlaneseq
        %v2191 = vshrl.u32 %v2190, 7
        %v2192 = vsub.s32 %v2189, %v2191
        %v2193 = vrot.slane %v2185, %v2192
        %v2195 = vunpack.c.l.s4 1983009808
        %v2196 = vunpack.c.0.s8 %v2195
        %v2197 = vlaneseq
        %v2198 = vshrl.u32 %v2197, 7
        %v2199 = vsub.s32 %v2196, %v2198
        %v2200 = vrot.slane %v2186, %v2199
        %v2201 = vcombine.low %v2177, %v2193
        %v2202 = vcombine.high %v2177, %v2193
        %v2204 = vunpack.c.l.s4 1934713408
        %v2205 = vunpack.c.0.s8 %v2204
        %v2206 = vlaneseq
        %v2207 = vshrl.u32 %v2206, 7
        %v2208 = vsub.s32 %v2205, %v2207
        %v2209 = vrot.slane %v2201, %v2208
        %v2211 = vunpack.c.l.s4 1934713408
        %v2212 = vunpack.c.0.s8 %v2211
        %v2213 = vlaneseq
        %v2214 = vshrl.u32 %v2213, 7
        %v2215 = vsub.s32 %v2212, %v2214
        %v2216 = vrot.slane %v2202, %v2215
        %v2217 = vcombine.low %v2184, %v2200
        %v2218 = vcombine.high %v2184, %v2200
        %v2220 = vunpack.c.l.s4 1934713408
        %v2221 = vunpack.c.0.s8 %v2220
        %v2222 = vlaneseq
        %v2223 = vshrl.u32 %v2222, 7
        %v2224 = vsub.s32 %v2221, %v2223
        %v2225 = vrot.slane %v2217, %v2224
        %v2227 = vunpack.c.l.s4 1934713408
        %v2228 = vunpack.c.0.s8 %v2227
        %v2229 = vlaneseq
        %v2230 = vshrl.u32 %v2229, 7
        %v2231 = vsub.s32 %v2228, %v2230
        %v2232 = vrot.slane %v2218, %v2231
        %v2233 = vcombine.high %v2209, 0.0
        %v2234 = vcombine.high %v2216, 0.0
        %v2235 = vcombine.high %v2225, 0.0
        %v2236 = vcombine.high %v2232, 0.0
        %v2237 = vcombine.low %v2209, %v2216
        %v2239 = vunpack.c.l.s4 1983009808
        %v2240 = vunpack.c.0.s8 %v2239
        %v2241 = vlaneseq
        %v2242 = vshrl.u32 %v2241, 7
        %v2243 = vsub.s32 %v2240, %v2242
        %v2244 = vrot.slane %v2237, %v2243
        %v2245 = vcombine.low %v2233, %v2234
        %v2247 = vunpack.c.l.s4 1983009808
        %v2248 = vunpack.c.0.s8 %v2247
        %v2249 = vlaneseq
        %v2250 = vshrl.u32 %v2249, 7
        %v2251 = vsub.s32 %v2248, %v2250
        %v2252 = vrot.slane %v2245, %v2251
        %v2253 = vcombine.low %v2225, %v2232
        %v2255 = vunpack.c.l.s4 1983009808
        %v2256 = vunpack.c.0.s8 %v2255
        %v2257 = vlaneseq
        %v2258 = vshrl.u32 %v2257, 7
        %v2259 = vsub.s32 %v2256, %v2258
        %v2260 = vrot.slane %v2253, %v2259
        %v2261 = vcombine.low %v2235, %v2236
        %v2263 = vunpack.c.l.s4 1983009808
        %v2264 = vunpack.c.0.s8 %v2263
        %v2265 = vlaneseq
        %v2266 = vshrl.u32 %v2265, 7
        %v2267 = vsub.s32 %v2264, %v2266
        %v2268 = vrot.slane %v2261, %v2267
        %v2269 = vcombine.low %v2244, %v2252
        %v2270 = vcombine.high %v2244, %v2252
        %v2272 = vunpack.c.l.s4 1934713408
        %v2273 = vunpack.c.0.s8 %v2272
        %v2274 = vlaneseq
        %v2275 = vshrl.u32 %v2274, 7
        %v2276 = vsub.s32 %v2273, %v2275
        %v2277 = vrot.slane %v2269, %v2276
        %v2279 = vunpack.c.l.s4 1934713408
        %v2280 = vunpack.c.0.s8 %v2279
        %v2281 = vlaneseq
        %v2282 = vshrl.u32 %v2281, 7
        %v2283 = vsub.s32 %v2280, %v2282
        %v2284 = vrot.slane %v2270, %v2283
        %v2285 = vcombine.low %v2260, %v2268
        %v2286 = vcombine.high %v2260, %v2268
        %v2288 = vunpack.c.l.s4 1934713408
        %v2289 = vunpack.c.0.s8 %v2288
        %v2290 = vlaneseq
        %v2291 = vshrl.u32 %v2290, 7
        %v2292 = vsub.s32 %v2289, %v2291
        %v2293 = vrot.slane %v2285, %v2292
        %v2295 = vunpack.c.l.s4 1934713408
        %v2296 = vunpack.c.0.s8 %v2295
        %v2297 = vlaneseq
        %v2298 = vshrl.u32 %v2297, 7
        %v2299 = vsub.s32 %v2296, %v2298
        %v2300 = vrot.slane %v2286, %v2299
        %v2301 = vcombine.low %v2277, %v2293
        %v2302 = vcombine.high %v2277, %v2293
        %v2303 = vcombine.low %v2284, %v2300
        %v2304 = vcombine.high %v2284, %v2300
        %2306 = vrot.lane.b32.xlu0 %v1094, 96
        %v2307 = vpop.permute.xlu0 %2306
        %2309 = vrot.lane.b32.xlu0 %v1094, 64
        %v2310 = vpop.permute.xlu0 %2309
        %2312 = vrot.lane.b32.xlu0 %v1094, 32
        %v2313 = vpop.permute.xlu0 %2312
        %v2315 = vcombine.low %v1094, %v2310
        %v2316 = vcombine.high %v1094, %v2310
        %v2318 = vunpack.c.l.s4 1983009808
        %v2319 = vunpack.c.0.s8 %v2318
        %v2320 = vlaneseq
        %v2321 = vshrl.u32 %v2320, 7
        %v2322 = vsub.s32 %v2319, %v2321
        %v2323 = vrot.slane %v2315, %v2322
        %v2325 = vunpack.c.l.s4 1983009808
        %v2326 = vunpack.c.0.s8 %v2325
        %v2327 = vlaneseq
        %v2328 = vshrl.u32 %v2327, 7
        %v2329 = vsub.s32 %v2326, %v2328
        %v2330 = vrot.slane %v2316, %v2329
        %v2331 = vcombine.low %v2307, %v2313
        %v2332 = vcombine.high %v2307, %v2313
        %v2334 = vunpack.c.l.s4 1983009808
        %v2335 = vunpack.c.0.s8 %v2334
        %v2336 = vlaneseq
        %v2337 = vshrl.u32 %v2336, 7
        %v2338 = vsub.s32 %v2335, %v2337
        %v2339 = vrot.slane %v2331, %v2338
        %v2341 = vunpack.c.l.s4 1983009808
        %v2342 = vunpack.c.0.s8 %v2341
        %v2343 = vlaneseq
        %v2344 = vshrl.u32 %v2343, 7
        %v2345 = vsub.s32 %v2342, %v2344
        %v2346 = vrot.slane %v2332, %v2345
        %v2347 = vcombine.low %v2323, %v2339
        %v2348 = vcombine.high %v2323, %v2339
        %v2350 = vunpack.c.l.s4 1934713408
        %v2351 = vunpack.c.0.s8 %v2350
        %v2352 = vlaneseq
        %v2353 = vshrl.u32 %v2352, 7
        %v2354 = vsub.s32 %v2351, %v2353
        %v2355 = vrot.slane %v2347, %v2354
        %v2357 = vunpack.c.l.s4 1934713408
        %v2358 = vunpack.c.0.s8 %v2357
        %v2359 = vlaneseq
        %v2360 = vshrl.u32 %v2359, 7
        %v2361 = vsub.s32 %v2358, %v2360
        %v2362 = vrot.slane %v2348, %v2361
        %v2363 = vcombine.low %v2330, %v2346
        %v2364 = vcombine.high %v2330, %v2346
        %v2366 = vunpack.c.l.s4 1934713408
        %v2367 = vunpack.c.0.s8 %v2366
        %v2368 = vlaneseq
        %v2369 = vshrl.u32 %v2368, 7
        %v2370 = vsub.s32 %v2367, %v2369
        %v2371 = vrot.slane %v2363, %v2370
        %v2373 = vunpack.c.l.s4 1934713408
        %v2374 = vunpack.c.0.s8 %v2373
        %v2375 = vlaneseq
        %v2376 = vshrl.u32 %v2375, 7
        %v2377 = vsub.s32 %v2374, %v2376
        %v2378 = vrot.slane %v2364, %v2377
        %v2379 = vcombine.high %v2355, 0.0
        %v2380 = vcombine.high %v2362, 0.0
        %v2381 = vcombine.high %v2371, 0.0
        %v2382 = vcombine.high %v2378, 0.0
        %v2383 = vcombine.low %v2355, %v2362
        %v2385 = vunpack.c.l.s4 1983009808
        %v2386 = vunpack.c.0.s8 %v2385
        %v2387 = vlaneseq
        %v2388 = vshrl.u32 %v2387, 7
        %v2389 = vsub.s32 %v2386, %v2388
        %v2390 = vrot.slane %v2383, %v2389
        %v2391 = vcombine.low %v2379, %v2380
        %v2393 = vunpack.c.l.s4 1983009808
        %v2394 = vunpack.c.0.s8 %v2393
        %v2395 = vlaneseq
        %v2396 = vshrl.u32 %v2395, 7
        %v2397 = vsub.s32 %v2394, %v2396
        %v2398 = vrot.slane %v2391, %v2397
        %v2399 = vcombine.low %v2371, %v2378
        %v2401 = vunpack.c.l.s4 1983009808
        %v2402 = vunpack.c.0.s8 %v2401
        %v2403 = vlaneseq
        %v2404 = vshrl.u32 %v2403, 7
        %v2405 = vsub.s32 %v2402, %v2404
        %v2406 = vrot.slane %v2399, %v2405
        %v2407 = vcombine.low %v2381, %v2382
        %v2409 = vunpack.c.l.s4 1983009808
        %v2410 = vunpack.c.0.s8 %v2409
        %v2411 = vlaneseq
        %v2412 = vshrl.u32 %v2411, 7
        %v2413 = vsub.s32 %v2410, %v2412
        %v2414 = vrot.slane %v2407, %v2413
        %v2415 = vcombine.low %v2390, %v2398
        %v2416 = vcombine.high %v2390, %v2398
        %v2418 = vunpack.c.l.s4 1934713408
        %v2419 = vunpack.c.0.s8 %v2418
        %v2420 = vlaneseq
        %v2421 = vshrl.u32 %v2420, 7
        %v2422 = vsub.s32 %v2419, %v2421
        %v2423 = vrot.slane %v2415, %v2422
        %v2425 = vunpack.c.l.s4 1934713408
        %v2426 = vunpack.c.0.s8 %v2425
        %v2427 = vlaneseq
        %v2428 = vshrl.u32 %v2427, 7
        %v2429 = vsub.s32 %v2426, %v2428
        %v2430 = vrot.slane %v2416, %v2429
        %v2431 = vcombine.low %v2406, %v2414
        %v2432 = vcombine.high %v2406, %v2414
        %v2434 = vunpack.c.l.s4 1934713408
        %v2435 = vunpack.c.0.s8 %v2434
        %v2436 = vlaneseq
        %v2437 = vshrl.u32 %v2436, 7
        %v2438 = vsub.s32 %v2435, %v2437
        %v2439 = vrot.slane %v2431, %v2438
        %v2441 = vunpack.c.l.s4 1934713408
        %v2442 = vunpack.c.0.s8 %v2441
        %v2443 = vlaneseq
        %v2444 = vshrl.u32 %v2443, 7
        %v2445 = vsub.s32 %v2442, %v2444
        %v2446 = vrot.slane %v2432, %v2445
        %v2447 = vcombine.low %v2423, %v2439
        %v2448 = vcombine.high %v2423, %v2439
        %v2449 = vcombine.low %v2430, %v2446
        %v2450 = vcombine.high %v2430, %v2446
        %2452 = vrot.lane.b32.xlu0 %v1134, 96
        %v2453 = vpop.permute.xlu0 %2452
        %2455 = vrot.lane.b32.xlu0 %v1134, 64
        %v2456 = vpop.permute.xlu0 %2455
        %2458 = vrot.lane.b32.xlu0 %v1134, 32
        %v2459 = vpop.permute.xlu0 %2458
        %v2461 = vcombine.low %v1134, %v2456
        %v2462 = vcombine.high %v1134, %v2456
        %v2464 = vunpack.c.l.s4 1983009808
        %v2465 = vunpack.c.0.s8 %v2464
        %v2466 = vlaneseq
        %v2467 = vshrl.u32 %v2466, 7
        %v2468 = vsub.s32 %v2465, %v2467
        %v2469 = vrot.slane %v2461, %v2468
        %v2471 = vunpack.c.l.s4 1983009808
        %v2472 = vunpack.c.0.s8 %v2471
        %v2473 = vlaneseq
        %v2474 = vshrl.u32 %v2473, 7
        %v2475 = vsub.s32 %v2472, %v2474
        %v2476 = vrot.slane %v2462, %v2475
        %v2477 = vcombine.low %v2453, %v2459
        %v2478 = vcombine.high %v2453, %v2459
        %v2480 = vunpack.c.l.s4 1983009808
        %v2481 = vunpack.c.0.s8 %v2480
        %v2482 = vlaneseq
        %v2483 = vshrl.u32 %v2482, 7
        %v2484 = vsub.s32 %v2481, %v2483
        %v2485 = vrot.slane %v2477, %v2484
        %v2487 = vunpack.c.l.s4 1983009808
        %v2488 = vunpack.c.0.s8 %v2487
        %v2489 = vlaneseq
        %v2490 = vshrl.u32 %v2489, 7
        %v2491 = vsub.s32 %v2488, %v2490
        %v2492 = vrot.slane %v2478, %v2491
        %v2493 = vcombine.low %v2469, %v2485
        %v2494 = vcombine.high %v2469, %v2485
        %v2496 = vunpack.c.l.s4 1934713408
        %v2497 = vunpack.c.0.s8 %v2496
        %v2498 = vlaneseq
        %v2499 = vshrl.u32 %v2498, 7
        %v2500 = vsub.s32 %v2497, %v2499
        %v2501 = vrot.slane %v2493, %v2500
        %v2503 = vunpack.c.l.s4 1934713408
        %v2504 = vunpack.c.0.s8 %v2503
        %v2505 = vlaneseq
        %v2506 = vshrl.u32 %v2505, 7
        %v2507 = vsub.s32 %v2504, %v2506
        %v2508 = vrot.slane %v2494, %v2507
        %v2509 = vcombine.low %v2476, %v2492
        %v2510 = vcombine.high %v2476, %v2492
        %v2512 = vunpack.c.l.s4 1934713408
        %v2513 = vunpack.c.0.s8 %v2512
        %v2514 = vlaneseq
        %v2515 = vshrl.u32 %v2514, 7
        %v2516 = vsub.s32 %v2513, %v2515
        %v2517 = vrot.slane %v2509, %v2516
        %v2519 = vunpack.c.l.s4 1934713408
        %v2520 = vunpack.c.0.s8 %v2519
        %v2521 = vlaneseq
        %v2522 = vshrl.u32 %v2521, 7
        %v2523 = vsub.s32 %v2520, %v2522
        %v2524 = vrot.slane %v2510, %v2523
        %v2525 = vcombine.high %v2501, 0.0
        %v2526 = vcombine.high %v2508, 0.0
        %v2527 = vcombine.high %v2517, 0.0
        %v2528 = vcombine.high %v2524, 0.0
        %v2529 = vcombine.low %v2501, %v2508
        %v2531 = vunpack.c.l.s4 1983009808
        %v2532 = vunpack.c.0.s8 %v2531
        %v2533 = vlaneseq
        %v2534 = vshrl.u32 %v2533, 7
        %v2535 = vsub.s32 %v2532, %v2534
        %v2536 = vrot.slane %v2529, %v2535
        %v2537 = vcombine.low %v2525, %v2526
        %v2539 = vunpack.c.l.s4 1983009808
        %v2540 = vunpack.c.0.s8 %v2539
        %v2541 = vlaneseq
        %v2542 = vshrl.u32 %v2541, 7
        %v2543 = vsub.s32 %v2540, %v2542
        %v2544 = vrot.slane %v2537, %v2543
        %v2545 = vcombine.low %v2517, %v2524
        %v2547 = vunpack.c.l.s4 1983009808
        %v2548 = vunpack.c.0.s8 %v2547
        %v2549 = vlaneseq
        %v2550 = vshrl.u32 %v2549, 7
        %v2551 = vsub.s32 %v2548, %v2550
        %v2552 = vrot.slane %v2545, %v2551
        %v2553 = vcombine.low %v2527, %v2528
        %v2555 = vunpack.c.l.s4 1983009808
        %v2556 = vunpack.c.0.s8 %v2555
        %v2557 = vlaneseq
        %v2558 = vshrl.u32 %v2557, 7
        %v2559 = vsub.s32 %v2556, %v2558
        %v2560 = vrot.slane %v2553, %v2559
        %v2561 = vcombine.low %v2536, %v2544
        %v2562 = vcombine.high %v2536, %v2544
        %v2564 = vunpack.c.l.s4 1934713408
        %v2565 = vunpack.c.0.s8 %v2564
        %v2566 = vlaneseq
        %v2567 = vshrl.u32 %v2566, 7
        %v2568 = vsub.s32 %v2565, %v2567
        %v2569 = vrot.slane %v2561, %v2568
        %v2571 = vunpack.c.l.s4 1934713408
        %v2572 = vunpack.c.0.s8 %v2571
        %v2573 = vlaneseq
        %v2574 = vshrl.u32 %v2573, 7
        %v2575 = vsub.s32 %v2572, %v2574
        %v2576 = vrot.slane %v2562, %v2575
        %v2577 = vcombine.low %v2552, %v2560
        %v2578 = vcombine.high %v2552, %v2560
        %v2580 = vunpack.c.l.s4 1934713408
        %v2581 = vunpack.c.0.s8 %v2580
        %v2582 = vlaneseq
        %v2583 = vshrl.u32 %v2582, 7
        %v2584 = vsub.s32 %v2581, %v2583
        %v2585 = vrot.slane %v2577, %v2584
        %v2587 = vunpack.c.l.s4 1934713408
        %v2588 = vunpack.c.0.s8 %v2587
        %v2589 = vlaneseq
        %v2590 = vshrl.u32 %v2589, 7
        %v2591 = vsub.s32 %v2588, %v2590
        %v2592 = vrot.slane %v2578, %v2591
        %v2593 = vcombine.low %v2569, %v2585
        %v2594 = vcombine.high %v2569, %v2585
        %v2595 = vcombine.low %v2576, %v2592
        %v2596 = vcombine.high %v2576, %v2592
        %v2597 = vpack.c.bf16 %v2301, %v2301
        %v2598 = vpack.c.bf16 %v2302, %v2302
        %v2599 = vpack.c.bf16 %v2303, %v2303
        %v2600 = vpack.c.bf16 %v2304, %v2304
        %v2601 = vpack.c.bf16 %v2447, %v2447
        %v2602 = vpack.c.bf16 %v2448, %v2448
        %v2603 = vpack.c.bf16 %v2449, %v2449
        %v2604 = vpack.c.bf16 %v2450, %v2450
        %v2606 = vsel %vm1583, %v2597, 0
        %v2609 = vsel %vm1583, %v2601, 0
        %2611 = vmatprep.subr.bf16.mxu0 0
        %2612 = vmatpush1.bf16.xpose.msra.mxu0 %v2609
        %2613 = vmatprep.subr.bf16.mxu0 0
        %2614 = vmatpush1.bf16.xpose.msra.mxu0 0
        %2615 = vmatprep.subr.bf16.mxu0 0
        %2616 = vmatpush1.bf16.xpose.msra.mxu0 0
        %2617 = vmatprep.subr.bf16.mxu0 0
        %2618 = vmatpush1.bf16.xpose.msra.mxu0 0
        %2619 = vmatprep.subr.bf16.mxu0 0
        %2620 = vmatpush1.bf16.xpose.msra.mxu0 0
        %2621 = vmatprep.subr.bf16.mxu0 0
        %2622 = vmatpush1.bf16.xpose.msra.mxu0 0
        %2623 = vmatprep.subr.bf16.mxu0 0
        %2624 = vmatpush1.bf16.xpose.msra.mxu0 0
        %2625 = vmatprep.subr.bf16.mxu0 0
        %2626 = vmatpush1.bf16.xpose.msra.mxu0 0
        %2627 = vmatprep.subr.bf16.mxu0 0
        %2628 = vmatpush1.bf16.xpose.msra.mxu0 0
        %2629 = vmatprep.subr.bf16.mxu0 0
        %2630 = vmatpush1.bf16.xpose.msra.mxu0 0
        %2631 = vmatprep.subr.bf16.mxu0 0
        %2632 = vmatpush1.bf16.xpose.msra.mxu0 0
        %2633 = vmatprep.subr.bf16.mxu0 0
        %2634 = vmatpush1.bf16.xpose.msra.mxu0 0
        %2635 = vmatprep.subr.bf16.mxu0 0
        %2636 = vmatpush1.bf16.xpose.msra.mxu0 0
        %2637 = vmatprep.subr.bf16.mxu0 0
        %2638 = vmatpush1.bf16.xpose.msra.mxu0 0
        %2639 = vmatprep.subr.bf16.mxu0 0
        %2640 = vmatpush1.bf16.xpose.msra.mxu0 0
        %2641 = vmatprep.subr.bf16.mxu0 0
        %2642 = vmatpush1.bf16.xpose.msra.mxu0 0
        %2643 = vmatprep.mubr.bf16.mxu0 0
        %2644 = vmatmul.mubr.bf16.gmra.mrb[0].mxu0 %v2606
        %v2645 = vpop.f32.mrb[0].mxu0
        %v2646 = vadd.f32 0.0, %v2645
        %v2647 = vpop.f32.mrb[0].mxu0
        %v2648 = vpop.f32.mrb[0].mxu0
        %v2649 = vpop.f32.mrb[0].mxu0
        %2650 = vdwg.mxu0
        %v2652 = vsel %vm1583, %v2598, 0
        %v2655 = vsel %vm1583, %v2602, 0
        %2657 = vmatprep.subr.bf16.mxu0 0
        %2658 = vmatpush1.bf16.xpose.msra.mxu0 %v2655
        %2659 = vmatprep.subr.bf16.mxu0 0
        %2660 = vmatpush1.bf16.xpose.msra.mxu0 0
        %2661 = vmatprep.subr.bf16.mxu0 0
        %2662 = vmatpush1.bf16.xpose.msra.mxu0 0
        %2663 = vmatprep.subr.bf16.mxu0 0
        %2664 = vmatpush1.bf16.xpose.msra.mxu0 0
        %2665 = vmatprep.subr.bf16.mxu0 0
        %2666 = vmatpush1.bf16.xpose.msra.mxu0 0
        %2667 = vmatprep.subr.bf16.mxu0 0
        %2668 = vmatpush1.bf16.xpose.msra.mxu0 0
        %2669 = vmatprep.subr.bf16.mxu0 0
        %2670 = vmatpush1.bf16.xpose.msra.mxu0 0
        %2671 = vmatprep.subr.bf16.mxu0 0
        %2672 = vmatpush1.bf16.xpose.msra.mxu0 0
        %2673 = vmatprep.subr.bf16.mxu0 0
        %2674 = vmatpush1.bf16.xpose.msra.mxu0 0
        %2675 = vmatprep.subr.bf16.mxu0 0
        %2676 = vmatpush1.bf16.xpose.msra.mxu0 0
        %2677 = vmatprep.subr.bf16.mxu0 0
        %2678 = vmatpush1.bf16.xpose.msra.mxu0 0
        %2679 = vmatprep.subr.bf16.mxu0 0
        %2680 = vmatpush1.bf16.xpose.msra.mxu0 0
        %2681 = vmatprep.subr.bf16.mxu0 0
        %2682 = vmatpush1.bf16.xpose.msra.mxu0 0
        %2683 = vmatprep.subr.bf16.mxu0 0
        %2684 = vmatpush1.bf16.xpose.msra.mxu0 0
        %2685 = vmatprep.subr.bf16.mxu0 0
        %2686 = vmatpush1.bf16.xpose.msra.mxu0 0
        %2687 = vmatprep.subr.bf16.mxu0 0
        %2688 = vmatpush1.bf16.xpose.msra.mxu0 0
        %2689 = vmatprep.mubr.bf16.mxu0 0
        %2690 = vmatmul.mubr.bf16.gmra.mrb[0].mxu0 %v2652
        %v2691 = vpop.f32.mrb[0].mxu0
        %v2692 = vadd.f32 0.0, %v2691
        %v2693 = vpop.f32.mrb[0].mxu0
        %v2694 = vpop.f32.mrb[0].mxu0
        %v2695 = vpop.f32.mrb[0].mxu0
        %2696 = vdwg.mxu0
        %v2698 = vsel %vm1583, %v2599, 0
        %v2701 = vsel %vm1583, %v2603, 0
        %2703 = vmatprep.subr.bf16.mxu0 0
        %2704 = vmatpush1.bf16.xpose.msra.mxu0 %v2701
        %2705 = vmatprep.subr.bf16.mxu0 0
        %2706 = vmatpush1.bf16.xpose.msra.mxu0 0
        %2707 = vmatprep.subr.bf16.mxu0 0
        %2708 = vmatpush1.bf16.xpose.msra.mxu0 0
        %2709 = vmatprep.subr.bf16.mxu0 0
        %2710 = vmatpush1.bf16.xpose.msra.mxu0 0
        %2711 = vmatprep.subr.bf16.mxu0 0
        %2712 = vmatpush1.bf16.xpose.msra.mxu0 0
        %2713 = vmatprep.subr.bf16.mxu0 0
        %2714 = vmatpush1.bf16.xpose.msra.mxu0 0
        %2715 = vmatprep.subr.bf16.mxu0 0
        %2716 = vmatpush1.bf16.xpose.msra.mxu0 0
        %2717 = vmatprep.subr.bf16.mxu0 0
        %2718 = vmatpush1.bf16.xpose.msra.mxu0 0
        %2719 = vmatprep.subr.bf16.mxu0 0
        %2720 = vmatpush1.bf16.xpose.msra.mxu0 0
        %2721 = vmatprep.subr.bf16.mxu0 0
        %2722 = vmatpush1.bf16.xpose.msra.mxu0 0
        %2723 = vmatprep.subr.bf16.mxu0 0
        %2724 = vmatpush1.bf16.xpose.msra.mxu0 0
        %2725 = vmatprep.subr.bf16.mxu0 0
        %2726 = vmatpush1.bf16.xpose.msra.mxu0 0
        %2727 = vmatprep.subr.bf16.mxu0 0
        %2728 = vmatpush1.bf16.xpose.msra.mxu0 0
        %2729 = vmatprep.subr.bf16.mxu0 0
        %2730 = vmatpush1.bf16.xpose.msra.mxu0 0
        %2731 = vmatprep.subr.bf16.mxu0 0
        %2732 = vmatpush1.bf16.xpose.msra.mxu0 0
        %2733 = vmatprep.subr.bf16.mxu0 0
        %2734 = vmatpush1.bf16.xpose.msra.mxu0 0
        %2735 = vmatprep.mubr.bf16.mxu0 0
        %2736 = vmatmul.mubr.bf16.gmra.mrb[0].mxu0 %v2698
        %v2737 = vpop.f32.mrb[0].mxu0
        %v2738 = vadd.f32 0.0, %v2737
        %v2739 = vpop.f32.mrb[0].mxu0
        %v2740 = vpop.f32.mrb[0].mxu0
        %v2741 = vpop.f32.mrb[0].mxu0
        %2742 = vdwg.mxu0
        %v2744 = vsel %vm1583, %v2600, 0
        %v2747 = vsel %vm1583, %v2604, 0
        %2749 = vmatprep.subr.bf16.mxu0 0
        %2750 = vmatpush1.bf16.xpose.msra.mxu0 %v2747
        %2751 = vmatprep.subr.bf16.mxu0 0
        %2752 = vmatpush1.bf16.xpose.msra.mxu0 0
        %2753 = vmatprep.subr.bf16.mxu0 0
        %2754 = vmatpush1.bf16.xpose.msra.mxu0 0
        %2755 = vmatprep.subr.bf16.mxu0 0
        %2756 = vmatpush1.bf16.xpose.msra.mxu0 0
        %2757 = vmatprep.subr.bf16.mxu0 0
        %2758 = vmatpush1.bf16.xpose.msra.mxu0 0
        %2759 = vmatprep.subr.bf16.mxu0 0
        %2760 = vmatpush1.bf16.xpose.msra.mxu0 0
        %2761 = vmatprep.subr.bf16.mxu0 0
        %2762 = vmatpush1.bf16.xpose.msra.mxu0 0
        %2763 = vmatprep.subr.bf16.mxu0 0
        %2764 = vmatpush1.bf16.xpose.msra.mxu0 0
        %2765 = vmatprep.subr.bf16.mxu0 0
        %2766 = vmatpush1.bf16.xpose.msra.mxu0 0
        %2767 = vmatprep.subr.bf16.mxu0 0
        %2768 = vmatpush1.bf16.xpose.msra.mxu0 0
        %2769 = vmatprep.subr.bf16.mxu0 0
        %2770 = vmatpush1.bf16.xpose.msra.mxu0 0
        %2771 = vmatprep.subr.bf16.mxu0 0
        %2772 = vmatpush1.bf16.xpose.msra.mxu0 0
        %2773 = vmatprep.subr.bf16.mxu0 0
        %2774 = vmatpush1.bf16.xpose.msra.mxu0 0
        %2775 = vmatprep.subr.bf16.mxu0 0
        %2776 = vmatpush1.bf16.xpose.msra.mxu0 0
        %2777 = vmatprep.subr.bf16.mxu0 0
        %2778 = vmatpush1.bf16.xpose.msra.mxu0 0
        %2779 = vmatprep.subr.bf16.mxu0 0
        %2780 = vmatpush1.bf16.xpose.msra.mxu0 0
        %2781 = vmatprep.mubr.bf16.mxu0 0
        %2782 = vmatmul.mubr.bf16.gmra.mrb[0].mxu0 %v2744
        %v2783 = vpop.f32.mrb[0].mxu0
        %v2784 = vadd.f32 0.0, %v2783
        %v2785 = vpop.f32.mrb[0].mxu0
        %v2786 = vpop.f32.mrb[0].mxu0
        %v2787 = vpop.f32.mrb[0].mxu0
        %2788 = vdwg.mxu0
        %v2789 = vsel %vm1768, %v2646, -inf
        %2790 = vmax.xlane.f32.xlu0 %v2789
        %v2791 = vpop.xlane.xlu0 %2790
        %v2792 = vsel %vm1768, %v2692, -inf
        %2793 = vmax.xlane.f32.xlu0 %v2792
        %v2794 = vpop.xlane.xlu0 %2793
        %v2795 = vsel %vm1768, %v2738, -inf
        %2796 = vmax.xlane.f32.xlu0 %v2795
        %v2797 = vpop.xlane.xlu0 %2796
        %v2798 = vsel %vm1768, %v2784, -inf
        %2799 = vmax.xlane.f32.xlu0 %v2798
        %v2800 = vpop.xlane.xlu0 %2799
        %v2801 = vsub.f32 %v2646, %v2791
        %v2802 = vsub.f32 %v2692, %v2794
        %v2803 = vsub.f32 %v2738, %v2797
        %v2804 = vsub.f32 %v2784, %v2800
        %v2805 = vmul.f32 %v2801, 1.442695
        %v2806 = vpow.pop %v2805
        %v2807 = vmul.f32 %v2802, 1.442695
        %v2808 = vpow.pop %v2807
        %v2809 = vmul.f32 %v2803, 1.442695
        %v2810 = vpow.pop %v2809
        %v2811 = vmul.f32 %v2804, 1.442695
        %v2812 = vpow.pop %v2811
        %v2813 = vsel %vm1768, %v2806, 0.0
        %2814 = vadd.xlane.f32.xlu0 %v2813
        %v2815 = vpop.xlane.xlu0 %2814
        %v2816 = vsel %vm1768, %v2808, 0.0
        %2817 = vadd.xlane.f32.xlu0 %v2816
        %v2818 = vpop.xlane.xlu0 %2817
        %v2819 = vsel %vm1768, %v2810, 0.0
        %2820 = vadd.xlane.f32.xlu0 %v2819
        %v2821 = vpop.xlane.xlu0 %2820
        %v2822 = vsel %vm1768, %v2812, 0.0
        %2823 = vadd.xlane.f32.xlu0 %v2822
        %v2824 = vpop.xlane.xlu0 %2823
        %v2825 = vrcp.pop %v2815
        %v2826 = vrcp.pop %v2818
        %v2827 = vrcp.pop %v2821
        %v2828 = vrcp.pop %v2824
        %v2829 = vmul.f32 %v2806, %v2825
        %v2830 = vmul.f32 %v2808, %v2826
        %v2831 = vmul.f32 %v2810, %v2827
        %v2832 = vmul.f32 %v2812, %v2828
        %v2833 = vpack.c.bf16 %v2829, %v2829
        %v2834 = vpack.c.bf16 %v2830, %v2830
        %v2835 = vpack.c.bf16 %v2831, %v2831
        %v2836 = vpack.c.bf16 %v2832, %v2832
        %v2837 = vpack.c.bf16 %v2593, %v2593
        %v2838 = vpack.c.bf16 %v2594, %v2594
        %v2839 = vpack.c.bf16 %v2595, %v2595
        %v2840 = vpack.c.bf16 %v2596, %v2596
        %v2842 = vsel %vm1768, %v2833, 0
        %v2845 = vsel %vm1824, %v2837, 0
        %2847 = vmatprep.subr.bf16.mxu0 0
        %2848 = vmatpush1.bf16.msra.mxu0 %v2845
        %2849 = vmatprep.subr.bf16.mxu0 0
        %2850 = vmatpush1.bf16.msra.mxu0 0
        %2851 = vmatprep.subr.bf16.mxu0 0
        %2852 = vmatpush1.bf16.msra.mxu0 0
        %2853 = vmatprep.subr.bf16.mxu0 0
        %2854 = vmatpush1.bf16.msra.mxu0 0
        %2855 = vmatprep.subr.bf16.mxu0 0
        %2856 = vmatpush1.bf16.msra.mxu0 0
        %2857 = vmatprep.subr.bf16.mxu0 0
        %2858 = vmatpush1.bf16.msra.mxu0 0
        %2859 = vmatprep.subr.bf16.mxu0 0
        %2860 = vmatpush1.bf16.msra.mxu0 0
        %2861 = vmatprep.subr.bf16.mxu0 0
        %2862 = vmatpush1.bf16.msra.mxu0 0
        %2863 = vmatprep.subr.bf16.mxu0 0
        %2864 = vmatpush1.bf16.msra.mxu0 0
        %2865 = vmatprep.subr.bf16.mxu0 0
        %2866 = vmatpush1.bf16.msra.mxu0 0
        %2867 = vmatprep.subr.bf16.mxu0 0
        %2868 = vmatpush1.bf16.msra.mxu0 0
        %2869 = vmatprep.subr.bf16.mxu0 0
        %2870 = vmatpush1.bf16.msra.mxu0 0
        %2871 = vmatprep.subr.bf16.mxu0 0
        %2872 = vmatpush1.bf16.msra.mxu0 0
        %2873 = vmatprep.subr.bf16.mxu0 0
        %2874 = vmatpush1.bf16.msra.mxu0 0
        %2875 = vmatprep.subr.bf16.mxu0 0
        %2876 = vmatpush1.bf16.msra.mxu0 0
        %2877 = vmatprep.subr.bf16.mxu0 0
        %2878 = vmatpush1.bf16.msra.mxu0 0
        %2879 = vmatprep.mubr.bf16.mxu0 0
        %2880 = vmatmul.mubr.bf16.gmra.mrb[0].mxu0 %v2842
        %v2881 = vpop.f32.mrb[0].mxu0
        %v2882 = vadd.f32 0.0, %v2881
        %v2883 = vpop.f32.mrb[0].mxu0
        %v2884 = vpop.f32.mrb[0].mxu0
        %v2885 = vpop.f32.mrb[0].mxu0
        %2886 = vdwg.mxu0
        %v2888 = vsel %vm1768, %v2834, 0
        %v2891 = vsel %vm1824, %v2838, 0
        %2893 = vmatprep.subr.bf16.mxu0 0
        %2894 = vmatpush1.bf16.msra.mxu0 %v2891
        %2895 = vmatprep.subr.bf16.mxu0 0
        %2896 = vmatpush1.bf16.msra.mxu0 0
        %2897 = vmatprep.subr.bf16.mxu0 0
        %2898 = vmatpush1.bf16.msra.mxu0 0
        %2899 = vmatprep.subr.bf16.mxu0 0
        %2900 = vmatpush1.bf16.msra.mxu0 0
        %2901 = vmatprep.subr.bf16.mxu0 0
        %2902 = vmatpush1.bf16.msra.mxu0 0
        %2903 = vmatprep.subr.bf16.mxu0 0
        %2904 = vmatpush1.bf16.msra.mxu0 0
        %2905 = vmatprep.subr.bf16.mxu0 0
        %2906 = vmatpush1.bf16.msra.mxu0 0
        %2907 = vmatprep.subr.bf16.mxu0 0
        %2908 = vmatpush1.bf16.msra.mxu0 0
        %2909 = vmatprep.subr.bf16.mxu0 0
        %2910 = vmatpush1.bf16.msra.mxu0 0
        %2911 = vmatprep.subr.bf16.mxu0 0
        %2912 = vmatpush1.bf16.msra.mxu0 0
        %2913 = vmatprep.subr.bf16.mxu0 0
        %2914 = vmatpush1.bf16.msra.mxu0 0
        %2915 = vmatprep.subr.bf16.mxu0 0
        %2916 = vmatpush1.bf16.msra.mxu0 0
        %2917 = vmatprep.subr.bf16.mxu0 0
        %2918 = vmatpush1.bf16.msra.mxu0 0
        %2919 = vmatprep.subr.bf16.mxu0 0
        %2920 = vmatpush1.bf16.msra.mxu0 0
        %2921 = vmatprep.subr.bf16.mxu0 0
        %2922 = vmatpush1.bf16.msra.mxu0 0
        %2923 = vmatprep.subr.bf16.mxu0 0
        %2924 = vmatpush1.bf16.msra.mxu0 0
        %2925 = vmatprep.mubr.bf16.mxu0 0
        %2926 = vmatmul.mubr.bf16.gmra.mrb[0].mxu0 %v2888
        %v2927 = vpop.f32.mrb[0].mxu0
        %v2928 = vadd.f32 0.0, %v2927
        %v2929 = vpop.f32.mrb[0].mxu0
        %v2930 = vpop.f32.mrb[0].mxu0
        %v2931 = vpop.f32.mrb[0].mxu0
        %2932 = vdwg.mxu0
        %v2934 = vsel %vm1768, %v2835, 0
        %v2937 = vsel %vm1824, %v2839, 0
        %2939 = vmatprep.subr.bf16.mxu0 0
        %2940 = vmatpush1.bf16.msra.mxu0 %v2937
        %2941 = vmatprep.subr.bf16.mxu0 0
        %2942 = vmatpush1.bf16.msra.mxu0 0
        %2943 = vmatprep.subr.bf16.mxu0 0
        %2944 = vmatpush1.bf16.msra.mxu0 0
        %2945 = vmatprep.subr.bf16.mxu0 0
        %2946 = vmatpush1.bf16.msra.mxu0 0
        %2947 = vmatprep.subr.bf16.mxu0 0
        %2948 = vmatpush1.bf16.msra.mxu0 0
        %2949 = vmatprep.subr.bf16.mxu0 0
        %2950 = vmatpush1.bf16.msra.mxu0 0
        %2951 = vmatprep.subr.bf16.mxu0 0
        %2952 = vmatpush1.bf16.msra.mxu0 0
        %2953 = vmatprep.subr.bf16.mxu0 0
        %2954 = vmatpush1.bf16.msra.mxu0 0
        %2955 = vmatprep.subr.bf16.mxu0 0
        %2956 = vmatpush1.bf16.msra.mxu0 0
        %2957 = vmatprep.subr.bf16.mxu0 0
        %2958 = vmatpush1.bf16.msra.mxu0 0
        %2959 = vmatprep.subr.bf16.mxu0 0
        %2960 = vmatpush1.bf16.msra.mxu0 0
        %2961 = vmatprep.subr.bf16.mxu0 0
        %2962 = vmatpush1.bf16.msra.mxu0 0
        %2963 = vmatprep.subr.bf16.mxu0 0
        %2964 = vmatpush1.bf16.msra.mxu0 0
        %2965 = vmatprep.subr.bf16.mxu0 0
        %2966 = vmatpush1.bf16.msra.mxu0 0
        %2967 = vmatprep.subr.bf16.mxu0 0
        %2968 = vmatpush1.bf16.msra.mxu0 0
        %2969 = vmatprep.subr.bf16.mxu0 0
        %2970 = vmatpush1.bf16.msra.mxu0 0
        %2971 = vmatprep.mubr.bf16.mxu0 0
        %2972 = vmatmul.mubr.bf16.gmra.mrb[0].mxu0 %v2934
        %v2973 = vpop.f32.mrb[0].mxu0
        %v2974 = vadd.f32 0.0, %v2973
        %v2975 = vpop.f32.mrb[0].mxu0
        %v2976 = vpop.f32.mrb[0].mxu0
        %v2977 = vpop.f32.mrb[0].mxu0
        %2978 = vdwg.mxu0
        %v2980 = vsel %vm1768, %v2836, 0
        %v2983 = vsel %vm1824, %v2840, 0
        %2985 = vmatprep.subr.bf16.mxu0 0
        %2986 = vmatpush1.bf16.msra.mxu0 %v2983
        %2987 = vmatprep.subr.bf16.mxu0 0
        %2988 = vmatpush1.bf16.msra.mxu0 0
        %2989 = vmatprep.subr.bf16.mxu0 0
        %2990 = vmatpush1.bf16.msra.mxu0 0
        %2991 = vmatprep.subr.bf16.mxu0 0
        %2992 = vmatpush1.bf16.msra.mxu0 0
        %2993 = vmatprep.subr.bf16.mxu0 0
        %2994 = vmatpush1.bf16.msra.mxu0 0
        %2995 = vmatprep.subr.bf16.mxu0 0
        %2996 = vmatpush1.bf16.msra.mxu0 0
        %2997 = vmatprep.subr.bf16.mxu0 0
        %2998 = vmatpush1.bf16.msra.mxu0 0
        %2999 = vmatprep.subr.bf16.mxu0 0
        %3000 = vmatpush1.bf16.msra.mxu0 0
        %3001 = vmatprep.subr.bf16.mxu0 0
        %3002 = vmatpush1.bf16.msra.mxu0 0
        %3003 = vmatprep.subr.bf16.mxu0 0
        %3004 = vmatpush1.bf16.msra.mxu0 0
        %3005 = vmatprep.subr.bf16.mxu0 0
        %3006 = vmatpush1.bf16.msra.mxu0 0
        %3007 = vmatprep.subr.bf16.mxu0 0
        %3008 = vmatpush1.bf16.msra.mxu0 0
        %3009 = vmatprep.subr.bf16.mxu0 0
        %3010 = vmatpush1.bf16.msra.mxu0 0
        %3011 = vmatprep.subr.bf16.mxu0 0
        %3012 = vmatpush1.bf16.msra.mxu0 0
        %3013 = vmatprep.subr.bf16.mxu0 0
        %3014 = vmatpush1.bf16.msra.mxu0 0
        %3015 = vmatprep.subr.bf16.mxu0 0
        %3016 = vmatpush1.bf16.msra.mxu0 0
        %3017 = vmatprep.mubr.bf16.mxu0 0
        %3018 = vmatmul.mubr.bf16.gmra.mrb[0].mxu0 %v2980
        %v3019 = vpop.f32.mrb[0].mxu0
        %v3020 = vadd.f32 0.0, %v3019
        %v3021 = vpop.f32.mrb[0].mxu0
        %v3022 = vpop.f32.mrb[0].mxu0
        %v3023 = vpop.f32.mrb[0].mxu0
        %3024 = vdwg.mxu0
        %v3025 = vcombine.low %v2882, %v2974
        %v3026 = vcombine.high %v2882, %v2974
        %v3028 = vunpack.c.l.s4 1983009808
        %v3029 = vunpack.c.0.s8 %v3028
        %v3030 = vlaneseq
        %v3031 = vshrl.u32 %v3030, 7
        %v3032 = vsub.s32 %v3029, %v3031
        %v3033 = vrot.slane %v3025, %v3032
        %v3035 = vunpack.c.l.s4 1983009808
        %v3036 = vunpack.c.0.s8 %v3035
        %v3037 = vlaneseq
        %v3038 = vshrl.u32 %v3037, 7
        %v3039 = vsub.s32 %v3036, %v3038
        %v3040 = vrot.slane %v3026, %v3039
        %v3041 = vcombine.low %v2928, %v3020
        %v3042 = vcombine.high %v2928, %v3020
        %v3044 = vunpack.c.l.s4 1983009808
        %v3045 = vunpack.c.0.s8 %v3044
        %v3046 = vlaneseq
        %v3047 = vshrl.u32 %v3046, 7
        %v3048 = vsub.s32 %v3045, %v3047
        %v3049 = vrot.slane %v3041, %v3048
        %v3051 = vunpack.c.l.s4 1983009808
        %v3052 = vunpack.c.0.s8 %v3051
        %v3053 = vlaneseq
        %v3054 = vshrl.u32 %v3053, 7
        %v3055 = vsub.s32 %v3052, %v3054
        %v3056 = vrot.slane %v3042, %v3055
        %v3057 = vcombine.low %v3033, %v3049
        %v3058 = vcombine.high %v3033, %v3049
        %v3060 = vunpack.c.l.s4 1934713408
        %v3061 = vunpack.c.0.s8 %v3060
        %v3062 = vlaneseq
        %v3063 = vshrl.u32 %v3062, 7
        %v3064 = vsub.s32 %v3061, %v3063
        %v3065 = vrot.slane %v3057, %v3064
        %v3067 = vunpack.c.l.s4 1934713408
        %v3068 = vunpack.c.0.s8 %v3067
        %v3069 = vlaneseq
        %v3070 = vshrl.u32 %v3069, 7
        %v3071 = vsub.s32 %v3068, %v3070
        %v3072 = vrot.slane %v3058, %v3071
        %v3073 = vcombine.low %v3040, %v3056
        %v3074 = vcombine.high %v3040, %v3056
        %v3076 = vunpack.c.l.s4 1934713408
        %v3077 = vunpack.c.0.s8 %v3076
        %v3078 = vlaneseq
        %v3079 = vshrl.u32 %v3078, 7
        %v3080 = vsub.s32 %v3077, %v3079
        %v3081 = vrot.slane %v3073, %v3080
        %v3083 = vunpack.c.l.s4 1934713408
        %v3084 = vunpack.c.0.s8 %v3083
        %v3085 = vlaneseq
        %v3086 = vshrl.u32 %v3085, 7
        %v3087 = vsub.s32 %v3084, %v3086
        %v3088 = vrot.slane %v3074, %v3087
        %v3089 = vcombine.high %v3065, 0.0
        %v3090 = vcombine.high %v3072, 0.0
        %v3091 = vcombine.high %v3081, 0.0
        %v3092 = vcombine.high %v3088, 0.0
        %v3093 = vcombine.low %v3065, %v3072
        %v3095 = vunpack.c.l.s4 1983009808
        %v3096 = vunpack.c.0.s8 %v3095
        %v3097 = vlaneseq
        %v3098 = vshrl.u32 %v3097, 7
        %v3099 = vsub.s32 %v3096, %v3098
        %v3100 = vrot.slane %v3093, %v3099
        %v3101 = vcombine.low %v3089, %v3090
        %v3103 = vunpack.c.l.s4 1983009808
        %v3104 = vunpack.c.0.s8 %v3103
        %v3105 = vlaneseq
        %v3106 = vshrl.u32 %v3105, 7
        %v3107 = vsub.s32 %v3104, %v3106
        %v3108 = vrot.slane %v3101, %v3107
        %v3109 = vcombine.low %v3081, %v3088
        %v3111 = vunpack.c.l.s4 1983009808
        %v3112 = vunpack.c.0.s8 %v3111
        %v3113 = vlaneseq
        %v3114 = vshrl.u32 %v3113, 7
        %v3115 = vsub.s32 %v3112, %v3114
        %v3116 = vrot.slane %v3109, %v3115
        %v3117 = vcombine.low %v3091, %v3092
        %v3119 = vunpack.c.l.s4 1983009808
        %v3120 = vunpack.c.0.s8 %v3119
        %v3121 = vlaneseq
        %v3122 = vshrl.u32 %v3121, 7
        %v3123 = vsub.s32 %v3120, %v3122
        %v3124 = vrot.slane %v3117, %v3123
        %v3125 = vcombine.low %v3100, %v3108
        %v3126 = vcombine.high %v3100, %v3108
        %v3128 = vunpack.c.l.s4 1934713408
        %v3129 = vunpack.c.0.s8 %v3128
        %v3130 = vlaneseq
        %v3131 = vshrl.u32 %v3130, 7
        %v3132 = vsub.s32 %v3129, %v3131
        %v3133 = vrot.slane %v3125, %v3132
        %v3135 = vunpack.c.l.s4 1934713408
        %v3136 = vunpack.c.0.s8 %v3135
        %v3137 = vlaneseq
        %v3138 = vshrl.u32 %v3137, 7
        %v3139 = vsub.s32 %v3136, %v3138
        %v3140 = vrot.slane %v3126, %v3139
        %v3141 = vcombine.low %v3116, %v3124
        %v3142 = vcombine.high %v3116, %v3124
        %v3144 = vunpack.c.l.s4 1934713408
        %v3145 = vunpack.c.0.s8 %v3144
        %v3146 = vlaneseq
        %v3147 = vshrl.u32 %v3146, 7
        %v3148 = vsub.s32 %v3145, %v3147
        %v3149 = vrot.slane %v3141, %v3148
        %v3151 = vunpack.c.l.s4 1934713408
        %v3152 = vunpack.c.0.s8 %v3151
        %v3153 = vlaneseq
        %v3154 = vshrl.u32 %v3153, 7
        %v3155 = vsub.s32 %v3152, %v3154
        %v3156 = vrot.slane %v3142, %v3155
        %v3157 = vcombine.low %v3133, %v3149
        %v3158 = vcombine.high %v3133, %v3149
        %v3159 = vcombine.low %v3140, %v3156
        %v3160 = vcombine.high %v3140, %v3156
        %3162 = vrot.lane.b32.xlu0 %v3158, 32
        %v3163 = vpop.permute.xlu0 %3162
        %3166 = vrot.lane.b32.xlu0 %v3159, 64
        %v3167 = vpop.permute.xlu0 %3166
        %3170 = vrot.lane.b32.xlu0 %v3160, 96
        %v3171 = vpop.permute.xlu0 %3170
        %v3173 = vsel %vm1583, %v3157, %v3163
        %v3174 = vsel %vm2155, %v3173, %v3167
        %v3175 = vsel %vm2157, %v3174, %v3171
        %v3176 = vpack.c.bf16 %v3175, %v2158
        %v3177 = vld [vmem:[%s730] sm:$0xf]
        %v3178 = vld [vmem:[%s730 + $0x4] sm:$0xf]
        %v3179 = vld [vmem:[%s730 + $0x8] sm:$0xf]
        %v3180 = vld [vmem:[%s730 + $0xc] sm:$0xf]
        %v3181 = vld [vmem:[%s730 + $0x10] sm:$0xf]
        %v3182 = vld [vmem:[%s730 + $0x14] sm:$0xf]
        %v3183 = vld [vmem:[%s730 + $0x18] sm:$0xf]
        %v3184 = vld [vmem:[%s730 + $0x1c] sm:$0xf]
        %v3185 = vld [vmem:[%s730 + $0x20] sm:$0xf]
        %v3186 = vld [vmem:[%s730 + $0x24] sm:$0xf]
        %v3187 = vld [vmem:[%s730 + $0x28] sm:$0xf]
        %v3188 = vld [vmem:[%s730 + $0x2c] sm:$0xf]
        %v3189 = vld [vmem:[%s730 + $0x30] sm:$0xf]
        %v3190 = vld [vmem:[%s730 + $0x34] sm:$0xf]
        %v3191 = vld [vmem:[%s730 + $0x38] sm:$0xf]
        %v3192 = vld [vmem:[%s730 + $0x3c] sm:$0xf]
        %v3193 = vld [vmem:[%s843] sm:$0x1]
        %v3195 = vlaneseq
        %v3196 = vshrl.u32 %v3195, 7
        %v3197 = vsub.s32 0, %v3196
        %v3198 = vrot.slane %v3193, %v3197
        %v3216 = vunpack.c.l.b16 %v3177
        %v3217 = vunpack.c.l.b16 %v3178
        %v3218 = vunpack.c.l.b16 %v3179
        %v3219 = vunpack.c.l.b16 %v3180
        %v3220 = vunpack.c.l.b16 %v3181
        %v3221 = vunpack.c.l.b16 %v3182
        %v3222 = vunpack.c.l.b16 %v3183
        %v3223 = vunpack.c.l.b16 %v3184
        %v3224 = vunpack.c.l.b16 %v3185
        %v3225 = vunpack.c.l.b16 %v3186
        %v3226 = vunpack.c.l.b16 %v3187
        %v3227 = vunpack.c.l.b16 %v3188
        %v3228 = vunpack.c.l.b16 %v3189
        %v3229 = vunpack.c.l.b16 %v3190
        %v3230 = vunpack.c.l.b16 %v3191
        %v3231 = vunpack.c.l.b16 %v3192
        %v3232 = vpack.c.b16 %v3217, %v3216
        %v3233 = vpack.c.b16 %v3219, %v3218
        %v3234 = vpack.c.b16 %v3221, %v3220
        %v3235 = vpack.c.b16 %v3223, %v3222
        %v3236 = vpack.c.b16 %v3225, %v3224
        %v3237 = vpack.c.b16 %v3227, %v3226
        %v3238 = vpack.c.b16 %v3229, %v3228
        %v3239 = vpack.c.b16 %v3231, %v3230
        %3248 = vmatprep.subr.bf16.mxu0 0
        %3249 = vmatpush1.bf16.msra.mxu0 %v3232
        %3250 = vmatprep.subr.bf16.mxu0 0
        %3251 = vmatpush1.bf16.msra.mxu0 %v3233
        %3252 = vmatprep.subr.bf16.mxu0 0
        %3253 = vmatpush1.bf16.msra.mxu0 %v3234
        %3254 = vmatprep.subr.bf16.mxu0 0
        %3255 = vmatpush1.bf16.msra.mxu0 %v3235
        %3256 = vmatprep.subr.bf16.mxu0 0
        %3257 = vmatpush1.bf16.msra.mxu0 %v3236
        %3258 = vmatprep.subr.bf16.mxu0 0
        %3259 = vmatpush1.bf16.msra.mxu0 %v3237
        %3260 = vmatprep.subr.bf16.mxu0 0
        %3261 = vmatpush1.bf16.msra.mxu0 %v3238
        %3262 = vmatprep.subr.bf16.mxu0 0
        %3263 = vmatpush1.bf16.msra.mxu0 %v3239
        %3264 = vmatprep.subr.bf16.mxu0 0
        %3265 = vmatpush1.bf16.msra.mxu0 0
        %3266 = vmatprep.subr.bf16.mxu0 0
        %3267 = vmatpush1.bf16.msra.mxu0 0
        %3268 = vmatprep.subr.bf16.mxu0 0
        %3269 = vmatpush1.bf16.msra.mxu0 0
        %3270 = vmatprep.subr.bf16.mxu0 0
        %3271 = vmatpush1.bf16.msra.mxu0 0
        %3272 = vmatprep.subr.bf16.mxu0 0
        %3273 = vmatpush1.bf16.msra.mxu0 0
        %3274 = vmatprep.subr.bf16.mxu0 0
        %3275 = vmatpush1.bf16.msra.mxu0 0
        %3276 = vmatprep.subr.bf16.mxu0 0
        %3277 = vmatpush1.bf16.msra.mxu0 0
        %3278 = vmatprep.subr.bf16.mxu0 0
        %3279 = vmatpush1.bf16.msra.mxu0 0
        %3280 = vmatprep.mubr.bf16.mxu0 0
        %3281 = vmatmul.mubr.bf16.gmra.mrb[0].mxu0 %v3176
        %v3282 = vpop.f32.mrb[0].mxu0
        %v3283 = vadd.f32 %v3198, %v3282
        %v3284 = vpop.f32.mrb[0].mxu0
        %v3285 = vpop.f32.mrb[0].mxu0
        %v3286 = vadd.f32 %v3198, %v3285
        %v3287 = vpop.f32.mrb[0].mxu0
        %3288 = vdwg.mxu0
        %v3289 = vadd.f32 %v873, %v3283
        %v3290 = vadd.f32 %v874, %v3286
        %v3291 = vld [vmem:[%s853] sm:$0x1]
        %v3292 = vld [vmem:[%s856] sm:$0x1]
        %3293 = vadd.xlane.f32.xlu0 %v3289
        %v3294 = vpop.xlane.xlu0 %3293
        %3295 = vadd.xlane.f32.xlu0 %v3290
        %v3296 = vpop.xlane.xlu0 %3295
        %v3297 = vrcp.pop 128.0
        %v3298 = vmul.f32 %v3294, %v3297
        %v3299 = vmul.f32 %v3296, %v3297
        %v3300 = vsub.f32 %v3289, %v3298
        %v3301 = vsub.f32 %v3290, %v3299
        %v3302 = vmul.f32 %v3300, %v3300
        %v3303 = vmul.f32 %v3301, %v3301
        %3304 = vadd.xlane.f32.xlu0 %v3302
        %v3305 = vpop.xlane.xlu0 %3304
        %3306 = vadd.xlane.f32.xlu0 %v3303
        %v3307 = vpop.xlane.xlu0 %3306
        %v3308 = vmul.f32 %v3305, %v3297
        %v3309 = vmul.f32 %v3307, %v3297
        %v3310 = vadd.f32 %v3308, 1e-05
        %v3311 = vadd.f32 %v3309, 1e-05
        %v3312 = vrsqrt.pop %v3310
        %v3313 = vrsqrt.pop %v3311
        %v3314 = vmul.f32 %v3300, %v3312
        %v3315 = vmul.f32 %v3301, %v3313
        %v3317 = vlaneseq
        %v3318 = vshrl.u32 %v3317, 7
        %v3319 = vsub.s32 0, %v3318
        %v3320 = vrot.slane %v3291, %v3319
        %v3322 = vmul.f32 %v3314, %v3320
        %v3323 = vmul.f32 %v3315, %v3320
        %v3325 = vlaneseq
        %v3326 = vshrl.u32 %v3325, 7
        %v3327 = vsub.s32 0, %v3326
        %v3328 = vrot.slane %v3292, %v3327
        %v3330 = vadd.f32 %v3322, %v3328
        %v3331 = vadd.f32 %v3323, %v3328
        %v3332 = vpack.c.bf16 %v3331, %v3330
        %v3333 = vld [vmem:[%s739] sm:$0xff]
        %v3334 = vld [vmem:[%s739 + $0x8] sm:$0xff]
        %v3335 = vld [vmem:[%s739 + $0x10] sm:$0xff]
        %v3336 = vld [vmem:[%s739 + $0x18] sm:$0xff]
        %v3337 = vld [vmem:[%s739 + $0x20] sm:$0xff]
        %v3338 = vld [vmem:[%s739 + $0x28] sm:$0xff]
        %v3339 = vld [vmem:[%s739 + $0x30] sm:$0xff]
        %v3340 = vld [vmem:[%s739 + $0x38] sm:$0xff]
        %v3341 = vld [vmem:[%s739 + $0x40] sm:$0xff]
        %v3342 = vld [vmem:[%s739 + $0x48] sm:$0xff]
        %v3343 = vld [vmem:[%s739 + $0x50] sm:$0xff]
        %v3344 = vld [vmem:[%s739 + $0x58] sm:$0xff]
        %v3345 = vld [vmem:[%s739 + $0x60] sm:$0xff]
        %v3346 = vld [vmem:[%s739 + $0x68] sm:$0xff]
        %v3347 = vld [vmem:[%s739 + $0x70] sm:$0xff]
        %v3348 = vld [vmem:[%s739 + $0x78] sm:$0xff]
        %v3349 = vld [vmem:[%s739 + $0x80] sm:$0xff]
        %v3350 = vld [vmem:[%s739 + $0x88] sm:$0xff]
        %v3351 = vld [vmem:[%s739 + $0x90] sm:$0xff]
        %v3352 = vld [vmem:[%s739 + $0x98] sm:$0xff]
        %v3353 = vld [vmem:[%s739 + $0xa0] sm:$0xff]
        %v3354 = vld [vmem:[%s739 + $0xa8] sm:$0xff]
        %v3355 = vld [vmem:[%s739 + $0xb0] sm:$0xff]
        %v3356 = vld [vmem:[%s739 + $0xb8] sm:$0xff]
        %v3357 = vld [vmem:[%s739 + $0xc0] sm:$0xff]
        %v3358 = vld [vmem:[%s739 + $0xc8] sm:$0xff]
        %v3359 = vld [vmem:[%s739 + $0xd0] sm:$0xff]
        %v3360 = vld [vmem:[%s739 + $0xd8] sm:$0xff]
        %v3361 = vld [vmem:[%s739 + $0xe0] sm:$0xff]
        %v3362 = vld [vmem:[%s739 + $0xe8] sm:$0xff]
        %v3363 = vld [vmem:[%s739 + $0xf0] sm:$0xff]
        %v3364 = vld [vmem:[%s739 + $0xf8] sm:$0xff]
        %v3365 = vld [vmem:[%s847] sm:$0xf]
        %v3367 = vlaneseq
        %v3368 = vshrl.u32 %v3367, 7
        %v3369 = vsub.s32 0, %v3368
        %v3370 = vrot.slane %v3365, %v3369
        %v3371 = vlaneseq
        %v3372 = vshrl.u32 %v3371, 7
        %v3373 = vsub.s32 1, %v3372
        %v3374 = vrot.slane %v3365, %v3373
        %v3375 = vlaneseq
        %v3376 = vshrl.u32 %v3375, 7
        %v3377 = vsub.s32 2, %v3376
        %v3378 = vrot.slane %v3365, %v3377
        %v3379 = vlaneseq
        %v3380 = vshrl.u32 %v3379, 7
        %v3381 = vsub.s32 3, %v3380
        %v3382 = vrot.slane %v3365, %v3381
        %v3419 = vunpack.c.l.b16 %v3333
        %v3420 = vunpack.c.h.b16 %v3333
        %v3421 = vunpack.c.l.b16 %v3334
        %v3422 = vunpack.c.h.b16 %v3334
        %v3423 = vunpack.c.l.b16 %v3335
        %v3424 = vunpack.c.h.b16 %v3335
        %v3425 = vunpack.c.l.b16 %v3336
        %v3426 = vunpack.c.h.b16 %v3336
        %v3427 = vunpack.c.l.b16 %v3337
        %v3428 = vunpack.c.h.b16 %v3337
        %v3429 = vunpack.c.l.b16 %v3338
        %v3430 = vunpack.c.h.b16 %v3338
        %v3431 = vunpack.c.l.b16 %v3339
        %v3432 = vunpack.c.h.b16 %v3339
        %v3433 = vunpack.c.l.b16 %v3340
        %v3434 = vunpack.c.h.b16 %v3340
        %v3435 = vunpack.c.l.b16 %v3341
        %v3436 = vunpack.c.h.b16 %v3341
        %v3437 = vunpack.c.l.b16 %v3342
        %v3438 = vunpack.c.h.b16 %v3342
        %v3439 = vunpack.c.l.b16 %v3343
        %v3440 = vunpack.c.h.b16 %v3343
        %v3441 = vunpack.c.l.b16 %v3344
        %v3442 = vunpack.c.h.b16 %v3344
        %v3443 = vunpack.c.l.b16 %v3345
        %v3444 = vunpack.c.h.b16 %v3345
        %v3445 = vunpack.c.l.b16 %v3346
        %v3446 = vunpack.c.h.b16 %v3346
        %v3447 = vunpack.c.l.b16 %v3347
        %v3448 = vunpack.c.h.b16 %v3347
        %v3449 = vunpack.c.l.b16 %v3348
        %v3450 = vunpack.c.h.b16 %v3348
        %v3451 = vunpack.c.l.b16 %v3349
        %v3452 = vunpack.c.h.b16 %v3349
        %v3453 = vunpack.c.l.b16 %v3350
        %v3454 = vunpack.c.h.b16 %v3350
        %v3455 = vunpack.c.l.b16 %v3351
        %v3456 = vunpack.c.h.b16 %v3351
        %v3457 = vunpack.c.l.b16 %v3352
        %v3458 = vunpack.c.h.b16 %v3352
        %v3459 = vunpack.c.l.b16 %v3353
        %v3460 = vunpack.c.h.b16 %v3353
        %v3461 = vunpack.c.l.b16 %v3354
        %v3462 = vunpack.c.h.b16 %v3354
        %v3463 = vunpack.c.l.b16 %v3355
        %v3464 = vunpack.c.h.b16 %v3355
        %v3465 = vunpack.c.l.b16 %v3356
        %v3466 = vunpack.c.h.b16 %v3356
        %v3467 = vunpack.c.l.b16 %v3357
        %v3468 = vunpack.c.h.b16 %v3357
        %v3469 = vunpack.c.l.b16 %v3358
        %v3470 = vunpack.c.h.b16 %v3358
        %v3471 = vunpack.c.l.b16 %v3359
        %v3472 = vunpack.c.h.b16 %v3359
        %v3473 = vunpack.c.l.b16 %v3360
        %v3474 = vunpack.c.h.b16 %v3360
        %v3475 = vunpack.c.l.b16 %v3361
        %v3476 = vunpack.c.h.b16 %v3361
        %v3477 = vunpack.c.l.b16 %v3362
        %v3478 = vunpack.c.h.b16 %v3362
        %v3479 = vunpack.c.l.b16 %v3363
        %v3480 = vunpack.c.h.b16 %v3363
        %v3481 = vunpack.c.l.b16 %v3364
        %v3482 = vunpack.c.h.b16 %v3364
        %v3483 = vpack.c.b16 %v3423, %v3419
        %v3484 = vpack.c.b16 %v3424, %v3420
        %v3485 = vpack.c.b16 %v3425, %v3421
        %v3486 = vpack.c.b16 %v3426, %v3422
        %v3487 = vpack.c.b16 %v3431, %v3427
        %v3488 = vpack.c.b16 %v3432, %v3428
        %v3489 = vpack.c.b16 %v3433, %v3429
        %v3490 = vpack.c.b16 %v3434, %v3430
        %v3491 = vpack.c.b16 %v3439, %v3435
        %v3492 = vpack.c.b16 %v3440, %v3436
        %v3493 = vpack.c.b16 %v3441, %v3437
        %v3494 = vpack.c.b16 %v3442, %v3438
        %v3495 = vpack.c.b16 %v3447, %v3443
        %v3496 = vpack.c.b16 %v3448, %v3444
        %v3497 = vpack.c.b16 %v3449, %v3445
        %v3498 = vpack.c.b16 %v3450, %v3446
        %v3499 = vpack.c.b16 %v3455, %v3451
        %v3500 = vpack.c.b16 %v3456, %v3452
        %v3501 = vpack.c.b16 %v3457, %v3453
        %v3502 = vpack.c.b16 %v3458, %v3454
        %v3503 = vpack.c.b16 %v3463, %v3459
        %v3504 = vpack.c.b16 %v3464, %v3460
        %v3505 = vpack.c.b16 %v3465, %v3461
        %v3506 = vpack.c.b16 %v3466, %v3462
        %v3507 = vpack.c.b16 %v3471, %v3467
        %v3508 = vpack.c.b16 %v3472, %v3468
        %v3509 = vpack.c.b16 %v3473, %v3469
        %v3510 = vpack.c.b16 %v3474, %v3470
        %v3511 = vpack.c.b16 %v3479, %v3475
        %v3512 = vpack.c.b16 %v3480, %v3476
        %v3513 = vpack.c.b16 %v3481, %v3477
        %v3514 = vpack.c.b16 %v3482, %v3478
        %3547 = vmatprep.subr.bf16.mxu0 %v3484
        %3548 = vmatpush1.bf16.msra.mxu0 %v3483
        %3549 = vmatprep.subr.bf16.mxu0 %v3488
        %3550 = vmatpush1.bf16.msra.mxu0 %v3487
        %3551 = vmatprep.subr.bf16.mxu0 %v3492
        %3552 = vmatpush1.bf16.msra.mxu0 %v3491
        %3553 = vmatprep.subr.bf16.mxu0 %v3496
        %3554 = vmatpush1.bf16.msra.mxu0 %v3495
        %3555 = vmatprep.subr.bf16.mxu0 %v3500
        %3556 = vmatpush1.bf16.msra.mxu0 %v3499
        %3557 = vmatprep.subr.bf16.mxu0 %v3504
        %3558 = vmatpush1.bf16.msra.mxu0 %v3503
        %3559 = vmatprep.subr.bf16.mxu0 %v3508
        %3560 = vmatpush1.bf16.msra.mxu0 %v3507
        %3561 = vmatprep.subr.bf16.mxu0 %v3512
        %3562 = vmatpush1.bf16.msra.mxu0 %v3511
        %3563 = vmatprep.subr.bf16.mxu0 0
        %3564 = vmatpush1.bf16.msra.mxu0 0
        %3565 = vmatprep.subr.bf16.mxu0 0
        %3566 = vmatpush1.bf16.msra.mxu0 0
        %3567 = vmatprep.subr.bf16.mxu0 0
        %3568 = vmatpush1.bf16.msra.mxu0 0
        %3569 = vmatprep.subr.bf16.mxu0 0
        %3570 = vmatpush1.bf16.msra.mxu0 0
        %3571 = vmatprep.subr.bf16.mxu0 0
        %3572 = vmatpush1.bf16.msra.mxu0 0
        %3573 = vmatprep.subr.bf16.mxu0 0
        %3574 = vmatpush1.bf16.msra.mxu0 0
        %3575 = vmatprep.subr.bf16.mxu0 0
        %3576 = vmatpush1.bf16.msra.mxu0 0
        %3577 = vmatprep.subr.bf16.mxu0 0
        %3578 = vmatpush1.bf16.msra.mxu0 0
        %3579 = vmatprep.mubr.bf16.mxu0 0
        %3580 = vmatmul.mubr.bf16.gmra.mrb[0].mxu0 %v3332
        %v3581 = vpop.f32.mrb[0].mxu0
        %v3582 = vadd.f32 %v3370, %v3581
        %v3583 = vpop.f32.mrb[0].mxu0
        %v3584 = vadd.f32 %v3374, %v3583
        %v3585 = vpop.f32.mrb[0].mxu0
        %v3586 = vadd.f32 %v3370, %v3585
        %v3587 = vpop.f32.mrb[0].mxu0
        %v3588 = vadd.f32 %v3374, %v3587
        %3589 = vdwg.mxu0
        %3590 = vmatprep.subr.bf16.mxu0 %v3486
        %3591 = vmatpush1.bf16.msra.mxu0 %v3485
        %3592 = vmatprep.subr.bf16.mxu0 %v3490
        %3593 = vmatpush1.bf16.msra.mxu0 %v3489
        %3594 = vmatprep.subr.bf16.mxu0 %v3494
        %3595 = vmatpush1.bf16.msra.mxu0 %v3493
        %3596 = vmatprep.subr.bf16.mxu0 %v3498
        %3597 = vmatpush1.bf16.msra.mxu0 %v3497
        %3598 = vmatprep.subr.bf16.mxu0 %v3502
        %3599 = vmatpush1.bf16.msra.mxu0 %v3501
        %3600 = vmatprep.subr.bf16.mxu0 %v3506
        %3601 = vmatpush1.bf16.msra.mxu0 %v3505
        %3602 = vmatprep.subr.bf16.mxu0 %v3510
        %3603 = vmatpush1.bf16.msra.mxu0 %v3509
        %3604 = vmatprep.subr.bf16.mxu0 %v3514
        %3605 = vmatpush1.bf16.msra.mxu0 %v3513
        %3606 = vmatprep.subr.bf16.mxu0 0
        %3607 = vmatpush1.bf16.msra.mxu0 0
        %3608 = vmatprep.subr.bf16.mxu0 0
        %3609 = vmatpush1.bf16.msra.mxu0 0
        %3610 = vmatprep.subr.bf16.mxu0 0
        %3611 = vmatpush1.bf16.msra.mxu0 0
        %3612 = vmatprep.subr.bf16.mxu0 0
        %3613 = vmatpush1.bf16.msra.mxu0 0
        %3614 = vmatprep.subr.bf16.mxu0 0
        %3615 = vmatpush1.bf16.msra.mxu0 0
        %3616 = vmatprep.subr.bf16.mxu0 0
        %3617 = vmatpush1.bf16.msra.mxu0 0
        %3618 = vmatprep.subr.bf16.mxu0 0
        %3619 = vmatpush1.bf16.msra.mxu0 0
        %3620 = vmatprep.subr.bf16.mxu0 0
        %3621 = vmatpush1.bf16.msra.mxu0 0
        %3622 = vmatprep.mubr.bf16.mxu0 0
        %3623 = vmatmul.mubr.bf16.gmra.mrb[0].mxu0 %v3332
        %v3624 = vpop.f32.mrb[0].mxu0
        %v3625 = vadd.f32 %v3378, %v3624
        %v3626 = vpop.f32.mrb[0].mxu0
        %v3627 = vadd.f32 %v3382, %v3626
        %v3628 = vpop.f32.mrb[0].mxu0
        %v3629 = vadd.f32 %v3378, %v3628
        %v3630 = vpop.f32.mrb[0].mxu0
        %v3631 = vadd.f32 %v3382, %v3630
        %3632 = vdwg.mxu0
        %v3633 = vmax.f32 %v3582, 0.0
        %v3634 = vmax.f32 %v3584, 0.0
        %v3635 = vmax.f32 %v3625, 0.0
        %v3636 = vmax.f32 %v3627, 0.0
        %v3637 = vmax.f32 %v3586, 0.0
        %v3638 = vmax.f32 %v3588, 0.0
        %v3639 = vmax.f32 %v3629, 0.0
        %v3640 = vmax.f32 %v3631, 0.0
        %v3641 = vpack.c.bf16 %v3637, %v3633
        %v3642 = vpack.c.bf16 %v3638, %v3634
        %v3643 = vpack.c.bf16 %v3639, %v3635
        %v3644 = vpack.c.bf16 %v3640, %v3636
        %v3645 = vld [vmem:[%s748] sm:$0xf]
        %v3646 = vld [vmem:[%s748 + $0x4] sm:$0xf]
        %v3647 = vld [vmem:[%s748 + $0x8] sm:$0xf]
        %v3648 = vld [vmem:[%s748 + $0xc] sm:$0xf]
        %v3649 = vld [vmem:[%s748 + $0x10] sm:$0xf]
        %v3650 = vld [vmem:[%s748 + $0x14] sm:$0xf]
        %v3651 = vld [vmem:[%s748 + $0x18] sm:$0xf]
        %v3652 = vld [vmem:[%s748 + $0x1c] sm:$0xf]
        %v3653 = vld [vmem:[%s748 + $0x20] sm:$0xf]
        %v3654 = vld [vmem:[%s748 + $0x24] sm:$0xf]
        %v3655 = vld [vmem:[%s748 + $0x28] sm:$0xf]
        %v3656 = vld [vmem:[%s748 + $0x2c] sm:$0xf]
        %v3657 = vld [vmem:[%s748 + $0x30] sm:$0xf]
        %v3658 = vld [vmem:[%s748 + $0x34] sm:$0xf]
        %v3659 = vld [vmem:[%s748 + $0x38] sm:$0xf]
        %v3660 = vld [vmem:[%s748 + $0x3c] sm:$0xf]
        %v3661 = vld [vmem:[%s748 + $0x40] sm:$0xf]
        %v3662 = vld [vmem:[%s748 + $0x44] sm:$0xf]
        %v3663 = vld [vmem:[%s748 + $0x48] sm:$0xf]
        %v3664 = vld [vmem:[%s748 + $0x4c] sm:$0xf]
        %v3665 = vld [vmem:[%s748 + $0x50] sm:$0xf]
        %v3666 = vld [vmem:[%s748 + $0x54] sm:$0xf]
        %v3667 = vld [vmem:[%s748 + $0x58] sm:$0xf]
        %v3668 = vld [vmem:[%s748 + $0x5c] sm:$0xf]
        %v3669 = vld [vmem:[%s748 + $0x60] sm:$0xf]
        %v3670 = vld [vmem:[%s748 + $0x64] sm:$0xf]
        %v3671 = vld [vmem:[%s748 + $0x68] sm:$0xf]
        %v3672 = vld [vmem:[%s748 + $0x6c] sm:$0xf]
        %v3673 = vld [vmem:[%s748 + $0x70] sm:$0xf]
        %v3674 = vld [vmem:[%s748 + $0x74] sm:$0xf]
        %v3675 = vld [vmem:[%s748 + $0x78] sm:$0xf]
        %v3676 = vld [vmem:[%s748 + $0x7c] sm:$0xf]
        %v3677 = vld [vmem:[%s748 + $0x80] sm:$0xf]
        %v3678 = vld [vmem:[%s748 + $0x84] sm:$0xf]
        %v3679 = vld [vmem:[%s748 + $0x88] sm:$0xf]
        %v3680 = vld [vmem:[%s748 + $0x8c] sm:$0xf]
        %v3681 = vld [vmem:[%s748 + $0x90] sm:$0xf]
        %v3682 = vld [vmem:[%s748 + $0x94] sm:$0xf]
        %v3683 = vld [vmem:[%s748 + $0x98] sm:$0xf]
        %v3684 = vld [vmem:[%s748 + $0x9c] sm:$0xf]
        %v3685 = vld [vmem:[%s748 + $0xa0] sm:$0xf]
        %v3686 = vld [vmem:[%s748 + $0xa4] sm:$0xf]
        %v3687 = vld [vmem:[%s748 + $0xa8] sm:$0xf]
        %v3688 = vld [vmem:[%s748 + $0xac] sm:$0xf]
        %v3689 = vld [vmem:[%s748 + $0xb0] sm:$0xf]
        %v3690 = vld [vmem:[%s748 + $0xb4] sm:$0xf]
        %v3691 = vld [vmem:[%s748 + $0xb8] sm:$0xf]
        %v3692 = vld [vmem:[%s748 + $0xbc] sm:$0xf]
        %v3693 = vld [vmem:[%s748 + $0xc0] sm:$0xf]
        %v3694 = vld [vmem:[%s748 + $0xc4] sm:$0xf]
        %v3695 = vld [vmem:[%s748 + $0xc8] sm:$0xf]
        %v3696 = vld [vmem:[%s748 + $0xcc] sm:$0xf]
        %v3697 = vld [vmem:[%s748 + $0xd0] sm:$0xf]
        %v3698 = vld [vmem:[%s748 + $0xd4] sm:$0xf]
        %v3699 = vld [vmem:[%s748 + $0xd8] sm:$0xf]
        %v3700 = vld [vmem:[%s748 + $0xdc] sm:$0xf]
        %v3701 = vld [vmem:[%s748 + $0xe0] sm:$0xf]
        %v3702 = vld [vmem:[%s748 + $0xe4] sm:$0xf]
        %v3703 = vld [vmem:[%s748 + $0xe8] sm:$0xf]
        %v3704 = vld [vmem:[%s748 + $0xec] sm:$0xf]
        %v3705 = vld [vmem:[%s748 + $0xf0] sm:$0xf]
        %v3706 = vld [vmem:[%s748 + $0xf4] sm:$0xf]
        %v3707 = vld [vmem:[%s748 + $0xf8] sm:$0xf]
        %v3708 = vld [vmem:[%s748 + $0xfc] sm:$0xf]
        %v3709 = vld [vmem:[%s850] sm:$0x1]
        %v3711 = vlaneseq
        %v3712 = vshrl.u32 %v3711, 7
        %v3713 = vsub.s32 0, %v3712
        %v3714 = vrot.slane %v3709, %v3713
        %v3780 = vunpack.c.l.b16 %v3645
        %v3781 = vunpack.c.l.b16 %v3646
        %v3782 = vunpack.c.l.b16 %v3647
        %v3783 = vunpack.c.l.b16 %v3648
        %v3784 = vunpack.c.l.b16 %v3649
        %v3785 = vunpack.c.l.b16 %v3650
        %v3786 = vunpack.c.l.b16 %v3651
        %v3787 = vunpack.c.l.b16 %v3652
        %v3788 = vunpack.c.l.b16 %v3653
        %v3789 = vunpack.c.l.b16 %v3654
        %v3790 = vunpack.c.l.b16 %v3655
        %v3791 = vunpack.c.l.b16 %v3656
        %v3792 = vunpack.c.l.b16 %v3657
        %v3793 = vunpack.c.l.b16 %v3658
        %v3794 = vunpack.c.l.b16 %v3659
        %v3795 = vunpack.c.l.b16 %v3660
        %v3796 = vunpack.c.l.b16 %v3661
        %v3797 = vunpack.c.l.b16 %v3662
        %v3798 = vunpack.c.l.b16 %v3663
        %v3799 = vunpack.c.l.b16 %v3664
        %v3800 = vunpack.c.l.b16 %v3665
        %v3801 = vunpack.c.l.b16 %v3666
        %v3802 = vunpack.c.l.b16 %v3667
        %v3803 = vunpack.c.l.b16 %v3668
        %v3804 = vunpack.c.l.b16 %v3669
        %v3805 = vunpack.c.l.b16 %v3670
        %v3806 = vunpack.c.l.b16 %v3671
        %v3807 = vunpack.c.l.b16 %v3672
        %v3808 = vunpack.c.l.b16 %v3673
        %v3809 = vunpack.c.l.b16 %v3674
        %v3810 = vunpack.c.l.b16 %v3675
        %v3811 = vunpack.c.l.b16 %v3676
        %v3812 = vunpack.c.l.b16 %v3677
        %v3813 = vunpack.c.l.b16 %v3678
        %v3814 = vunpack.c.l.b16 %v3679
        %v3815 = vunpack.c.l.b16 %v3680
        %v3816 = vunpack.c.l.b16 %v3681
        %v3817 = vunpack.c.l.b16 %v3682
        %v3818 = vunpack.c.l.b16 %v3683
        %v3819 = vunpack.c.l.b16 %v3684
        %v3820 = vunpack.c.l.b16 %v3685
        %v3821 = vunpack.c.l.b16 %v3686
        %v3822 = vunpack.c.l.b16 %v3687
        %v3823 = vunpack.c.l.b16 %v3688
        %v3824 = vunpack.c.l.b16 %v3689
        %v3825 = vunpack.c.l.b16 %v3690
        %v3826 = vunpack.c.l.b16 %v3691
        %v3827 = vunpack.c.l.b16 %v3692
        %v3828 = vunpack.c.l.b16 %v3693
        %v3829 = vunpack.c.l.b16 %v3694
        %v3830 = vunpack.c.l.b16 %v3695
        %v3831 = vunpack.c.l.b16 %v3696
        %v3832 = vunpack.c.l.b16 %v3697
        %v3833 = vunpack.c.l.b16 %v3698
        %v3834 = vunpack.c.l.b16 %v3699
        %v3835 = vunpack.c.l.b16 %v3700
        %v3836 = vunpack.c.l.b16 %v3701
        %v3837 = vunpack.c.l.b16 %v3702
        %v3838 = vunpack.c.l.b16 %v3703
        %v3839 = vunpack.c.l.b16 %v3704
        %v3840 = vunpack.c.l.b16 %v3705
        %v3841 = vunpack.c.l.b16 %v3706
        %v3842 = vunpack.c.l.b16 %v3707
        %v3843 = vunpack.c.l.b16 %v3708
        %v3844 = vpack.c.b16 %v3781, %v3780
        %v3845 = vpack.c.b16 %v3783, %v3782
        %v3846 = vpack.c.b16 %v3785, %v3784
        %v3847 = vpack.c.b16 %v3787, %v3786
        %v3848 = vpack.c.b16 %v3789, %v3788
        %v3849 = vpack.c.b16 %v3791, %v3790
        %v3850 = vpack.c.b16 %v3793, %v3792
        %v3851 = vpack.c.b16 %v3795, %v3794
        %v3852 = vpack.c.b16 %v3797, %v3796
        %v3853 = vpack.c.b16 %v3799, %v3798
        %v3854 = vpack.c.b16 %v3801, %v3800
        %v3855 = vpack.c.b16 %v3803, %v3802
        %v3856 = vpack.c.b16 %v3805, %v3804
        %v3857 = vpack.c.b16 %v3807, %v3806
        %v3858 = vpack.c.b16 %v3809, %v3808
        %v3859 = vpack.c.b16 %v3811, %v3810
        %v3860 = vpack.c.b16 %v3813, %v3812
        %v3861 = vpack.c.b16 %v3815, %v3814
        %v3862 = vpack.c.b16 %v3817, %v3816
        %v3863 = vpack.c.b16 %v3819, %v3818
        %v3864 = vpack.c.b16 %v3821, %v3820
        %v3865 = vpack.c.b16 %v3823, %v3822
        %v3866 = vpack.c.b16 %v3825, %v3824
        %v3867 = vpack.c.b16 %v3827, %v3826
        %v3868 = vpack.c.b16 %v3829, %v3828
        %v3869 = vpack.c.b16 %v3831, %v3830
        %v3870 = vpack.c.b16 %v3833, %v3832
        %v3871 = vpack.c.b16 %v3835, %v3834
        %v3872 = vpack.c.b16 %v3837, %v3836
        %v3873 = vpack.c.b16 %v3839, %v3838
        %v3874 = vpack.c.b16 %v3841, %v3840
        %v3875 = vpack.c.b16 %v3843, %v3842
        %3908 = vmatprep.subr.bf16.mxu0 0
        %3909 = vmatpush1.bf16.msra.mxu0 %v3844
        %3910 = vmatprep.subr.bf16.mxu0 0
        %3911 = vmatpush1.bf16.msra.mxu0 %v3845
        %3912 = vmatprep.subr.bf16.mxu0 0
        %3913 = vmatpush1.bf16.msra.mxu0 %v3846
        %3914 = vmatprep.subr.bf16.mxu0 0
        %3915 = vmatpush1.bf16.msra.mxu0 %v3847
        %3916 = vmatprep.subr.bf16.mxu0 0
        %3917 = vmatpush1.bf16.msra.mxu0 %v3848
        %3918 = vmatprep.subr.bf16.mxu0 0
        %3919 = vmatpush1.bf16.msra.mxu0 %v3849
        %3920 = vmatprep.subr.bf16.mxu0 0
        %3921 = vmatpush1.bf16.msra.mxu0 %v3850
        %3922 = vmatprep.subr.bf16.mxu0 0
        %3923 = vmatpush1.bf16.msra.mxu0 %v3851
        %3924 = vmatprep.subr.bf16.mxu0 0
        %3925 = vmatpush1.bf16.msra.mxu0 %v3852
        %3926 = vmatprep.subr.bf16.mxu0 0
        %3927 = vmatpush1.bf16.msra.mxu0 %v3853
        %3928 = vmatprep.subr.bf16.mxu0 0
        %3929 = vmatpush1.bf16.msra.mxu0 %v3854
        %3930 = vmatprep.subr.bf16.mxu0 0
        %3931 = vmatpush1.bf16.msra.mxu0 %v3855
        %3932 = vmatprep.subr.bf16.mxu0 0
        %3933 = vmatpush1.bf16.msra.mxu0 %v3856
        %3934 = vmatprep.subr.bf16.mxu0 0
        %3935 = vmatpush1.bf16.msra.mxu0 %v3857
        %3936 = vmatprep.subr.bf16.mxu0 0
        %3937 = vmatpush1.bf16.msra.mxu0 %v3858
        %3938 = vmatprep.subr.bf16.mxu0 0
        %3939 = vmatpush1.bf16.msra.mxu0 %v3859
        %3940 = vmatprep.mubr.bf16.mxu0 %v3642
        %3941 = vmatmul.mubr.bf16.gmra.mrb[0].mxu0 %v3641
        %v3942 = vpop.f32.mrb[0].mxu0
        %v3943 = vadd.f32 %v3714, %v3942
        %v3944 = vpop.f32.mrb[0].mxu0
        %v3945 = vpop.f32.mrb[0].mxu0
        %v3946 = vadd.f32 %v3714, %v3945
        %v3947 = vpop.f32.mrb[0].mxu0
        %3948 = vdwg.mxu0
        %3949 = vmatprep.subr.bf16.mxu0 0
        %3950 = vmatpush1.bf16.msra.mxu0 %v3860
        %3951 = vmatprep.subr.bf16.mxu0 0
        %3952 = vmatpush1.bf16.msra.mxu0 %v3861
        %3953 = vmatprep.subr.bf16.mxu0 0
        %3954 = vmatpush1.bf16.msra.mxu0 %v3862
        %3955 = vmatprep.subr.bf16.mxu0 0
        %3956 = vmatpush1.bf16.msra.mxu0 %v3863
        %3957 = vmatprep.subr.bf16.mxu0 0
        %3958 = vmatpush1.bf16.msra.mxu0 %v3864
        %3959 = vmatprep.subr.bf16.mxu0 0
        %3960 = vmatpush1.bf16.msra.mxu0 %v3865
        %3961 = vmatprep.subr.bf16.mxu0 0
        %3962 = vmatpush1.bf16.msra.mxu0 %v3866
        %3963 = vmatprep.subr.bf16.mxu0 0
        %3964 = vmatpush1.bf16.msra.mxu0 %v3867
        %3965 = vmatprep.subr.bf16.mxu0 0
        %3966 = vmatpush1.bf16.msra.mxu0 %v3868
        %3967 = vmatprep.subr.bf16.mxu0 0
        %3968 = vmatpush1.bf16.msra.mxu0 %v3869
        %3969 = vmatprep.subr.bf16.mxu0 0
        %3970 = vmatpush1.bf16.msra.mxu0 %v3870
        %3971 = vmatprep.subr.bf16.mxu0 0
        %3972 = vmatpush1.bf16.msra.mxu0 %v3871
        %3973 = vmatprep.subr.bf16.mxu0 0
        %3974 = vmatpush1.bf16.msra.mxu0 %v3872
        %3975 = vmatprep.subr.bf16.mxu0 0
        %3976 = vmatpush1.bf16.msra.mxu0 %v3873
        %3977 = vmatprep.subr.bf16.mxu0 0
        %3978 = vmatpush1.bf16.msra.mxu0 %v3874
        %3979 = vmatprep.subr.bf16.mxu0 0
        %3980 = vmatpush1.bf16.msra.mxu0 %v3875
        %3981 = vmatprep.mubr.bf16.mxu0 %v3644
        %3982 = vmatmul.mubr.bf16.gmra.mrb[0].mxu0 %v3643
        %v3983 = vpop.f32.mrb[0].mxu0
        %v3984 = vadd.f32 %v3943, %v3983
        %v3985 = vpop.f32.mrb[0].mxu0
        %v3986 = vpop.f32.mrb[0].mxu0
        %v3987 = vadd.f32 %v3946, %v3986
        %v3988 = vpop.f32.mrb[0].mxu0
        %3989 = vdwg.mxu0
        %v3990 = vadd.f32 %v3330, %v3984
        %v3991 = vadd.f32 %v3331, %v3987
        %v3992 = vld [vmem:[%s859] sm:$0x1]
        %v3993 = vld [vmem:[%s862] sm:$0x1]
        %3994 = vadd.xlane.f32.xlu0 %v3990
        %v3995 = vpop.xlane.xlu0 %3994
        %3996 = vadd.xlane.f32.xlu0 %v3991
        %v3997 = vpop.xlane.xlu0 %3996
        %v3998 = vmul.f32 %v3995, %v3297
        %v3999 = vmul.f32 %v3997, %v3297
        %v4000 = vsub.f32 %v3990, %v3998
        %v4001 = vsub.f32 %v3991, %v3999
        %v4002 = vmul.f32 %v4000, %v4000
        %v4003 = vmul.f32 %v4001, %v4001
        %4004 = vadd.xlane.f32.xlu0 %v4002
        %v4005 = vpop.xlane.xlu0 %4004
        %4006 = vadd.xlane.f32.xlu0 %v4003
        %v4007 = vpop.xlane.xlu0 %4006
        %v4008 = vmul.f32 %v4005, %v3297
        %v4009 = vmul.f32 %v4007, %v3297
        %v4010 = vadd.f32 %v4008, 1e-05
        %v4011 = vadd.f32 %v4009, 1e-05
        %v4012 = vrsqrt.pop %v4010
        %v4013 = vrsqrt.pop %v4011
        %v4014 = vmul.f32 %v4000, %v4012
        %v4015 = vmul.f32 %v4001, %v4013
        %v4017 = vlaneseq
        %v4018 = vshrl.u32 %v4017, 7
        %v4019 = vsub.s32 0, %v4018
        %v4020 = vrot.slane %v3992, %v4019
        %v4022 = vmul.f32 %v4014, %v4020
        %v4023 = vmul.f32 %v4015, %v4020
        %v4025 = vlaneseq
        %v4026 = vshrl.u32 %v4025, 7
        %v4027 = vsub.s32 0, %v4026
        %v4028 = vrot.slane %v3993, %v4027
        %v4030 = vadd.f32 %v4022, %v4028
        %v4031 = vadd.f32 %v4023, %v4028
        %4032 = vst [vmem:[#allocation2] sm:$0xff] %v4030
        %4033 = vst [vmem:[#allocation2 + $0x8] sm:$0xff] %v4031
        %p4034 = scmp.eq.s32.totalorder %s44, 3
        // Predicated region
        $region121: #{tpu_custom_call.1} parent=87 // pred_check
          %p4035 = pneg %p4034
        $region122: #{tpu_custom_call.1} parent=87 // pred_check_branch
          %4037 = sbr.rel (%p4035) target = $region124
        $region123: #{tpu_custom_call.1} parent=87 // pred_region
          %v4038 = vld [vmem:[%s13] sm:$0x1]
          %v4039 = vld [vmem:[%s14] sm:$0x1]
          %4040 = vadd.xlane.f32.xlu0 %v4030
          %v4041 = vpop.xlane.xlu0 %4040
          %4042 = vadd.xlane.f32.xlu0 %v4031
          %v4043 = vpop.xlane.xlu0 %4042
          %v4044 = vmul.f32 %v4041, %v3297
          %v4045 = vmul.f32 %v4043, %v3297
          %v4046 = vsub.f32 %v4030, %v4044
          %v4047 = vsub.f32 %v4031, %v4045
          %v4048 = vmul.f32 %v4046, %v4046
          %v4049 = vmul.f32 %v4047, %v4047
          %4050 = vadd.xlane.f32.xlu0 %v4048
          %v4051 = vpop.xlane.xlu0 %4050
          %4052 = vadd.xlane.f32.xlu0 %v4049
          %v4053 = vpop.xlane.xlu0 %4052
          %v4054 = vmul.f32 %v4051, %v3297
          %v4055 = vmul.f32 %v4053, %v3297
          %v4056 = vadd.f32 %v4054, 1e-05
          %v4057 = vadd.f32 %v4055, 1e-05
          %v4058 = vrsqrt.pop %v4056
          %v4059 = vrsqrt.pop %v4057
          %v4060 = vmul.f32 %v4046, %v4058
          %v4061 = vmul.f32 %v4047, %v4059
          %v4063 = vlaneseq
          %v4064 = vshrl.u32 %v4063, 7
          %v4065 = vsub.s32 0, %v4064
          %v4066 = vrot.slane %v4038, %v4065
          %v4068 = vmul.f32 %v4060, %v4066
          %v4069 = vmul.f32 %v4061, %v4066
          %v4071 = vlaneseq
          %v4072 = vshrl.u32 %v4071, 7
          %v4073 = vsub.s32 0, %v4072
          %v4074 = vrot.slane %v4039, %v4073
          %v4076 = vadd.f32 %v4068, %v4074
          %v4077 = vadd.f32 %v4069, %v4074
          %v4078 = vpack.c.bf16 %v4077, %v4076
          %v4079 = vld [vmem:[#allocation14] sm:$0xf]
          %v4080 = vld [vmem:[#allocation14 + $0x4] sm:$0xf]
          %v4081 = vld [vmem:[#allocation14 + $0x8] sm:$0xf]
          %v4082 = vld [vmem:[#allocation14 + $0xc] sm:$0xf]
          %v4083 = vld [vmem:[#allocation14 + $0x10] sm:$0xf]
          %v4084 = vld [vmem:[#allocation14 + $0x14] sm:$0xf]
          %v4085 = vld [vmem:[#allocation14 + $0x18] sm:$0xf]
          %v4086 = vld [vmem:[#allocation14 + $0x1c] sm:$0xf]
          %v4087 = vld [vmem:[#allocation14 + $0x20] sm:$0xf]
          %v4088 = vld [vmem:[#allocation14 + $0x24] sm:$0xf]
          %v4089 = vld [vmem:[#allocation14 + $0x28] sm:$0xf]
          %v4090 = vld [vmem:[#allocation14 + $0x2c] sm:$0xf]
          %v4091 = vld [vmem:[#allocation14 + $0x30] sm:$0xf]
          %v4092 = vld [vmem:[#allocation14 + $0x34] sm:$0xf]
          %v4093 = vld [vmem:[#allocation14 + $0x38] sm:$0xf]
          %v4094 = vld [vmem:[#allocation14 + $0x3c] sm:$0xf]
          %v4095 = vld [vmem:[%s16] sm:$0x1]
          %v4097 = vlaneseq
          %v4098 = vshrl.u32 %v4097, 7
          %v4099 = vsub.s32 0, %v4098
          %v4100 = vrot.slane %v4095, %v4099
          %v4118 = vunpack.c.l.b16 %v4079
          %v4119 = vunpack.c.l.b16 %v4080
          %v4120 = vunpack.c.l.b16 %v4081
          %v4121 = vunpack.c.l.b16 %v4082
          %v4122 = vunpack.c.l.b16 %v4083
          %v4123 = vunpack.c.l.b16 %v4084
          %v4124 = vunpack.c.l.b16 %v4085
          %v4125 = vunpack.c.l.b16 %v4086
          %v4126 = vunpack.c.l.b16 %v4087
          %v4127 = vunpack.c.l.b16 %v4088
          %v4128 = vunpack.c.l.b16 %v4089
          %v4129 = vunpack.c.l.b16 %v4090
          %v4130 = vunpack.c.l.b16 %v4091
          %v4131 = vunpack.c.l.b16 %v4092
          %v4132 = vunpack.c.l.b16 %v4093
          %v4133 = vunpack.c.l.b16 %v4094
          %v4134 = vpack.c.b16 %v4119, %v4118
          %v4135 = vpack.c.b16 %v4121, %v4120
          %v4136 = vpack.c.b16 %v4123, %v4122
          %v4137 = vpack.c.b16 %v4125, %v4124
          %v4138 = vpack.c.b16 %v4127, %v4126
          %v4139 = vpack.c.b16 %v4129, %v4128
          %v4140 = vpack.c.b16 %v4131, %v4130
          %v4141 = vpack.c.b16 %v4133, %v4132
          %4150 = vmatprep.subr.bf16.mxu0 0
          %4151 = vmatpush1.bf16.msra.mxu0 %v4134
          %4152 = vmatprep.subr.bf16.mxu0 0
          %4153 = vmatpush1.bf16.msra.mxu0 %v4135
          %4154 = vmatprep.subr.bf16.mxu0 0
          %4155 = vmatpush1.bf16.msra.mxu0 %v4136
          %4156 = vmatprep.subr.bf16.mxu0 0
          %4157 = vmatpush1.bf16.msra.mxu0 %v4137
          %4158 = vmatprep.subr.bf16.mxu0 0
          %4159 = vmatpush1.bf16.msra.mxu0 %v4138
          %4160 = vmatprep.subr.bf16.mxu0 0
          %4161 = vmatpush1.bf16.msra.mxu0 %v4139
          %4162 = vmatprep.subr.bf16.mxu0 0
          %4163 = vmatpush1.bf16.msra.mxu0 %v4140
          %4164 = vmatprep.subr.bf16.mxu0 0
          %4165 = vmatpush1.bf16.msra.mxu0 %v4141
          %4166 = vmatprep.subr.bf16.mxu0 0
          %4167 = vmatpush1.bf16.msra.mxu0 0
          %4168 = vmatprep.subr.bf16.mxu0 0
          %4169 = vmatpush1.bf16.msra.mxu0 0
          %4170 = vmatprep.subr.bf16.mxu0 0
          %4171 = vmatpush1.bf16.msra.mxu0 0
          %4172 = vmatprep.subr.bf16.mxu0 0
          %4173 = vmatpush1.bf16.msra.mxu0 0
          %4174 = vmatprep.subr.bf16.mxu0 0
          %4175 = vmatpush1.bf16.msra.mxu0 0
          %4176 = vmatprep.subr.bf16.mxu0 0
          %4177 = vmatpush1.bf16.msra.mxu0 0
          %4178 = vmatprep.subr.bf16.mxu0 0
          %4179 = vmatpush1.bf16.msra.mxu0 0
          %4180 = vmatprep.subr.bf16.mxu0 0
          %4181 = vmatpush1.bf16.msra.mxu0 0
          %4182 = vmatprep.mubr.bf16.mxu0 0
          %4183 = vmatmul.mubr.bf16.gmra.mrb[0].mxu0 %v4078
          %v4184 = vpop.f32.mrb[0].mxu0
          %v4185 = vadd.f32 %v4100, %v4184
          %v4186 = vpop.f32.mrb[0].mxu0
          %v4187 = vpop.f32.mrb[0].mxu0
          %v4188 = vadd.f32 %v4100, %v4187
          %v4189 = vpop.f32.mrb[0].mxu0
          %4190 = vdwg.mxu0
          %4191 = vst [vmem:[#allocation15] sm:$0xff] %v4185
          %4192 = vst [vmem:[#allocation15 + $0x8] sm:$0xff] %v4188
        $region124: #{tpu_custom_call.1} parent=87 // pred_fallthru
          _
        // Predicated region
        $region125: #{tpu_custom_call.1} parent=87 // pred_check
          %p4193 = pneg %p491
        $region126: #{tpu_custom_call.1} parent=87 // pred_check_branch
          %4195 = sbr.rel (%p4193) target = $region128
        $region127: #{tpu_custom_call.1} parent=87 // pred_region
          %s4196 = smul.u32 2, %s43
          %s4198 = ssub.s32 256, 256
          %4199 = vsyncadd [#allocation5], %s4198
          %s4200 = smul.addr %s4196, 128
          %s4201 = scalar_lea.hbm %s17, %s4200
          %s4202 = sshll.u32 [#allocation15], 4
          %s4203 = int_to_ptr.vmem [resolvable:$true] %s4202
          %4208 = dma.vmem_to_hbm [thread:$0]  %s4203, 256, %s4201, [#allocation5], 128, 128, 8
        $region128: #{tpu_custom_call.1} parent=87 // pred_fallthru
          _
        // Predicated region
        $region129: #{tpu_custom_call.1} parent=87 // pred_check
          %p4209 = pneg %p491
        $region130: #{tpu_custom_call.1} parent=87 // pred_check_branch
          %4211 = sbr.rel (%p4209) target = $region132
        $region131: #{tpu_custom_call.1} parent=87 // pred_region
          %4212 = dma.done [#allocation5], 256
        $region132: #{tpu_custom_call.1} parent=87 // pred_fallthru
          _
      $region88: #{tpu_custom_call.1} parent=5 // pred_fallthru
        _
      %p4213 = scmp.le.s32.totalorder 2, %s34
      // Predicated region
      $region133: #{tpu_custom_call.1} parent=5 // pred_check
        %p4214 = pneg %p4213
      $region134: #{tpu_custom_call.1} parent=5 // pred_check_branch
        %4216 = sbr.rel (%p4214) target = $region136
      $region135: #{tpu_custom_call.1} parent=5 // pred_region
        %s4217 = ssub.s32 %s34, 2
      $region136: #{tpu_custom_call.1} parent=5 // pred_fallthru
        _
    $region6: #{tpu_custom_call.1} parent=1 // loop_footer
      %s38 = sadd.s32 1, %s34
    $region7: #{tpu_custom_call.1} parent=1 // loop_footer_branch
      %33 = sbr.rel target = $region3
    $region8: #{tpu_custom_call.1} parent=1 // loop_exit
      _
    %4218 = vsyncpa [#allocation4], 1
    %s4219 = scalar_lea.sflag [#allocation4], 1
    %4220 = vsyncpa %s4219, 1
    %4221 = vsyncpa [#allocation7], 1
    %s4222 = scalar_lea.sflag [#allocation7], 1
    %4223 = vsyncpa %s4222, 1
    %4224 = vsyncpa [#allocation10], 1
    %s4225 = scalar_lea.sflag [#allocation10], 1
    %4226 = vsyncpa %s4225, 1
    %4227 = vsyncpa [#allocation13], 1
    %s4228 = scalar_lea.sflag [#allocation13], 1
    %4229 = vsyncpa %s4228, 1
    %4230 = vsyncpa [#allocation5], 1
    %s4231 = scalar_lea.sflag [#allocation5], 1
    %4232 = vsyncpa %s4231, 1

</llo_original>
